<compile_context>
chip_gen: v6e
topology: v6e:2x2x1
jax: 0.10.0
libtpu: 0.0.40
codegen_flags: <defaults>
</compile_context>

<pallas_src>
import functools

import jax
import jax.numpy as jnp
import numpy as np
from jax.experimental import pallas as pl
from jax.experimental.pallas import tpu as pltpu

LANE = 128                       # pad channel dims to a multiple of this (lane-dense)
VMEM_LIMIT = 32 * 1024 * 1024    # explicit scoped-VMEM budget (safe on v5e/v6e/v7x)


# ------------------------------- small helpers -------------------------------

def _round_up(x, m):
    return (x + m - 1) // m * m


def _pick_th(Ho, Wo):
    """Largest divisor TH of Ho s.t. the (TH*Wo, C) output tile is sublane-aligned
    (TH*Wo % 8 == 0) and has <= ~512 rows (big tiles ~ HBM roofline, small enough
    that the local f32 accumulator stays comfortably in VMEM)."""
    cap = max(1, 512 // max(Wo, 1))
    for th in range(min(Ho, cap), 0, -1):
        if Ho % th == 0 and (th * Wo) % 8 == 0:
            return th
    assert (Ho * Wo) % 8 == 0, "output spatial size must be a multiple of 8"
    return Ho


def _pick_tm(M):
    """Largest row tile (<= 1024, multiple of 8) that divides M."""
    for d in range(min(M, 1024), 0, -1):
        if M % d == 0 and d % 8 == 0:
            return d
    return M


def _pad_channels(a, c_to):
    pad = [(0, 0)] * (a.ndim - 1) + [(0, c_to - a.shape[-1])]
    return jnp.pad(a, pad)


def _pad_weight(w, cin_p, cout_p):
    kh, kw, cin, cout = w.shape
    return jnp.pad(w, ((0, 0), (0, 0), (0, cin_p - cin), (0, cout_p - cout)))


def _make_phases(xp, stride):
    """Phase-decompose a (spatially padded) NHWC tensor so that a stride-s conv only
    needs stride-1 slices inside the kernel:
        phases[n*s*s + (r%s)*s + (c%s), r//s, c//s, :] = xp[n, r, c, :]
    Pure permutation (1x bytes, one XLA pass) -- NOT a 9x im2col inflation."""
    N, Hp, Wp, C = xp.shape
    if stride == 1:
        return xp.reshape(N, Hp, Wp, C)
    assert stride == 2, "only stride 1 and 2 are supported"
    assert Hp % 2 == 0 and Wp % 2 == 0, "padded H/W must be even for stride 2"
    ph = xp.reshape(N, Hp // 2, 2, Wp // 2, 2, C).transpose(0, 2, 4, 1, 3, 5)
    return ph.reshape(N * 4, Hp // 2, Wp // 2, C)


# ------------------------------- Pallas kernels -------------------------------

def _conv_stats_kernel(*refs, KH, KW, stride, TH, Wo, with_sc):
    """One (image, output-row-tile) grid step of a KHxKW, stride-{1,2} convolution,
    fused with per-tile BN partial statistics and (optionally) the 1x1/stride-2
    shortcut convolution (which reads phase (1,1) -- already in VMEM).

    refs (with_sc=False): xph, w,        out, stats
    refs (with_sc=True) : xph, w, w_sc,  out, stats, sc_out, sc_stats

    xph : (stride*stride, Hph, Wph, Cin)  phases of the padded input image
    w   : (KH*KW, Cin, Cout)              bf16 weights
    out : (TH*Wo, Cout) f32               conv output tile
    stats: (1, 2, Cout) f32               per-tile [sum ; sum of squares]
    """
    if with_sc:
        xph_ref, w_ref, wsc_ref, out_ref, stats_ref, sc_ref, sc_stats_ref = refs
    else:
        xph_ref, w_ref, out_ref, stats_ref = refs

    i = pl.program_id(1)
    r0 = i * TH
    cin = xph_ref.shape[-1]
    cout = out_ref.shape[-1]

    def emit(acc, o_ref, st_ref):
        o_ref[...] = acc
        s1 = jnp.sum(acc, axis=0, keepdims=True)
        s2 = jnp.sum(acc * acc, axis=0, keepdims=True)
        st_ref[...] = jnp.concatenate([s1, s2], axis=0)[None]

    acc = jnp.zeros((TH * Wo, cout), jnp.float32)
    for kh in range(KH):                       # unrolled: KH*KW shifted bf16 matmuls
        for kw in range(KW):
            p = (kh % stride) * stride + (kw % stride)
            a = xph_ref[p, pl.ds(r0 + kh // stride, TH), pl.ds(kw // stride, Wo), :]
            a = a.reshape(TH * Wo, cin).astype(jnp.bfloat16)        # bf16 MXU operand
            acc = acc + jnp.dot(a, w_ref[kh * KW + kw],
                                preferred_element_type=jnp.float32)
    emit(acc, out_ref, stats_ref)

    if with_sc:
        # 1x1 / stride-2 shortcut conv: its input samples x[2oh, 2ow] are exactly
        # phase (1,1) (index 3) of the pad-1 phase decomposition, position (oh, ow).
        a_sc = xph_ref[3, pl.ds(r0, TH), pl.ds(0, Wo), :]
        a_sc = a_sc.reshape(TH * Wo, cin).astype(jnp.bfloat16)
        acc_sc = jnp.dot(a_sc, wsc_ref[...], preferred_element_type=jnp.float32)
        emit(acc_sc, sc_ref, sc_stats_ref)


def _bn_act_kernel(*refs, m_total, eps, residual, sc_bn):
    """Fused training-mode BN (from pre-reduced partial stats) + ReLU, optionally
    followed by (shortcut BN) + residual add + ReLU.  All math in f32."""
    if sc_bn:
        (x_ref, st_ref, g_ref, b_ref,
         sc_ref, sc_st_ref, sc_g_ref, sc_b_ref, o_ref) = refs
    elif residual:
        x_ref, st_ref, g_ref, b_ref, sc_ref, o_ref = refs
    else:
        x_ref, st_ref, g_ref, b_ref, o_ref = refs

    inv_m = 1.0 / m_total

    def bn(v, st, g, b):
        s = jnp.sum(st[...], axis=0)              # (2, C): finish cross-tile reduction
        mean = s[0:1, :] * inv_m
        var = s[1:2, :] * inv_m - mean * mean     # biased variance (PyTorch training)
        return (v - mean) * jax.lax.rsqrt(var + eps) * g[...] + b[...]

    y = jnp.maximum(bn(x_ref[...], st_ref, g_ref, b_ref), 0.0)
    if sc_bn:
        y = jnp.maximum(y + bn(sc_ref[...], sc_st_ref, sc_g_ref, sc_b_ref), 0.0)
    elif residual:
        y = jnp.maximum(y + sc_ref[...].astype(jnp.float32), 0.0)
    o_ref[...] = y.astype(o_ref.dtype)


# ----------------------------- pallas_call wrappers ---------------------------

def pallas_conv_stats(x_nhwc, w_hwio, *, stride, pad, w_sc=None):
    """KHxKW conv (stride 1/2, symmetric zero spatial pad, no bias) fused with
    per-tile BN partial statistics and, optionally, the 1x1/stride-2 shortcut conv.

    Returns (out (M,Cout) f32, stats (T,2,Cout) f32, Ho, Wo[, sc_out, sc_stats])."""
    N, H, W, Cin = x_nhwc.shape
    KH, KW, wcin, Cout = w_hwio.shape
    assert wcin == Cin
    with_sc = w_sc is not None
    if with_sc:
        assert stride == 2 and pad == 1, "shortcut fusion assumes stride-2 / pad-1"
    Ho = (H + 2 * pad - KH) // stride + 1
    Wo = (W + 2 * pad - KW) // stride + 1

    xp = x_nhwc
    if pad:
        xp = jnp.pad(xp, ((0, 0), (pad, pad), (pad, pad), (0, 0)))
    ph = _make_phases(xp, stride)                      # (N * s*s, Hph, Wph, Cin)
    w = w_hwio.reshape(KH * KW, Cin, Cout).astype(jnp.bfloat16)

    TH = _pick_th(Ho, Wo)
    nT = Ho // TH
    TM = TH * Wo
    M = N * Ho * Wo
    n_phases = stride * stride

    kernel = functools.partial(_conv_stats_kernel, KH=KH, KW=KW, stride=stride,
                               TH=TH, Wo=Wo, with_sc=with_sc)

    in_specs = [
        # phase-decomposed image is resident per n (DMA'd only when n changes)
        pl.BlockSpec((n_phases,) + ph.shape[1:], lambda n, i: (n, 0, 0, 0)),
        # bf16 weights: one full (KH*KW, Cin, Cout) block, reused by every step
        pl.BlockSpec(w.shape, lambda n, i: (0, 0, 0)),
    ]
    args = [ph, w]
    out_shape = [jax.ShapeDtypeStruct((M, Cout), jnp.float32),
                 jax.ShapeDtypeStruct((N * nT, 2, Cout), jnp.float32)]
    out_specs = [pl.BlockSpec((TM, Cout), lambda n, i: (n * nT + i, 0)),   # lane-dense
                 pl.BlockSpec((1, 2, Cout), lambda n, i: (n * nT + i, 0, 0))]
    if with_sc:
        wsc2d = w_sc.reshape(Cin, w_sc.shape[-1]).astype(jnp.bfloat16)
        in_specs.append(pl.BlockSpec(wsc2d.shape, lambda n, i: (0, 0)))
        args.append(wsc2d)
        out_shape += [jax.ShapeDtypeStruct((M, Cout), jnp.float32),
                      jax.ShapeDtypeStruct((N * nT, 2, Cout), jnp.float32)]
        out_specs += [pl.BlockSpec((TM, Cout), lambda n, i: (n * nT + i, 0)),
                      pl.BlockSpec((1, 2, Cout), lambda n, i: (n * nT + i, 0, 0))]

    outs = pl.pallas_call(
        kernel,
        out_shape=tuple(out_shape),
        grid=(N, nT),
        in_specs=in_specs,
        out_specs=tuple(out_specs),
        compiler_params=pltpu.CompilerParams(
            dimension_semantics=("parallel", "parallel"),   # megacore sharding on v7x
            vmem_limit_bytes=VMEM_LIMIT),
    )(*args)

    if with_sc:
        out, stats, sc_out, sc_stats = outs
        return out, stats, Ho, Wo, sc_out, sc_stats
    out, stats = outs
    return out, stats, Ho, Wo


def pallas_bn_act(x2d, stats, gamma, beta, *, m_total, out_dtype=jnp.float32,
                  sc=None, sc_stats=None, sc_gamma=None, sc_beta=None):
    """Fused BN+ReLU (+ shortcut-BN + residual add + ReLU) over an (M, C) tensor."""
    M, C = x2d.shape
    TM = _pick_tm(M)
    residual = sc is not None
    sc_bn = sc_stats is not None

    args = [x2d, stats, gamma.reshape(1, C), beta.reshape(1, C)]
    in_specs = [
        pl.BlockSpec((TM, C), lambda i: (i, 0)),
        pl.BlockSpec(stats.shape, lambda i: (0, 0, 0)),
        pl.BlockSpec((1, C), lambda i: (0, 0)),
        pl.BlockSpec((1, C), lambda i: (0, 0)),
    ]
    if residual:
        args.append(sc)
        in_specs.append(pl.BlockSpec((TM, C), lambda i: (i, 0)))
    if sc_bn:
        args += [sc_stats, sc_gamma.reshape(1, C), sc_beta.reshape(1, C)]
        in_specs += [
            pl.BlockSpec(sc_stats.shape, lambda i: (0, 0, 0)),
            pl.BlockSpec((1, C), lambda i: (0, 0)),
            pl.BlockSpec((1, C), lambda i: (0, 0)),
        ]

    kernel = functools.partial(_bn_act_kernel, m_total=float(m_total), eps=1e-5,
                               residual=residual, sc_bn=sc_bn)
    return pl.pallas_call(
        kernel,
        out_shape=jax.ShapeDtypeStruct((M, C), out_dtype),
        grid=(M // TM,),
        in_specs=in_specs,
        out_specs=pl.BlockSpec((TM, C), lambda i: (i, 0)),
        compiler_params=pltpu.CompilerParams(
            dimension_semantics=("parallel",),
            vmem_limit_bytes=VMEM_LIMIT),
    )(*args)


# --------------------------------- parameters ---------------------------------

def init_params(key, in_channels, out_channels, downsample):
    ks = jax.random.split(key, 8)
    s1 = 1.0 / np.sqrt(in_channels * 9)
    s2 = 1.0 / np.sqrt(out_channels * 9)
    ss = 1.0 / np.sqrt(in_channels)
    p = {
        # conv weights stored HWIO: (kh, kw, Cin, Cout)
        "conv1_w": jax.random.normal(ks[0], (3, 3, in_channels, out_channels), jnp.float32) * s1,
        "conv1_b": jax.random.normal(ks[1], (out_channels,), jnp.float32) * s1,
        "conv2_w": jax.random.normal(ks[2], (3, 3, out_channels, out_channels), jnp.float32) * s2,
        "conv2_b": jax.random.normal(ks[3], (out_channels,), jnp.float32) * s2,
        "bn1_gamma": jnp.ones((out_channels,), jnp.float32),
        "bn1_beta": jnp.zeros((out_channels,), jnp.float32),
        "bn2_gamma": jnp.ones((out_channels,), jnp.float32),
        "bn2_beta": jnp.zeros((out_channels,), jnp.float32),
    }
    if downsample:
        p.update({
            "sc_w": jax.random.normal(ks[4], (1, 1, in_channels, out_channels), jnp.float32) * ss,
            "sc_b": jax.random.normal(ks[5], (out_channels,), jnp.float32) * ss,
            "sc_gamma": jnp.ones((out_channels,), jnp.float32),
            "sc_beta": jnp.zeros((out_channels,), jnp.float32),
        })
    return p


# -------------------------------- Pallas forward -------------------------------

def resblock_forward(x_nchw, params, *, downsample):
    """Pallas implementation of ResBlock.forward (NCHW in / NCHW out)."""
    x = jnp.transpose(x_nchw, (0, 2, 3, 1)).astype(jnp.float32)     # NHWC
    N, H, W, Cin = x.shape
    Cout = params["conv1_w"].shape[-1]
    cin_p = _round_up(Cin, LANE)
    cout_p = _round_up(Cout, LANE)

    # Lane-dense channel padding (zeros).  Padded channels stay exactly zero through
    # conv (zero weights), BN (zero stats, zero gamma/beta) and ReLU/add.
    xpad = _pad_channels(x, cin_p)
    w1 = _pad_weight(params["conv1_w"], cin_p, cout_p)
    w2 = _pad_weight(params["conv2_w"], cout_p, cout_p)
    g1 = _pad_channels(params["bn1_gamma"], cout_p)
    b1 = _pad_channels(params["bn1_beta"], cout_p)
    g2 = _pad_channels(params["bn2_gamma"], cout_p)
    b2 = _pad_channels(params["bn2_beta"], cout_p)

    # Conv biases dropped everywhere in the Pallas path: a bias followed by
    # training-mode BatchNorm is exactly cancelled by the mean subtraction.
    if downsample:
        wsc = _pad_weight(params["sc_w"], cin_p, cout_p)
        gsc = _pad_channels(params["sc_gamma"], cout_p)
        bsc = _pad_channels(params["sc_beta"], cout_p)
        # conv1 + shortcut 1x1 conv, both with fused BN partial stats, one launch.
        c1, st1, Ho, Wo, sc_raw, st_sc = pallas_conv_stats(
            xpad, w1, stride=2, pad=1, w_sc=wsc)
    else:
        assert Cin == Cout, "identity shortcut requires in_channels == out_channels"
        c1, st1, Ho, Wo = pallas_conv_stats(xpad, w1, stride=1, pad=1)

    M = N * Ho * Wo
    # bn1 + relu, emitted in bf16 (it is consumed as a bf16 MXU operand by conv2).
    y1 = pallas_bn_act(c1, st1, g1, b1, m_total=M, out_dtype=jnp.bfloat16)

    # conv2 (+ BN partial stats)
    c2, st2, _, _ = pallas_conv_stats(y1.reshape(N, Ho, Wo, cout_p), w2,
                                      stride=1, pad=1)

    if downsample:
        # final fused kernel: bn2 + relu + shortcut-BN + add + relu
        out2d = pallas_bn_act(c2, st2, g2, b2, m_total=M,
                              sc=sc_raw, sc_stats=st_sc, sc_gamma=gsc, sc_beta=bsc)
    else:
        sc = xpad.reshape(N * H * W, cin_p)                          # identity shortcut
        out2d = pallas_bn_act(c2, st2, g2, b2, m_total=M, sc=sc)     # bn2+relu+add+relu

    out = out2d.reshape(N, Ho, Wo, cout_p)[..., :Cout]
    return jnp.transpose(out, (0, 3, 1, 2))                          # back to NCHW


# ------------------------------ pure-JAX reference -----------------------------

def _ref_forward(x_nchw, params, *, downsample, matmul_dtype=jnp.float32):
    """Faithful ResBlock reference (training-mode BN, conv biases included -- they
    cancel under BN).  matmul_dtype=bfloat16 reproduces the kernel's MXU precision
    (bf16 operands, f32 accumulation) for a tight comparison."""

    def conv(x, w_hwio, b, stride, pad):
        w_oihw = jnp.transpose(w_hwio, (3, 2, 0, 1))
        out = jax.lax.conv_general_dilated(
            x.astype(matmul_dtype), w_oihw.astype(matmul_dtype),
            window_strides=(stride, stride), padding=[(pad, pad), (pad, pad)],
            dimension_numbers=("NCHW", "OIHW", "NCHW"),
            preferred_element_type=jnp.float32)
        return out + b.reshape(1, -1, 1, 1)

    def bn(x, gamma, beta):
        mean = jnp.mean(x, axis=(0, 2, 3), keepdims=True)
        var = jnp.mean((x - mean) ** 2, axis=(0, 2, 3), keepdims=True)
        return (x - mean) * jax.lax.rsqrt(var + 1e-5) * gamma.reshape(1, -1, 1, 1) \
            + beta.reshape(1, -1, 1, 1)

    stride1 = 2 if downsample else 1
    if downsample:
        sc = bn(conv(x_nchw, params["sc_w"], params["sc_b"], 2, 0),
                params["sc_gamma"], params["sc_beta"])
    else:
        sc = x_nchw
    h = jax.nn.relu(bn(conv(x_nchw, params["conv1_w"], params["conv1_b"], stride1, 1),
                       params["bn1_gamma"], params["bn1_beta"]))
    h = jax.nn.relu(bn(conv(h.astype(matmul_dtype).astype(jnp.float32),
                            params["conv2_w"], params["conv2_b"], 1, 1),
                       params["bn2_gamma"], params["bn2_beta"]))
    return jax.nn.relu(h + sc)


# ------------------------------------ main -------------------------------------

def _run_case(key, in_channels, out_channels, downsample, H=16, W=16, N=2):
    k_x, k_p = jax.random.split(key)
    x = jax.random.normal(k_x, (N, in_channels, H, W), jnp.float32)   # NCHW
    params = init_params(k_p, in_channels, out_channels, downsample)

    fwd = jax.jit(lambda xx, pp: resblock_forward(xx, pp, downsample=downsample))
    out = jax.block_until_ready(fwd(x, params))
    Ho = H // 2 if downsample else H
    assert out.shape == (N, out_channels, Ho, Ho), out.shape

    # Tight check against a reference evaluated at the kernel's MXU precision
    # (bf16 operands, f32 accumulation).
    ref_bf16 = jax.block_until_ready(
        _ref_forward(x, params, downsample=downsample, matmul_dtype=jnp.bfloat16))
    np.testing.assert_allclose(np.asarray(out), np.asarray(ref_bf16),
                               rtol=1e-2, atol=1e-2)

    # Looser sanity check against the full-f32 reference; the only difference is
    # the bf16 rounding of the matmul operands.
    ref_f32 = jax.block_until_ready(
        _ref_forward(x, params, downsample=downsample, matmul_dtype=jnp.float32))
    np.testing.assert_allclose(np.asarray(out), np.asarray(ref_f32),
                               rtol=5e-2, atol=5e-2)


if __name__ == "__main__":
    key = jax.random.PRNGKey(0)
    k1, k2 = jax.random.split(key)

    _run_case(k1, in_channels=4, out_channels=8, downsample=True)    # downsample path
    _run_case(k2, in_channels=8, out_channels=8, downsample=False)   # identity path

    print("KERNEL_OK")
</pallas_src>

<mosaic_0001>
module attributes {stable_mosaic.version = 11 : i64} {
  func.func @_conv_stats_kernel(%arg0: i32, %arg1: i32, %arg2: memref<4x9x9x128xf32, #tpu.memory_space<vmem>>, %arg3: memref<9x128x128xbf16, #tpu.memory_space<vmem>>, %arg4: memref<128x128xbf16, #tpu.memory_space<vmem>>, %arg5: memref<64x128xf32, #tpu.memory_space<vmem>>, %arg6: memref<1x2x128xf32, #tpu.memory_space<vmem>>, %arg7: memref<64x128xf32, #tpu.memory_space<vmem>>, %arg8: memref<1x2x128xf32, #tpu.memory_space<vmem>>) attributes {dimension_semantics = [#tpu.dimension_semantics<parallel>, #tpu.dimension_semantics<parallel>], iteration_bounds = array<i64: 2, 1>, scalar_prefetch = 0 : i64, scratch_operands = 0 : i64, tpu.core_type = #tpu.core_type<tc>, window_params = [{transform_indices = @transform_0, window_bounds = array<i64: 4, 9, 9, 128>}, {pipeline_mode = #tpu.pipeline_mode<synchronous>, transform_indices = @transform_1, window_bounds = array<i64: 9, 128, 128>}, {pipeline_mode = #tpu.pipeline_mode<synchronous>, transform_indices = @transform_2, window_bounds = array<i64: 128, 128>}, {transform_indices = @transform_3, window_bounds = array<i64: 64, 128>}, {transform_indices = @transform_4, window_bounds = array<i64: 1, 2, 128>}, {transform_indices = @transform_5, window_bounds = array<i64: 64, 128>}, {transform_indices = @transform_6, window_bounds = array<i64: 1, 2, 128>}]} {
    %c8_i32 = arith.constant 8 : i32
    %0 = arith.muli %arg1, %c8_i32 : i32
    %cst = arith.constant 0.000000e+00 : f32
    %1 = vector.broadcast %cst : f32 to vector<64x128xf32>
    %c0_i32 = arith.constant 0 : i32
    %2 = arith.addi %0, %c0_i32 : i32
    %c0 = arith.constant 0 : index
    %3 = arith.index_cast %2 : i32 to index
    %c0_0 = arith.constant 0 : index
    %c0_1 = arith.constant 0 : index
    %4 = vector.load %arg2[%c0, %3, %c0_0, %c0_1] : memref<4x9x9x128xf32, #tpu.memory_space<vmem>>, vector<1x8x8x128xf32>
    %5 = vector.shape_cast %4 : vector<1x8x8x128xf32> to vector<8x8x128xf32>
    %6 = vector.shape_cast %5 : vector<8x8x128xf32> to vector<64x128xf32>
    %7 = arith.truncf %6 : vector<64x128xf32> to vector<64x128xbf16>
    %c0_2 = arith.constant 0 : index
    %c0_3 = arith.constant 0 : index
    %c0_4 = arith.constant 0 : index
    %8 = vector.load %arg3[%c0_2, %c0_3, %c0_4] : memref<9x128x128xbf16, #tpu.memory_space<vmem>>, vector<1x128x128xbf16>
    %9 = vector.shape_cast %8 : vector<1x128x128xbf16> to vector<128x128xbf16>
    %cst_5 = arith.constant dense<0.000000e+00> : vector<64x128xf32>
    %10 = tpu.matmul %7, %9, %cst_5 {dimension_numbers = #tpu.dot_dimension_numbers<[1], [0], [0], [1], [0, 0, 1, 1], [], []>} : vector<64x128xbf16>, vector<128x128xbf16>, vector<64x128xf32> -> vector<64x128xf32>
    %11 = arith.addf %1, %10 : vector<64x128xf32>
    %c0_i32_6 = arith.constant 0 : i32
    %12 = arith.addi %0, %c0_i32_6 : i32
    %c1 = arith.constant 1 : index
    %13 = arith.index_cast %12 : i32 to index
    %c0_7 = arith.constant 0 : index
    %c0_8 = arith.constant 0 : index
    %14 = vector.load %arg2[%c1, %13, %c0_7, %c0_8] : memref<4x9x9x128xf32, #tpu.memory_space<vmem>>, vector<1x8x8x128xf32>
    %15 = vector.shape_cast %14 : vector<1x8x8x128xf32> to vector<8x8x128xf32>
    %16 = vector.shape_cast %15 : vector<8x8x128xf32> to vector<64x128xf32>
    %17 = arith.truncf %16 : vector<64x128xf32> to vector<64x128xbf16>
    %c1_9 = arith.constant 1 : index
    %c0_10 = arith.constant 0 : index
    %c0_11 = arith.constant 0 : index
    %18 = vector.load %arg3[%c1_9, %c0_10, %c0_11] : memref<9x128x128xbf16, #tpu.memory_space<vmem>>, vector<1x128x128xbf16>
    %19 = vector.shape_cast %18 : vector<1x128x128xbf16> to vector<128x128xbf16>
    %cst_12 = arith.constant dense<0.000000e+00> : vector<64x128xf32>
    %20 = tpu.matmul %17, %19, %cst_12 {dimension_numbers = #tpu.dot_dimension_numbers<[1], [0], [0], [1], [0, 0, 1, 1], [], []>} : vector<64x128xbf16>, vector<128x128xbf16>, vector<64x128xf32> -> vector<64x128xf32>
    %21 = arith.addf %11, %20 : vector<64x128xf32>
    %c0_i32_13 = arith.constant 0 : i32
    %22 = arith.addi %0, %c0_i32_13 : i32
    %c0_14 = arith.constant 0 : index
    %23 = arith.index_cast %22 : i32 to index
    %c1_15 = arith.constant 1 : index
    %c0_16 = arith.constant 0 : index
    %24 = vector.load %arg2[%c0_14, %23, %c1_15, %c0_16] : memref<4x9x9x128xf32, #tpu.memory_space<vmem>>, vector<1x8x8x128xf32>
    %25 = vector.shape_cast %24 : vector<1x8x8x128xf32> to vector<8x8x128xf32>
    %26 = vector.shape_cast %25 : vector<8x8x128xf32> to vector<64x128xf32>
    %27 = arith.truncf %26 : vector<64x128xf32> to vector<64x128xbf16>
    %c2 = arith.constant 2 : index
    %c0_17 = arith.constant 0 : index
    %c0_18 = arith.constant 0 : index
    %28 = vector.load %arg3[%c2, %c0_17, %c0_18] : memref<9x128x128xbf16, #tpu.memory_space<vmem>>, vector<1x128x128xbf16>
    %29 = vector.shape_cast %28 : vector<1x128x128xbf16> to vector<128x128xbf16>
    %cst_19 = arith.constant dense<0.000000e+00> : vector<64x128xf32>
    %30 = tpu.matmul %27, %29, %cst_19 {dimension_numbers = #tpu.dot_dimension_numbers<[1], [0], [0], [1], [0, 0, 1, 1], [], []>} : vector<64x128xbf16>, vector<128x128xbf16>, vector<64x128xf32> -> vector<64x128xf32>
    %31 = arith.addf %21, %30 : vector<64x128xf32>
    %c0_i32_20 = arith.constant 0 : i32
    %32 = arith.addi %0, %c0_i32_20 : i32
    %c2_21 = arith.constant 2 : index
    %33 = arith.index_cast %32 : i32 to index
    %c0_22 = arith.constant 0 : index
    %c0_23 = arith.constant 0 : index
    %34 = vector.load %arg2[%c2_21, %33, %c0_22, %c0_23] : memref<4x9x9x128xf32, #tpu.memory_space<vmem>>, vector<1x8x8x128xf32>
    %35 = vector.shape_cast %34 : vector<1x8x8x128xf32> to vector<8x8x128xf32>
    %36 = vector.shape_cast %35 : vector<8x8x128xf32> to vector<64x128xf32>
    %37 = arith.truncf %36 : vector<64x128xf32> to vector<64x128xbf16>
    %c3 = arith.constant 3 : index
    %c0_24 = arith.constant 0 : index
    %c0_25 = arith.constant 0 : index
    %38 = vector.load %arg3[%c3, %c0_24, %c0_25] : memref<9x128x128xbf16, #tpu.memory_space<vmem>>, vector<1x128x128xbf16>
    %39 = vector.shape_cast %38 : vector<1x128x128xbf16> to vector<128x128xbf16>
    %cst_26 = arith.constant dense<0.000000e+00> : vector<64x128xf32>
    %40 = tpu.matmul %37, %39, %cst_26 {dimension_numbers = #tpu.dot_dimension_numbers<[1], [0], [0], [1], [0, 0, 1, 1], [], []>} : vector<64x128xbf16>, vector<128x128xbf16>, vector<64x128xf32> -> vector<64x128xf32>
    %41 = arith.addf %31, %40 : vector<64x128xf32>
    %c0_i32_27 = arith.constant 0 : i32
    %42 = arith.addi %0, %c0_i32_27 : i32
    %c3_28 = arith.constant 3 : index
    %43 = arith.index_cast %42 : i32 to index
    %c0_29 = arith.constant 0 : index
    %c0_30 = arith.constant 0 : index
    %44 = vector.load %arg2[%c3_28, %43, %c0_29, %c0_30] : memref<4x9x9x128xf32, #tpu.memory_space<vmem>>, vector<1x8x8x128xf32>
    %45 = vector.shape_cast %44 : vector<1x8x8x128xf32> to vector<8x8x128xf32>
    %46 = vector.shape_cast %45 : vector<8x8x128xf32> to vector<64x128xf32>
    %47 = arith.truncf %46 : vector<64x128xf32> to vector<64x128xbf16>
    %c4 = arith.constant 4 : index
    %c0_31 = arith.constant 0 : index
    %c0_32 = arith.constant 0 : index
    %48 = vector.load %arg3[%c4, %c0_31, %c0_32] : memref<9x128x128xbf16, #tpu.memory_space<vmem>>, vector<1x128x128xbf16>
    %49 = vector.shape_cast %48 : vector<1x128x128xbf16> to vector<128x128xbf16>
    %cst_33 = arith.constant dense<0.000000e+00> : vector<64x128xf32>
    %50 = tpu.matmul %47, %49, %cst_33 {dimension_numbers = #tpu.dot_dimension_numbers<[1], [0], [0], [1], [0, 0, 1, 1], [], []>} : vector<64x128xbf16>, vector<128x128xbf16>, vector<64x128xf32> -> vector<64x128xf32>
    %51 = arith.addf %41, %50 : vector<64x128xf32>
    %c0_i32_34 = arith.constant 0 : i32
    %52 = arith.addi %0, %c0_i32_34 : i32
    %c2_35 = arith.constant 2 : index
    %53 = arith.index_cast %52 : i32 to index
    %c1_36 = arith.constant 1 : index
    %c0_37 = arith.constant 0 : index
    %54 = vector.load %arg2[%c2_35, %53, %c1_36, %c0_37] : memref<4x9x9x128xf32, #tpu.memory_space<vmem>>, vector<1x8x8x128xf32>
    %55 = vector.shape_cast %54 : vector<1x8x8x128xf32> to vector<8x8x128xf32>
    %56 = vector.shape_cast %55 : vector<8x8x128xf32> to vector<64x128xf32>
    %57 = arith.truncf %56 : vector<64x128xf32> to vector<64x128xbf16>
    %c5 = arith.constant 5 : index
    %c0_38 = arith.constant 0 : index
    %c0_39 = arith.constant 0 : index
    %58 = vector.load %arg3[%c5, %c0_38, %c0_39] : memref<9x128x128xbf16, #tpu.memory_space<vmem>>, vector<1x128x128xbf16>
    %59 = vector.shape_cast %58 : vector<1x128x128xbf16> to vector<128x128xbf16>
    %cst_40 = arith.constant dense<0.000000e+00> : vector<64x128xf32>
    %60 = tpu.matmul %57, %59, %cst_40 {dimension_numbers = #tpu.dot_dimension_numbers<[1], [0], [0], [1], [0, 0, 1, 1], [], []>} : vector<64x128xbf16>, vector<128x128xbf16>, vector<64x128xf32> -> vector<64x128xf32>
    %61 = arith.addf %51, %60 : vector<64x128xf32>
    %c1_i32 = arith.constant 1 : i32
    %62 = arith.addi %0, %c1_i32 : i32
    %c0_41 = arith.constant 0 : index
    %63 = arith.index_cast %62 : i32 to index
    %c0_42 = arith.constant 0 : index
    %c0_43 = arith.constant 0 : index
    %64 = vector.load %arg2[%c0_41, %63, %c0_42, %c0_43] : memref<4x9x9x128xf32, #tpu.memory_space<vmem>>, vector<1x8x8x128xf32>
    %65 = vector.shape_cast %64 : vector<1x8x8x128xf32> to vector<8x8x128xf32>
    %66 = vector.shape_cast %65 : vector<8x8x128xf32> to vector<64x128xf32>
    %67 = arith.truncf %66 : vector<64x128xf32> to vector<64x128xbf16>
    %c6 = arith.constant 6 : index
    %c0_44 = arith.constant 0 : index
    %c0_45 = arith.constant 0 : index
    %68 = vector.load %arg3[%c6, %c0_44, %c0_45] : memref<9x128x128xbf16, #tpu.memory_space<vmem>>, vector<1x128x128xbf16>
    %69 = vector.shape_cast %68 : vector<1x128x128xbf16> to vector<128x128xbf16>
    %cst_46 = arith.constant dense<0.000000e+00> : vector<64x128xf32>
    %70 = tpu.matmul %67, %69, %cst_46 {dimension_numbers = #tpu.dot_dimension_numbers<[1], [0], [0], [1], [0, 0, 1, 1], [], []>} : vector<64x128xbf16>, vector<128x128xbf16>, vector<64x128xf32> -> vector<64x128xf32>
    %71 = arith.addf %61, %70 : vector<64x128xf32>
    %c1_i32_47 = arith.constant 1 : i32
    %72 = arith.addi %0, %c1_i32_47 : i32
    %c1_48 = arith.constant 1 : index
    %73 = arith.index_cast %72 : i32 to index
    %c0_49 = arith.constant 0 : index
    %c0_50 = arith.constant 0 : index
    %74 = vector.load %arg2[%c1_48, %73, %c0_49, %c0_50] : memref<4x9x9x128xf32, #tpu.memory_space<vmem>>, vector<1x8x8x128xf32>
    %75 = vector.shape_cast %74 : vector<1x8x8x128xf32> to vector<8x8x128xf32>
    %76 = vector.shape_cast %75 : vector<8x8x128xf32> to vector<64x128xf32>
    %77 = arith.truncf %76 : vector<64x128xf32> to vector<64x128xbf16>
    %c7 = arith.constant 7 : index
    %c0_51 = arith.constant 0 : index
    %c0_52 = arith.constant 0 : index
    %78 = vector.load %arg3[%c7, %c0_51, %c0_52] : memref<9x128x128xbf16, #tpu.memory_space<vmem>>, vector<1x128x128xbf16>
    %79 = vector.shape_cast %78 : vector<1x128x128xbf16> to vector<128x128xbf16>
    %cst_53 = arith.constant dense<0.000000e+00> : vector<64x128xf32>
    %80 = tpu.matmul %77, %79, %cst_53 {dimension_numbers = #tpu.dot_dimension_numbers<[1], [0], [0], [1], [0, 0, 1, 1], [], []>} : vector<64x128xbf16>, vector<128x128xbf16>, vector<64x128xf32> -> vector<64x128xf32>
    %81 = arith.addf %71, %80 : vector<64x128xf32>
    %c1_i32_54 = arith.constant 1 : i32
    %82 = arith.addi %0, %c1_i32_54 : i32
    %c0_55 = arith.constant 0 : index
    %83 = arith.index_cast %82 : i32 to index
    %c1_56 = arith.constant 1 : index
    %c0_57 = arith.constant 0 : index
    %84 = vector.load %arg2[%c0_55, %83, %c1_56, %c0_57] : memref<4x9x9x128xf32, #tpu.memory_space<vmem>>, vector<1x8x8x128xf32>
    %85 = vector.shape_cast %84 : vector<1x8x8x128xf32> to vector<8x8x128xf32>
    %86 = vector.shape_cast %85 : vector<8x8x128xf32> to vector<64x128xf32>
    %87 = arith.truncf %86 : vector<64x128xf32> to vector<64x128xbf16>
    %c8 = arith.constant 8 : index
    %c0_58 = arith.constant 0 : index
    %c0_59 = arith.constant 0 : index
    %88 = vector.load %arg3[%c8, %c0_58, %c0_59] : memref<9x128x128xbf16, #tpu.memory_space<vmem>>, vector<1x128x128xbf16>
    %89 = vector.shape_cast %88 : vector<1x128x128xbf16> to vector<128x128xbf16>
    %cst_60 = arith.constant dense<0.000000e+00> : vector<64x128xf32>
    %90 = tpu.matmul %87, %89, %cst_60 {dimension_numbers = #tpu.dot_dimension_numbers<[1], [0], [0], [1], [0, 0, 1, 1], [], []>} : vector<64x128xbf16>, vector<128x128xbf16>, vector<64x128xf32> -> vector<64x128xf32>
    %91 = arith.addf %81, %90 : vector<64x128xf32>
    %c0_61 = arith.constant 0 : index
    %c0_62 = arith.constant 0 : index
    %92 = vector.load %arg5[%c0_61, %c0_62] : memref<64x128xf32, #tpu.memory_space<vmem>>, vector<64x128xf32>
    tpu.vector_store %arg5[%c0_61, %c0_62], %91 {strides = array<i32>} : memref<64x128xf32, #tpu.memory_space<vmem>>, vector<64x128xf32>,
    %cst_63 = arith.constant dense<0.000000e+00> : vector<128xf32>
    %93 = vector.multi_reduction <add>, %91, %cst_63 [0] : vector<64x128xf32> to vector<128xf32>
    %94 = vector.shape_cast %93 : vector<128xf32> to vector<1x128xf32>
    %95 = arith.mulf %91, %91 : vector<64x128xf32>
    %cst_64 = arith.constant dense<0.000000e+00> : vector<128xf32>
    %96 = vector.multi_reduction <add>, %95, %cst_64 [0] : vector<64x128xf32> to vector<128xf32>
    %97 = vector.shape_cast %96 : vector<128xf32> to vector<1x128xf32>
    %98 = tpu.concatenate %94, %97 in 0 : vector<1x128xf32>, vector<1x128xf32> -> vector<2x128xf32>
    %99 = vector.shape_cast %98 : vector<2x128xf32> to vector<1x2x128xf32>
    %c0_65 = arith.constant 0 : index
    %c0_66 = arith.constant 0 : index
    %c0_67 = arith.constant 0 : index
    %100 = vector.load %arg6[%c0_65, %c0_66, %c0_67] : memref<1x2x128xf32, #tpu.memory_space<vmem>>, vector<1x2x128xf32>
    tpu.vector_store %arg6[%c0_65, %c0_66, %c0_67], %99 {strides = array<i32>} : memref<1x2x128xf32, #tpu.memory_space<vmem>>, vector<1x2x128xf32>,
    %c3_68 = arith.constant 3 : index
    %101 = arith.index_cast %0 : i32 to index
    %c0_69 = arith.constant 0 : index
    %c0_70 = arith.constant 0 : index
    %102 = vector.load %arg2[%c3_68, %101, %c0_69, %c0_70] : memref<4x9x9x128xf32, #tpu.memory_space<vmem>>, vector<1x8x8x128xf32>
    %103 = vector.shape_cast %102 : vector<1x8x8x128xf32> to vector<8x8x128xf32>
    %104 = vector.shape_cast %103 : vector<8x8x128xf32> to vector<64x128xf32>
    %105 = arith.truncf %104 : vector<64x128xf32> to vector<64x128xbf16>
    %c0_71 = arith.constant 0 : index
    %c0_72 = arith.constant 0 : index
    %106 = vector.load %arg4[%c0_71, %c0_72] : memref<128x128xbf16, #tpu.memory_space<vmem>>, vector<128x128xbf16>
    %cst_73 = arith.constant dense<0.000000e+00> : vector<64x128xf32>
    %107 = tpu.matmul %105, %106, %cst_73 {dimension_numbers = #tpu.dot_dimension_numbers<[1], [0], [0], [1], [0, 0, 1, 1], [], []>} : vector<64x128xbf16>, vector<128x128xbf16>, vector<64x128xf32> -> vector<64x128xf32>
    %c0_74 = arith.constant 0 : index
    %c0_75 = arith.constant 0 : index
    %108 = vector.load %arg7[%c0_74, %c0_75] : memref<64x128xf32, #tpu.memory_space<vmem>>, vector<64x128xf32>
    tpu.vector_store %arg7[%c0_74, %c0_75], %107 {strides = array<i32>} : memref<64x128xf32, #tpu.memory_space<vmem>>, vector<64x128xf32>,
    %cst_76 = arith.constant dense<0.000000e+00> : vector<128xf32>
    %109 = vector.multi_reduction <add>, %107, %cst_76 [0] : vector<64x128xf32> to vector<128xf32>
    %110 = vector.shape_cast %109 : vector<128xf32> to vector<1x128xf32>
    %111 = arith.mulf %107, %107 : vector<64x128xf32>
    %cst_77 = arith.constant dense<0.000000e+00> : vector<128xf32>
    %112 = vector.multi_reduction <add>, %111, %cst_77 [0] : vector<64x128xf32> to vector<128xf32>
    %113 = vector.shape_cast %112 : vector<128xf32> to vector<1x128xf32>
    %114 = tpu.concatenate %110, %113 in 0 : vector<1x128xf32>, vector<1x128xf32> -> vector<2x128xf32>
    %115 = vector.shape_cast %114 : vector<2x128xf32> to vector<1x2x128xf32>
    %c0_78 = arith.constant 0 : index
    %c0_79 = arith.constant 0 : index
    %c0_80 = arith.constant 0 : index
    %116 = vector.load %arg8[%c0_78, %c0_79, %c0_80] : memref<1x2x128xf32, #tpu.memory_space<vmem>>, vector<1x2x128xf32>
    tpu.vector_store %arg8[%c0_78, %c0_79, %c0_80], %115 {strides = array<i32>} : memref<1x2x128xf32, #tpu.memory_space<vmem>>, vector<1x2x128xf32>,
    return
  }
  func.func @transform_0(%arg0: i32, %arg1: i32) -> (i32, i32, i32, i32) {
    %c0_i32 = arith.constant 0 : i32
    %c0_i32_0 = arith.constant 0 : i32
    %c0_i32_1 = arith.constant 0 : i32
    %c0_i32_2 = arith.constant 0 : i32
    return %arg0, %c0_i32, %c0_i32_0, %c0_i32_1 : i32, i32, i32, i32
  }
  func.func @transform_1(%arg0: i32, %arg1: i32) -> (i32, i32, i32) {
    %c0_i32 = arith.constant 0 : i32
    %c0_i32_0 = arith.constant 0 : i32
    %c0_i32_1 = arith.constant 0 : i32
    %c0_i32_2 = arith.constant 0 : i32
    return %c0_i32, %c0_i32_0, %c0_i32_1 : i32, i32, i32
  }
  func.func @transform_2(%arg0: i32, %arg1: i32) -> (i32, i32) {
    %c0_i32 = arith.constant 0 : i32
    %c0_i32_0 = arith.constant 0 : i32
    %c0_i32_1 = arith.constant 0 : i32
    return %c0_i32, %c0_i32_0 : i32, i32
  }
  func.func @transform_3(%arg0: i32, %arg1: i32) -> (i32, i32) {
    %c1_i32 = arith.constant 1 : i32
    %0 = arith.muli %arg0, %c1_i32 : i32
    %1 = arith.addi %0, %arg1 : i32
    %c0_i32 = arith.constant 0 : i32
    %c0_i32_0 = arith.constant 0 : i32
    return %1, %c0_i32 : i32, i32
  }
  func.func @transform_4(%arg0: i32, %arg1: i32) -> (i32, i32, i32) {
    %c1_i32 = arith.constant 1 : i32
    %0 = arith.muli %arg0, %c1_i32 : i32
    %1 = arith.addi %0, %arg1 : i32
    %c0_i32 = arith.constant 0 : i32
    %c0_i32_0 = arith.constant 0 : i32
    %c0_i32_1 = arith.constant 0 : i32
    return %1, %c0_i32, %c0_i32_0 : i32, i32, i32
  }
  func.func @transform_5(%arg0: i32, %arg1: i32) -> (i32, i32) {
    %c1_i32 = arith.constant 1 : i32
    %0 = arith.muli %arg0, %c1_i32 : i32
    %1 = arith.addi %0, %arg1 : i32
    %c0_i32 = arith.constant 0 : i32
    %c0_i32_0 = arith.constant 0 : i32
    return %1, %c0_i32 : i32, i32
  }
  func.func @transform_6(%arg0: i32, %arg1: i32) -> (i32, i32, i32) {
    %c1_i32 = arith.constant 1 : i32
    %0 = arith.muli %arg0, %c1_i32 : i32
    %1 = arith.addi %0, %arg1 : i32
    %c0_i32 = arith.constant 0 : i32
    %c0_i32_0 = arith.constant 0 : i32
    %c0_i32_1 = arith.constant 0 : i32
    return %1, %c0_i32, %c0_i32_0 : i32, i32, i32
  }
}

module attributes {stable_mosaic.version = 11 : i64} {
  func.func @_bn_act_kernel(%arg0: i32, %arg1: memref<128x128xf32, #tpu.memory_space<vmem>>, %arg2: memref<2x2x128xf32, #tpu.memory_space<vmem>>, %arg3: memref<1x128xf32, #tpu.memory_space<vmem>>, %arg4: memref<1x128xf32, #tpu.memory_space<vmem>>, %arg5: memref<128x128xbf16, #tpu.memory_space<vmem>>) attributes {dimension_semantics = [#tpu.dimension_semantics<parallel>], iteration_bounds = array<i64: 1>, scalar_prefetch = 0 : i64, scratch_operands = 0 : i64, tpu.core_type = #tpu.core_type<tc>, window_params = [{transform_indices = @transform_0, window_bounds = array<i64: 128, 128>}, {pipeline_mode = #tpu.pipeline_mode<synchronous>, transform_indices = @transform_1, window_bounds = array<i64: 2, 2, 128>}, {pipeline_mode = #tpu.pipeline_mode<synchronous>, transform_indices = @transform_2, window_bounds = array<i64: 1, 128>}, {pipeline_mode = #tpu.pipeline_mode<synchronous>, transform_indices = @transform_3, window_bounds = array<i64: 1, 128>}, {transform_indices = @transform_4, window_bounds = array<i64: 128, 128>}]} {
    %c0 = arith.constant 0 : index
    %c0_0 = arith.constant 0 : index
    %0 = vector.load %arg1[%c0, %c0_0] : memref<128x128xf32, #tpu.memory_space<vmem>>, vector<128x128xf32>
    %c0_1 = arith.constant 0 : index
    %c0_2 = arith.constant 0 : index
    %c0_3 = arith.constant 0 : index
    %1 = vector.load %arg2[%c0_1, %c0_2, %c0_3] : memref<2x2x128xf32, #tpu.memory_space<vmem>>, vector<2x2x128xf32>
    %cst = arith.constant dense<0.000000e+00> : vector<2x128xf32>
    %2 = vector.multi_reduction <add>, %1, %cst [0] : vector<2x2x128xf32> to vector<2x128xf32>
    %3 = vector.extract_strided_slice %2 {offsets = [0, 0], sizes = [1, 128], strides = [1, 1]} : vector<2x128xf32> to vector<1x128xf32>
    %cst_4 = arith.constant 7.812500e-03 : f32
    %4 = vector.broadcast %cst_4 : f32 to vector<1x128xf32>
    %5 = arith.mulf %3, %4 : vector<1x128xf32>
    %6 = vector.extract_strided_slice %2 {offsets = [1, 0], sizes = [1, 128], strides = [1, 1]} : vector<2x128xf32> to vector<1x128xf32>
    %cst_5 = arith.constant 7.812500e-03 : f32
    %7 = vector.broadcast %cst_5 : f32 to vector<1x128xf32>
    %8 = arith.mulf %6, %7 : vector<1x128xf32>
    %9 = arith.mulf %5, %5 : vector<1x128xf32>
    %10 = arith.subf %8, %9 : vector<1x128xf32>
    %11 = vector.broadcast %5 : vector<1x128xf32> to vector<128x128xf32>
    %12 = arith.subf %0, %11 : vector<128x128xf32>
    %cst_6 = arith.constant 9.99999974E-6 : f32
    %13 = vector.broadcast %cst_6 : f32 to vector<1x128xf32>
    %14 = arith.addf %10, %13 : vector<1x128xf32>
    %15 = math.rsqrt %14 : vector<1x128xf32>
    %16 = vector.broadcast %15 : vector<1x128xf32> to vector<128x128xf32>
    %17 = arith.mulf %12, %16 : vector<128x128xf32>
    %c0_7 = arith.constant 0 : index
    %c0_8 = arith.constant 0 : index
    %18 = vector.load %arg3[%c0_7, %c0_8] : memref<1x128xf32, #tpu.memory_space<vmem>>, vector<1x128xf32>
    %19 = vector.broadcast %18 : vector<1x128xf32> to vector<128x128xf32>
    %20 = arith.mulf %17, %19 : vector<128x128xf32>
    %c0_9 = arith.constant 0 : index
    %c0_10 = arith.constant 0 : index
    %21 = vector.load %arg4[%c0_9, %c0_10] : memref<1x128xf32, #tpu.memory_space<vmem>>, vector<1x128xf32>
    %22 = vector.broadcast %21 : vector<1x128xf32> to vector<128x128xf32>
    %23 = arith.addf %20, %22 : vector<128x128xf32>
    %cst_11 = arith.constant 0.000000e+00 : f32
    %24 = vector.broadcast %cst_11 : f32 to vector<128x128xf32>
    %25 = arith.maximumf %23, %24 : vector<128x128xf32>
    %26 = arith.truncf %25 : vector<128x128xf32> to vector<128x128xbf16>
    %c0_12 = arith.constant 0 : index
    %c0_13 = arith.constant 0 : index
    %27 = vector.load %arg5[%c0_12, %c0_13] : memref<128x128xbf16, #tpu.memory_space<vmem>>, vector<128x128xbf16>
    tpu.vector_store %arg5[%c0_12, %c0_13], %26 {strides = array<i32>} : memref<128x128xbf16, #tpu.memory_space<vmem>>, vector<128x128xbf16>,
    return
  }
  func.func @transform_0(%arg0: i32) -> (i32, i32) {
    %c0_i32 = arith.constant 0 : i32
    %c0_i32_0 = arith.constant 0 : i32
    return %arg0, %c0_i32 : i32, i32
  }
  func.func @transform_1(%arg0: i32) -> (i32, i32, i32) {
    %c0_i32 = arith.constant 0 : i32
    %c0_i32_0 = arith.constant 0 : i32
    %c0_i32_1 = arith.constant 0 : i32
    %c0_i32_2 = arith.constant 0 : i32
    return %c0_i32, %c0_i32_0, %c0_i32_1 : i32, i32, i32
  }
  func.func @transform_2(%arg0: i32) -> (i32, i32) {
    %c0_i32 = arith.constant 0 : i32
    %c0_i32_0 = arith.constant 0 : i32
    %c0_i32_1 = arith.constant 0 : i32
    return %c0_i32, %c0_i32_0 : i32, i32
  }
  func.func @transform_3(%arg0: i32) -> (i32, i32) {
    %c0_i32 = arith.constant 0 : i32
    %c0_i32_0 = arith.constant 0 : i32
    %c0_i32_1 = arith.constant 0 : i32
    return %c0_i32, %c0_i32_0 : i32, i32
  }
  func.func @transform_4(%arg0: i32) -> (i32, i32) {
    %c0_i32 = arith.constant 0 : i32
    %c0_i32_0 = arith.constant 0 : i32
    return %arg0, %c0_i32 : i32, i32
  }
}

module attributes {stable_mosaic.version = 11 : i64} {
  func.func @_conv_stats_kernel(%arg0: i32, %arg1: i32, %arg2: memref<1x10x10x128xbf16, #tpu.memory_space<vmem>>, %arg3: memref<9x128x128xbf16, #tpu.memory_space<vmem>>, %arg4: memref<64x128xf32, #tpu.memory_space<vmem>>, %arg5: memref<1x2x128xf32, #tpu.memory_space<vmem>>) attributes {dimension_semantics = [#tpu.dimension_semantics<parallel>, #tpu.dimension_semantics<parallel>], iteration_bounds = array<i64: 2, 1>, scalar_prefetch = 0 : i64, scratch_operands = 0 : i64, tpu.core_type = #tpu.core_type<tc>, window_params = [{transform_indices = @transform_0, window_bounds = array<i64: 1, 10, 10, 128>}, {pipeline_mode = #tpu.pipeline_mode<synchronous>, transform_indices = @transform_1, window_bounds = array<i64: 9, 128, 128>}, {transform_indices = @transform_2, window_bounds = array<i64: 64, 128>}, {transform_indices = @transform_3, window_bounds = array<i64: 1, 2, 128>}]} {
    %c8_i32 = arith.constant 8 : i32
    %0 = arith.muli %arg1, %c8_i32 : i32
    %cst = arith.constant 0.000000e+00 : f32
    %1 = vector.broadcast %cst : f32 to vector<64x128xf32>
    %c0_i32 = arith.constant 0 : i32
    %2 = arith.addi %0, %c0_i32 : i32
    %c0 = arith.constant 0 : index
    %3 = arith.index_cast %2 : i32 to index
    %c0_0 = arith.constant 0 : index
    %c0_1 = arith.constant 0 : index
    %4 = vector.load %arg2[%c0, %3, %c0_0, %c0_1] : memref<1x10x10x128xbf16, #tpu.memory_space<vmem>>, vector<1x8x8x128xbf16>
    %5 = vector.shape_cast %4 : vector<1x8x8x128xbf16> to vector<8x8x128xbf16>
    %6 = vector.shape_cast %5 : vector<8x8x128xbf16> to vector<64x128xbf16>
    %c0_2 = arith.constant 0 : index
    %c0_3 = arith.constant 0 : index
    %c0_4 = arith.constant 0 : index
    %7 = vector.load %arg3[%c0_2, %c0_3, %c0_4] : memref<9x128x128xbf16, #tpu.memory_space<vmem>>, vector<1x128x128xbf16>
    %8 = vector.shape_cast %7 : vector<1x128x128xbf16> to vector<128x128xbf16>
    %cst_5 = arith.constant dense<0.000000e+00> : vector<64x128xf32>
    %9 = tpu.matmul %6, %8, %cst_5 {dimension_numbers = #tpu.dot_dimension_numbers<[1], [0], [0], [1], [0, 0, 1, 1], [], []>} : vector<64x128xbf16>, vector<128x128xbf16>, vector<64x128xf32> -> vector<64x128xf32>
    %10 = arith.addf %1, %9 : vector<64x128xf32>
    %c0_i32_6 = arith.constant 0 : i32
    %11 = arith.addi %0, %c0_i32_6 : i32
    %c0_7 = arith.constant 0 : index
    %12 = arith.index_cast %11 : i32 to index
    %c1 = arith.constant 1 : index
    %c0_8 = arith.constant 0 : index
    %13 = vector.load %arg2[%c0_7, %12, %c1, %c0_8] : memref<1x10x10x128xbf16, #tpu.memory_space<vmem>>, vector<1x8x8x128xbf16>
    %14 = vector.shape_cast %13 : vector<1x8x8x128xbf16> to vector<8x8x128xbf16>
    %15 = vector.shape_cast %14 : vector<8x8x128xbf16> to vector<64x128xbf16>
    %c1_9 = arith.constant 1 : index
    %c0_10 = arith.constant 0 : index
    %c0_11 = arith.constant 0 : index
    %16 = vector.load %arg3[%c1_9, %c0_10, %c0_11] : memref<9x128x128xbf16, #tpu.memory_space<vmem>>, vector<1x128x128xbf16>
    %17 = vector.shape_cast %16 : vector<1x128x128xbf16> to vector<128x128xbf16>
    %cst_12 = arith.constant dense<0.000000e+00> : vector<64x128xf32>
    %18 = tpu.matmul %15, %17, %cst_12 {dimension_numbers = #tpu.dot_dimension_numbers<[1], [0], [0], [1], [0, 0, 1, 1], [], []>} : vector<64x128xbf16>, vector<128x128xbf16>, vector<64x128xf32> -> vector<64x128xf32>
    %19 = arith.addf %10, %18 : vector<64x128xf32>
    %c0_i32_13 = arith.constant 0 : i32
    %20 = arith.addi %0, %c0_i32_13 : i32
    %c0_14 = arith.constant 0 : index
    %21 = arith.index_cast %20 : i32 to index
    %c2 = arith.constant 2 : index
    %c0_15 = arith.constant 0 : index
    %22 = vector.load %arg2[%c0_14, %21, %c2, %c0_15] : memref<1x10x10x128xbf16, #tpu.memory_space<vmem>>, vector<1x8x8x128xbf16>
    %23 = vector.shape_cast %22 : vector<1x8x8x128xbf16> to vector<8x8x128xbf16>
    %24 = vector.shape_cast %23 : vector<8x8x128xbf16> to vector<64x128xbf16>
    %c2_16 = arith.constant 2 : index
    %c0_17 = arith.constant 0 : index
    %c0_18 = arith.constant 0 : index
    %25 = vector.load %arg3[%c2_16, %c0_17, %c0_18] : memref<9x128x128xbf16, #tpu.memory_space<vmem>>, vector<1x128x128xbf16>
    %26 = vector.shape_cast %25 : vector<1x128x128xbf16> to vector<128x128xbf16>
    %cst_19 = arith.constant dense<0.000000e+00> : vector<64x128xf32>
    %27 = tpu.matmul %24, %26, %cst_19 {dimension_numbers = #tpu.dot_dimension_numbers<[1], [0], [0], [1], [0, 0, 1, 1], [], []>} : vector<64x128xbf16>, vector<128x128xbf16>, vector<64x128xf32> -> vector<64x128xf32>
    %28 = arith.addf %19, %27 : vector<64x128xf32>
    %c1_i32 = arith.constant 1 : i32
    %29 = arith.addi %0, %c1_i32 : i32
    %c0_20 = arith.constant 0 : index
    %30 = arith.index_cast %29 : i32 to index
    %c0_21 = arith.constant 0 : index
    %c0_22 = arith.constant 0 : index
    %31 = vector.load %arg2[%c0_20, %30, %c0_21, %c0_22] : memref<1x10x10x128xbf16, #tpu.memory_space<vmem>>, vector<1x8x8x128xbf16>
    %32 = vector.shape_cast %31 : vector<1x8x8x128xbf16> to vector<8x8x128xbf16>
    %33 = vector.shape_cast %32 : vector<8x8x128xbf16> to vector<64x128xbf16>
    %c3 = arith.constant 3 : index
    %c0_23 = arith.constant 0 : index
    %c0_24 = arith.constant 0 : index
    %34 = vector.load %arg3[%c3, %c0_23, %c0_24] : memref<9x128x128xbf16, #tpu.memory_space<vmem>>, vector<1x128x128xbf16>
    %35 = vector.shape_cast %34 : vector<1x128x128xbf16> to vector<128x128xbf16>
    %cst_25 = arith.constant dense<0.000000e+00> : vector<64x128xf32>
    %36 = tpu.matmul %33, %35, %cst_25 {dimension_numbers = #tpu.dot_dimension_numbers<[1], [0], [0], [1], [0, 0, 1, 1], [], []>} : vector<64x128xbf16>, vector<128x128xbf16>, vector<64x128xf32> -> vector<64x128xf32>
    %37 = arith.addf %28, %36 : vector<64x128xf32>
    %c1_i32_26 = arith.constant 1 : i32
    %38 = arith.addi %0, %c1_i32_26 : i32
    %c0_27 = arith.constant 0 : index
    %39 = arith.index_cast %38 : i32 to index
    %c1_28 = arith.constant 1 : index
    %c0_29 = arith.constant 0 : index
    %40 = vector.load %arg2[%c0_27, %39, %c1_28, %c0_29] : memref<1x10x10x128xbf16, #tpu.memory_space<vmem>>, vector<1x8x8x128xbf16>
    %41 = vector.shape_cast %40 : vector<1x8x8x128xbf16> to vector<8x8x128xbf16>
    %42 = vector.shape_cast %41 : vector<8x8x128xbf16> to vector<64x128xbf16>
    %c4 = arith.constant 4 : index
    %c0_30 = arith.constant 0 : index
    %c0_31 = arith.constant 0 : index
    %43 = vector.load %arg3[%c4, %c0_30, %c0_31] : memref<9x128x128xbf16, #tpu.memory_space<vmem>>, vector<1x128x128xbf16>
    %44 = vector.shape_cast %43 : vector<1x128x128xbf16> to vector<128x128xbf16>
    %cst_32 = arith.constant dense<0.000000e+00> : vector<64x128xf32>
    %45 = tpu.matmul %42, %44, %cst_32 {dimension_numbers = #tpu.dot_dimension_numbers<[1], [0], [0], [1], [0, 0, 1, 1], [], []>} : vector<64x128xbf16>, vector<128x128xbf16>, vector<64x128xf32> -> vector<64x128xf32>
    %46 = arith.addf %37, %45 : vector<64x128xf32>
    %c1_i32_33 = arith.constant 1 : i32
    %47 = arith.addi %0, %c1_i32_33 : i32
    %c0_34 = arith.constant 0 : index
    %48 = arith.index_cast %47 : i32 to index
    %c2_35 = arith.constant 2 : index
    %c0_36 = arith.constant 0 : index
    %49 = vector.load %arg2[%c0_34, %48, %c2_35, %c0_36] : memref<1x10x10x128xbf16, #tpu.memory_space<vmem>>, vector<1x8x8x128xbf16>
    %50 = vector.shape_cast %49 : vector<1x8x8x128xbf16> to vector<8x8x128xbf16>
    %51 = vector.shape_cast %50 : vector<8x8x128xbf16> to vector<64x128xbf16>
    %c5 = arith.constant 5 : index
    %c0_37 = arith.constant 0 : index
    %c0_38 = arith.constant 0 : index
    %52 = vector.load %arg3[%c5, %c0_37, %c0_38] : memref<9x128x128xbf16, #tpu.memory_space<vmem>>, vector<1x128x128xbf16>
    %53 = vector.shape_cast %52 : vector<1x128x128xbf16> to vector<128x128xbf16>
    %cst_39 = arith.constant dense<0.000000e+00> : vector<64x128xf32>
    %54 = tpu.matmul %51, %53, %cst_39 {dimension_numbers = #tpu.dot_dimension_numbers<[1], [0], [0], [1], [0, 0, 1, 1], [], []>} : vector<64x128xbf16>, vector<128x128xbf16>, vector<64x128xf32> -> vector<64x128xf32>
    %55 = arith.addf %46, %54 : vector<64x128xf32>
    %c2_i32 = arith.constant 2 : i32
    %56 = arith.addi %0, %c2_i32 : i32
    %c0_40 = arith.constant 0 : index
    %57 = arith.index_cast %56 : i32 to index
    %c0_41 = arith.constant 0 : index
    %c0_42 = arith.constant 0 : index
    %58 = vector.load %arg2[%c0_40, %57, %c0_41, %c0_42] : memref<1x10x10x128xbf16, #tpu.memory_space<vmem>>, vector<1x8x8x128xbf16>
    %59 = vector.shape_cast %58 : vector<1x8x8x128xbf16> to vector<8x8x128xbf16>
    %60 = vector.shape_cast %59 : vector<8x8x128xbf16> to vector<64x128xbf16>
    %c6 = arith.constant 6 : index
    %c0_43 = arith.constant 0 : index
    %c0_44 = arith.constant 0 : index
    %61 = vector.load %arg3[%c6, %c0_43, %c0_44] : memref<9x128x128xbf16, #tpu.memory_space<vmem>>, vector<1x128x128xbf16>
    %62 = vector.shape_cast %61 : vector<1x128x128xbf16> to vector<128x128xbf16>
    %cst_45 = arith.constant dense<0.000000e+00> : vector<64x128xf32>
    %63 = tpu.matmul %60, %62, %cst_45 {dimension_numbers = #tpu.dot_dimension_numbers<[1], [0], [0], [1], [0, 0, 1, 1], [], []>} : vector<64x128xbf16>, vector<128x128xbf16>, vector<64x128xf32> -> vector<64x128xf32>
    %64 = arith.addf %55, %63 : vector<64x128xf32>
    %c2_i32_46 = arith.constant 2 : i32
    %65 = arith.addi %0, %c2_i32_46 : i32
    %c0_47 = arith.constant 0 : index
    %66 = arith.index_cast %65 : i32 to index
    %c1_48 = arith.constant 1 : index
    %c0_49 = arith.constant 0 : index
    %67 = vector.load %arg2[%c0_47, %66, %c1_48, %c0_49] : memref<1x10x10x128xbf16, #tpu.memory_space<vmem>>, vector<1x8x8x128xbf16>
    %68 = vector.shape_cast %67 : vector<1x8x8x128xbf16> to vector<8x8x128xbf16>
    %69 = vector.shape_cast %68 : vector<8x8x128xbf16> to vector<64x128xbf16>
    %c7 = arith.constant 7 : index
    %c0_50 = arith.constant 0 : index
    %c0_51 = arith.constant 0 : index
    %70 = vector.load %arg3[%c7, %c0_50, %c0_51] : memref<9x128x128xbf16, #tpu.memory_space<vmem>>, vector<1x128x128xbf16>
    %71 = vector.shape_cast %70 : vector<1x128x128xbf16> to vector<128x128xbf16>
    %cst_52 = arith.constant dense<0.000000e+00> : vector<64x128xf32>
    %72 = tpu.matmul %69, %71, %cst_52 {dimension_numbers = #tpu.dot_dimension_numbers<[1], [0], [0], [1], [0, 0, 1, 1], [], []>} : vector<64x128xbf16>, vector<128x128xbf16>, vector<64x128xf32> -> vector<64x128xf32>
    %73 = arith.addf %64, %72 : vector<64x128xf32>
    %c2_i32_53 = arith.constant 2 : i32
    %74 = arith.addi %0, %c2_i32_53 : i32
    %c0_54 = arith.constant 0 : index
    %75 = arith.index_cast %74 : i32 to index
    %c2_55 = arith.constant 2 : index
    %c0_56 = arith.constant 0 : index
    %76 = vector.load %arg2[%c0_54, %75, %c2_55, %c0_56] : memref<1x10x10x128xbf16, #tpu.memory_space<vmem>>, vector<1x8x8x128xbf16>
    %77 = vector.shape_cast %76 : vector<1x8x8x128xbf16> to vector<8x8x128xbf16>
    %78 = vector.shape_cast %77 : vector<8x8x128xbf16> to vector<64x128xbf16>
    %c8 = arith.constant 8 : index
    %c0_57 = arith.constant 0 : index
    %c0_58 = arith.constant 0 : index
    %79 = vector.load %arg3[%c8, %c0_57, %c0_58] : memref<9x128x128xbf16, #tpu.memory_space<vmem>>, vector<1x128x128xbf16>
    %80 = vector.shape_cast %79 : vector<1x128x128xbf16> to vector<128x128xbf16>
    %cst_59 = arith.constant dense<0.000000e+00> : vector<64x128xf32>
    %81 = tpu.matmul %78, %80, %cst_59 {dimension_numbers = #tpu.dot_dimension_numbers<[1], [0], [0], [1], [0, 0, 1, 1], [], []>} : vector<64x128xbf16>, vector<128x128xbf16>, vector<64x128xf32> -> vector<64x128xf32>
    %82 = arith.addf %73, %81 : vector<64x128xf32>
    %c0_60 = arith.constant 0 : index
    %c0_61 = arith.constant 0 : index
    %83 = vector.load %arg4[%c0_60, %c0_61] : memref<64x128xf32, #tpu.memory_space<vmem>>, vector<64x128xf32>
    tpu.vector_store %arg4[%c0_60, %c0_61], %82 {strides = array<i32>} : memref<64x128xf32, #tpu.memory_space<vmem>>, vector<64x128xf32>,
    %cst_62 = arith.constant dense<0.000000e+00> : vector<128xf32>
    %84 = vector.multi_reduction <add>, %82, %cst_62 [0] : vector<64x128xf32> to vector<128xf32>
    %85 = vector.shape_cast %84 : vector<128xf32> to vector<1x128xf32>
    %86 = arith.mulf %82, %82 : vector<64x128xf32>
    %cst_63 = arith.constant dense<0.000000e+00> : vector<128xf32>
    %87 = vector.multi_reduction <add>, %86, %cst_63 [0] : vector<64x128xf32> to vector<128xf32>
    %88 = vector.shape_cast %87 : vector<128xf32> to vector<1x128xf32>
    %89 = tpu.concatenate %85, %88 in 0 : vector<1x128xf32>, vector<1x128xf32> -> vector<2x128xf32>
    %90 = vector.shape_cast %89 : vector<2x128xf32> to vector<1x2x128xf32>
    %c0_64 = arith.constant 0 : index
    %c0_65 = arith.constant 0 : index
    %c0_66 = arith.constant 0 : index
    %91 = vector.load %arg5[%c0_64, %c0_65, %c0_66] : memref<1x2x128xf32, #tpu.memory_space<vmem>>, vector<1x2x128xf32>
    tpu.vector_store %arg5[%c0_64, %c0_65, %c0_66], %90 {strides = array<i32>} : memref<1x2x128xf32, #tpu.memory_space<vmem>>, vector<1x2x128xf32>,
    return
  }
  func.func @transform_0(%arg0: i32, %arg1: i32) -> (i32, i32, i32, i32) {
    %c0_i32 = arith.constant 0 : i32
    %c0_i32_0 = arith.constant 0 : i32
    %c0_i32_1 = arith.constant 0 : i32
    %c0_i32_2 = arith.constant 0 : i32
    return %arg0, %c0_i32, %c0_i32_0, %c0_i32_1 : i32, i32, i32, i32
  }
  func.func @transform_1(%arg0: i32, %arg1: i32) -> (i32, i32, i32) {
    %c0_i32 = arith.constant 0 : i32
    %c0_i32_0 = arith.constant 0 : i32
    %c0_i32_1 = arith.constant 0 : i32
    %c0_i32_2 = arith.constant 0 : i32
    return %c0_i32, %c0_i32_0, %c0_i32_1 : i32, i32, i32
  }
  func.func @transform_2(%arg0: i32, %arg1: i32) -> (i32, i32) {
    %c1_i32 = arith.constant 1 : i32
    %0 = arith.muli %arg0, %c1_i32 : i32
    %1 = arith.addi %0, %arg1 : i32
    %c0_i32 = arith.constant 0 : i32
    %c0_i32_0 = arith.constant 0 : i32
    return %1, %c0_i32 : i32, i32
  }
  func.func @transform_3(%arg0: i32, %arg1: i32) -> (i32, i32, i32) {
    %c1_i32 = arith.constant 1 : i32
    %0 = arith.muli %arg0, %c1_i32 : i32
    %1 = arith.addi %0, %arg1 : i32
    %c0_i32 = arith.constant 0 : i32
    %c0_i32_0 = arith.constant 0 : i32
    %c0_i32_1 = arith.constant 0 : i32
    return %1, %c0_i32, %c0_i32_0 : i32, i32, i32
  }
}

module attributes {stable_mosaic.version = 11 : i64} {
  func.func @_bn_act_kernel(%arg0: i32, %arg1: memref<128x128xf32, #tpu.memory_space<vmem>>, %arg2: memref<2x2x128xf32, #tpu.memory_space<vmem>>, %arg3: memref<1x128xf32, #tpu.memory_space<vmem>>, %arg4: memref<1x128xf32, #tpu.memory_space<vmem>>, %arg5: memref<128x128xf32, #tpu.memory_space<vmem>>, %arg6: memref<2x2x128xf32, #tpu.memory_space<vmem>>, %arg7: memref<1x128xf32, #tpu.memory_space<vmem>>, %arg8: memref<1x128xf32, #tpu.memory_space<vmem>>, %arg9: memref<128x128xf32, #tpu.memory_space<vmem>>) attributes {dimension_semantics = [#tpu.dimension_semantics<parallel>], iteration_bounds = array<i64: 1>, scalar_prefetch = 0 : i64, scratch_operands = 0 : i64, tpu.core_type = #tpu.core_type<tc>, window_params = [{transform_indices = @transform_0, window_bounds = array<i64: 128, 128>}, {pipeline_mode = #tpu.pipeline_mode<synchronous>, transform_indices = @transform_1, window_bounds = array<i64: 2, 2, 128>}, {pipeline_mode = #tpu.pipeline_mode<synchronous>, transform_indices = @transform_2, window_bounds = array<i64: 1, 128>}, {pipeline_mode = #tpu.pipeline_mode<synchronous>, transform_indices = @transform_3, window_bounds = array<i64: 1, 128>}, {transform_indices = @transform_4, window_bounds = array<i64: 128, 128>}, {pipeline_mode = #tpu.pipeline_mode<synchronous>, transform_indices = @transform_5, window_bounds = array<i64: 2, 2, 128>}, {pipeline_mode = #tpu.pipeline_mode<synchronous>, transform_indices = @transform_6, window_bounds = array<i64: 1, 128>}, {pipeline_mode = #tpu.pipeline_mode<synchronous>, transform_indices = @transform_7, window_bounds = array<i64: 1, 128>}, {transform_indices = @transform_8, window_bounds = array<i64: 128, 128>}]} {
    %c0 = arith.constant 0 : index
    %c0_0 = arith.constant 0 : index
    %0 = vector.load %arg1[%c0, %c0_0] : memref<128x128xf32, #tpu.memory_space<vmem>>, vector<128x128xf32>
    %c0_1 = arith.constant 0 : index
    %c0_2 = arith.constant 0 : index
    %c0_3 = arith.constant 0 : index
    %1 = vector.load %arg2[%c0_1, %c0_2, %c0_3] : memref<2x2x128xf32, #tpu.memory_space<vmem>>, vector<2x2x128xf32>
    %cst = arith.constant dense<0.000000e+00> : vector<2x128xf32>
    %2 = vector.multi_reduction <add>, %1, %cst [0] : vector<2x2x128xf32> to vector<2x128xf32>
    %3 = vector.extract_strided_slice %2 {offsets = [0, 0], sizes = [1, 128], strides = [1, 1]} : vector<2x128xf32> to vector<1x128xf32>
    %cst_4 = arith.constant 7.812500e-03 : f32
    %4 = vector.broadcast %cst_4 : f32 to vector<1x128xf32>
    %5 = arith.mulf %3, %4 : vector<1x128xf32>
    %6 = vector.extract_strided_slice %2 {offsets = [1, 0], sizes = [1, 128], strides = [1, 1]} : vector<2x128xf32> to vector<1x128xf32>
    %cst_5 = arith.constant 7.812500e-03 : f32
    %7 = vector.broadcast %cst_5 : f32 to vector<1x128xf32>
    %8 = arith.mulf %6, %7 : vector<1x128xf32>
    %9 = arith.mulf %5, %5 : vector<1x128xf32>
    %10 = arith.subf %8, %9 : vector<1x128xf32>
    %11 = vector.broadcast %5 : vector<1x128xf32> to vector<128x128xf32>
    %12 = arith.subf %0, %11 : vector<128x128xf32>
    %cst_6 = arith.constant 9.99999974E-6 : f32
    %13 = vector.broadcast %cst_6 : f32 to vector<1x128xf32>
    %14 = arith.addf %10, %13 : vector<1x128xf32>
    %15 = math.rsqrt %14 : vector<1x128xf32>
    %16 = vector.broadcast %15 : vector<1x128xf32> to vector<128x128xf32>
    %17 = arith.mulf %12, %16 : vector<128x128xf32>
    %c0_7 = arith.constant 0 : index
    %c0_8 = arith.constant 0 : index
    %18 = vector.load %arg3[%c0_7, %c0_8] : memref<1x128xf32, #tpu.memory_space<vmem>>, vector<1x128xf32>
    %19 = vector.broadcast %18 : vector<1x128xf32> to vector<128x128xf32>
    %20 = arith.mulf %17, %19 : vector<128x128xf32>
    %c0_9 = arith.constant 0 : index
    %c0_10 = arith.constant 0 : index
    %21 = vector.load %arg4[%c0_9, %c0_10] : memref<1x128xf32, #tpu.memory_space<vmem>>, vector<1x128xf32>
    %22 = vector.broadcast %21 : vector<1x128xf32> to vector<128x128xf32>
    %23 = arith.addf %20, %22 : vector<128x128xf32>
    %cst_11 = arith.constant 0.000000e+00 : f32
    %24 = vector.broadcast %cst_11 : f32 to vector<128x128xf32>
    %25 = arith.maximumf %23, %24 : vector<128x128xf32>
    %c0_12 = arith.constant 0 : index
    %c0_13 = arith.constant 0 : index
    %26 = vector.load %arg5[%c0_12, %c0_13] : memref<128x128xf32, #tpu.memory_space<vmem>>, vector<128x128xf32>
    %c0_14 = arith.constant 0 : index
    %c0_15 = arith.constant 0 : index
    %c0_16 = arith.constant 0 : index
    %27 = vector.load %arg6[%c0_14, %c0_15, %c0_16] : memref<2x2x128xf32, #tpu.memory_space<vmem>>, vector<2x2x128xf32>
    %cst_17 = arith.constant dense<0.000000e+00> : vector<2x128xf32>
    %28 = vector.multi_reduction <add>, %27, %cst_17 [0] : vector<2x2x128xf32> to vector<2x128xf32>
    %29 = vector.extract_strided_slice %28 {offsets = [0, 0], sizes = [1, 128], strides = [1, 1]} : vector<2x128xf32> to vector<1x128xf32>
    %cst_18 = arith.constant 7.812500e-03 : f32
    %30 = vector.broadcast %cst_18 : f32 to vector<1x128xf32>
    %31 = arith.mulf %29, %30 : vector<1x128xf32>
    %32 = vector.extract_strided_slice %28 {offsets = [1, 0], sizes = [1, 128], strides = [1, 1]} : vector<2x128xf32> to vector<1x128xf32>
    %cst_19 = arith.constant 7.812500e-03 : f32
    %33 = vector.broadcast %cst_19 : f32 to vector<1x128xf32>
    %34 = arith.mulf %32, %33 : vector<1x128xf32>
    %35 = arith.mulf %31, %31 : vector<1x128xf32>
    %36 = arith.subf %34, %35 : vector<1x128xf32>
    %37 = vector.broadcast %31 : vector<1x128xf32> to vector<128x128xf32>
    %38 = arith.subf %26, %37 : vector<128x128xf32>
    %cst_20 = arith.constant 9.99999974E-6 : f32
    %39 = vector.broadcast %cst_20 : f32 to vector<1x128xf32>
    %40 = arith.addf %36, %39 : vector<1x128xf32>
    %41 = math.rsqrt %40 : vector<1x128xf32>
    %42 = vector.broadcast %41 : vector<1x128xf32> to vector<128x128xf32>
    %43 = arith.mulf %38, %42 : vector<128x128xf32>
    %c0_21 = arith.constant 0 : index
    %c0_22 = arith.constant 0 : index
    %44 = vector.load %arg7[%c0_21, %c0_22] : memref<1x128xf32, #tpu.memory_space<vmem>>, vector<1x128xf32>
    %45 = vector.broadcast %44 : vector<1x128xf32> to vector<128x128xf32>
    %46 = arith.mulf %43, %45 : vector<128x128xf32>
    %c0_23 = arith.constant 0 : index
    %c0_24 = arith.constant 0 : index
    %47 = vector.load %arg8[%c0_23, %c0_24] : memref<1x128xf32, #tpu.memory_space<vmem>>, vector<1x128xf32>
    %48 = vector.broadcast %47 : vector<1x128xf32> to vector<128x128xf32>
    %49 = arith.addf %46, %48 : vector<128x128xf32>
    %50 = arith.addf %25, %49 : vector<128x128xf32>
    %cst_25 = arith.constant 0.000000e+00 : f32
    %51 = vector.broadcast %cst_25 : f32 to vector<128x128xf32>
    %52 = arith.maximumf %50, %51 : vector<128x128xf32>
    %c0_26 = arith.constant 0 : index
    %c0_27 = arith.constant 0 : index
    %53 = vector.load %arg9[%c0_26, %c0_27] : memref<128x128xf32, #tpu.memory_space<vmem>>, vector<128x128xf32>
    tpu.vector_store %arg9[%c0_26, %c0_27], %52 {strides = array<i32>} : memref<128x128xf32, #tpu.memory_space<vmem>>, vector<128x128xf32>,
    return
  }
  func.func @transform_0(%arg0: i32) -> (i32, i32) {
    %c0_i32 = arith.constant 0 : i32
    %c0_i32_0 = arith.constant 0 : i32
    return %arg0, %c0_i32 : i32, i32
  }
  func.func @transform_1(%arg0: i32) -> (i32, i32, i32) {
    %c0_i32 = arith.constant 0 : i32
    %c0_i32_0 = arith.constant 0 : i32
    %c0_i32_1 = arith.constant 0 : i32
    %c0_i32_2 = arith.constant 0 : i32
    return %c0_i32, %c0_i32_0, %c0_i32_1 : i32, i32, i32
  }
  func.func @transform_2(%arg0: i32) -> (i32, i32) {
    %c0_i32 = arith.constant 0 : i32
    %c0_i32_0 = arith.constant 0 : i32
    %c0_i32_1 = arith.constant 0 : i32
    return %c0_i32, %c0_i32_0 : i32, i32
  }
  func.func @transform_3(%arg0: i32) -> (i32, i32) {
    %c0_i32 = arith.constant 0 : i32
    %c0_i32_0 = arith.constant 0 : i32
    %c0_i32_1 = arith.constant 0 : i32
    return %c0_i32, %c0_i32_0 : i32, i32
  }
  func.func @transform_4(%arg0: i32) -> (i32, i32) {
    %c0_i32 = arith.constant 0 : i32
    %c0_i32_0 = arith.constant 0 : i32
    return %arg0, %c0_i32 : i32, i32
  }
  func.func @transform_5(%arg0: i32) -> (i32, i32, i32) {
    %c0_i32 = arith.constant 0 : i32
    %c0_i32_0 = arith.constant 0 : i32
    %c0_i32_1 = arith.constant 0 : i32
    %c0_i32_2 = arith.constant 0 : i32
    return %c0_i32, %c0_i32_0, %c0_i32_1 : i32, i32, i32
  }
  func.func @transform_6(%arg0: i32) -> (i32, i32) {
    %c0_i32 = arith.constant 0 : i32
    %c0_i32_0 = arith.constant 0 : i32
    %c0_i32_1 = arith.constant 0 : i32
    return %c0_i32, %c0_i32_0 : i32, i32
  }
  func.func @transform_7(%arg0: i32) -> (i32, i32) {
    %c0_i32 = arith.constant 0 : i32
    %c0_i32_0 = arith.constant 0 : i32
    %c0_i32_1 = arith.constant 0 : i32
    return %c0_i32, %c0_i32_0 : i32, i32
  }
  func.func @transform_8(%arg0: i32) -> (i32, i32) {
    %c0_i32 = arith.constant 0 : i32
    %c0_i32_0 = arith.constant 0 : i32
    return %arg0, %c0_i32 : i32, i32
  }
}

</mosaic_0001>

<llo_original>
// kernel: _lambda_.5
$region0: #{_lambda_.5}
  #allocation0 [shape = 'u32[]', space=smem, size = 0x4, offset = 0x4, fixed_abs, tag = 'smem constant byte address 0x4 - core index']
  #allocation1 [shape = 'u32[144,128]{1,0:T(1,128)}', space=vmem, size = 0x12000, scoped, tag = 'internal scratch']
  %s0 = inlined_call_operand.vmem [shape: f32[128,128], index: 0, kind: input, shape index: {}]
  %s1 = inlined_call_operand.vmem [shape: f32[2,2,128], index: 1, kind: input, shape index: {}]
  %s2 = inlined_call_operand.vmem [shape: f32[1,128], index: 2, kind: input, shape index: {}]
  %s3 = inlined_call_operand.vmem [shape: f32[1,128], index: 3, kind: input, shape index: {}]
  %s4 = inlined_call_operand.vmem [shape: bf16[128,128], index: 4, kind: output, shape index: {}]
  %s5 = sld [smem:[#allocation0]]
  $region26: #{_lambda_.5} parent=0
    _
  %s7 = ssub.s32 1, %s5
  %s8 = scalar_select 0, %s7, %s5
  // Predicated region
  $region2: #{_lambda_.5} parent=0 // pred_check
    _
  $region3: #{_lambda_.5} parent=0 // pred_check_branch
    %10 = sbr.rel (0) target = $region5
  $region4: #{_lambda_.5} parent=0 // pred_region
    _
  $region5: #{_lambda_.5} parent=0 // pred_fallthru
    _
  // Predicated region
  $region6: #{_lambda_.5} parent=0 // pred_check
    _
  $region7: #{_lambda_.5} parent=0 // pred_check_branch
    %12 = sbr.rel (0) target = $region9
  $region8: #{_lambda_.5} parent=0 // pred_region
    _
  $region9: #{_lambda_.5} parent=0 // pred_fallthru
    _
  // Predicated region
  $region10: #{_lambda_.5} parent=0 // pred_check
    _
  $region11: #{_lambda_.5} parent=0 // pred_check_branch
    %14 = sbr.rel (0) target = $region13
  $region12: #{_lambda_.5} parent=0 // pred_region
    _
  $region13: #{_lambda_.5} parent=0 // pred_fallthru
    _
  // Predicated region
  $region14: #{_lambda_.5} parent=0 // pred_check
    _
  $region15: #{_lambda_.5} parent=0 // pred_check_branch
    %16 = sbr.rel (0) target = $region17
  $region16: #{_lambda_.5} parent=0 // pred_region
    _
  $region17: #{_lambda_.5} parent=0 // pred_fallthru
    _
  %v17 = vld [vmem:[%s0] sm:$0xff]
  %v18 = vld [vmem:[%s0 + $0x8] sm:$0xff]
  %v19 = vld [vmem:[%s0 + $0x10] sm:$0xff]
  %v20 = vld [vmem:[%s0 + $0x18] sm:$0xff]
  %v21 = vld [vmem:[%s0 + $0x20] sm:$0xff]
  %v22 = vld [vmem:[%s0 + $0x28] sm:$0xff]
  %v23 = vld [vmem:[%s0 + $0x30] sm:$0xff]
  %v24 = vld [vmem:[%s0 + $0x38] sm:$0xff]
  %v25 = vld [vmem:[%s0 + $0x40] sm:$0xff]
  %v26 = vld [vmem:[%s0 + $0x48] sm:$0xff]
  %v27 = vld [vmem:[%s0 + $0x50] sm:$0xff]
  %v28 = vld [vmem:[%s0 + $0x58] sm:$0xff]
  %v29 = vld [vmem:[%s0 + $0x60] sm:$0xff]
  %v30 = vld [vmem:[%s0 + $0x68] sm:$0xff]
  %v31 = vld [vmem:[%s0 + $0x70] sm:$0xff]
  %v32 = vld [vmem:[%s0 + $0x78] sm:$0xff]
  %v33 = vld [vmem:[%s1] sm:$0x3]
  %v34 = vld [vmem:[%s1 + $0x2] sm:$0x3]
  %vm35 = vcmask 1041408
  %v36 = vsel %vm35, %v33, 0.0
  %v37 = vsel %vm35, %v34, 0.0
  %v38 = vadd.f32 %v36, %v37
  %v39 = vmul.f32 %v38, 0.0078125
  %v40 = vmul.f32 %v39, %v39
  %v42 = vrot.slane %v40, 7
  %v44 = vsub.f32 %v39, %v42
  %v45 = vlaneseq
  %v46 = vshrl.u32 %v45, 7
  %v47 = vsub.s32 0, %v46
  %v48 = vrot.slane %v39, %v47
  %v49 = vsub.f32 %v17, %v48
  %v50 = vsub.f32 %v18, %v48
  %v51 = vsub.f32 %v19, %v48
  %v52 = vsub.f32 %v20, %v48
  %v53 = vsub.f32 %v21, %v48
  %v54 = vsub.f32 %v22, %v48
  %v55 = vsub.f32 %v23, %v48
  %v56 = vsub.f32 %v24, %v48
  %v57 = vsub.f32 %v25, %v48
  %v58 = vsub.f32 %v26, %v48
  %v59 = vsub.f32 %v27, %v48
  %v60 = vsub.f32 %v28, %v48
  %v61 = vsub.f32 %v29, %v48
  %v62 = vsub.f32 %v30, %v48
  %v63 = vsub.f32 %v31, %v48
  %v64 = vsub.f32 %v32, %v48
  %v65 = vadd.f32 %v44, 1e-05
  %v66 = vrsqrt.pop %v65
  %v67 = vlaneseq
  %v68 = vshrl.u32 %v67, 7
  %v69 = vsub.s32 1, %v68
  %v70 = vrot.slane %v66, %v69
  %v71 = vmul.f32 %v49, %v70
  %v72 = vmul.f32 %v50, %v70
  %v73 = vmul.f32 %v51, %v70
  %v74 = vmul.f32 %v52, %v70
  %v75 = vmul.f32 %v53, %v70
  %v76 = vmul.f32 %v54, %v70
  %v77 = vmul.f32 %v55, %v70
  %v78 = vmul.f32 %v56, %v70
  %v79 = vmul.f32 %v57, %v70
  %v80 = vmul.f32 %v58, %v70
  %v81 = vmul.f32 %v59, %v70
  %v82 = vmul.f32 %v60, %v70
  %v83 = vmul.f32 %v61, %v70
  %v84 = vmul.f32 %v62, %v70
  %v85 = vmul.f32 %v63, %v70
  %v86 = vmul.f32 %v64, %v70
  %v87 = vld [vmem:[%s2] sm:$0x1]
  %v89 = vlaneseq
  %v90 = vshrl.u32 %v89, 7
  %v91 = vsub.s32 0, %v90
  %v92 = vrot.slane %v87, %v91
  %v94 = vmul.f32 %v71, %v92
  %v95 = vmul.f32 %v72, %v92
  %v96 = vmul.f32 %v73, %v92
  %v97 = vmul.f32 %v74, %v92
  %v98 = vmul.f32 %v75, %v92
  %v99 = vmul.f32 %v76, %v92
  %v100 = vmul.f32 %v77, %v92
  %v101 = vmul.f32 %v78, %v92
  %v102 = vmul.f32 %v79, %v92
  %v103 = vmul.f32 %v80, %v92
  %v104 = vmul.f32 %v81, %v92
  %v105 = vmul.f32 %v82, %v92
  %v106 = vmul.f32 %v83, %v92
  %v107 = vmul.f32 %v84, %v92
  %v108 = vmul.f32 %v85, %v92
  %v109 = vmul.f32 %v86, %v92
  %v110 = vld [vmem:[%s3] sm:$0x1]
  %v112 = vlaneseq
  %v113 = vshrl.u32 %v112, 7
  %v114 = vsub.s32 0, %v113
  %v115 = vrot.slane %v110, %v114
  %v117 = vadd.f32 %v94, %v115
  %v118 = vadd.f32 %v95, %v115
  %v119 = vadd.f32 %v96, %v115
  %v120 = vadd.f32 %v97, %v115
  %v121 = vadd.f32 %v98, %v115
  %v122 = vadd.f32 %v99, %v115
  %v123 = vadd.f32 %v100, %v115
  %v124 = vadd.f32 %v101, %v115
  %v125 = vadd.f32 %v102, %v115
  %v126 = vadd.f32 %v103, %v115
  %v127 = vadd.f32 %v104, %v115
  %v128 = vadd.f32 %v105, %v115
  %v129 = vadd.f32 %v106, %v115
  %v130 = vadd.f32 %v107, %v115
  %v131 = vadd.f32 %v108, %v115
  %v132 = vadd.f32 %v109, %v115
  %v133 = vmax.f32 %v117, 0.0
  %v134 = vmax.f32 %v118, 0.0
  %v135 = vmax.f32 %v119, 0.0
  %v136 = vmax.f32 %v120, 0.0
  %v137 = vmax.f32 %v121, 0.0
  %v138 = vmax.f32 %v122, 0.0
  %v139 = vmax.f32 %v123, 0.0
  %v140 = vmax.f32 %v124, 0.0
  %v141 = vmax.f32 %v125, 0.0
  %v142 = vmax.f32 %v126, 0.0
  %v143 = vmax.f32 %v127, 0.0
  %v144 = vmax.f32 %v128, 0.0
  %v145 = vmax.f32 %v129, 0.0
  %v146 = vmax.f32 %v130, 0.0
  %v147 = vmax.f32 %v131, 0.0
  %v148 = vmax.f32 %v132, 0.0
  %v149 = vpack.c.bf16 %v134, %v133
  %v150 = vpack.c.bf16 %v136, %v135
  %v151 = vpack.c.bf16 %v138, %v137
  %v152 = vpack.c.bf16 %v140, %v139
  %v153 = vpack.c.bf16 %v142, %v141
  %v154 = vpack.c.bf16 %v144, %v143
  %v155 = vpack.c.bf16 %v146, %v145
  %v156 = vpack.c.bf16 %v148, %v147
  %v165 = vunpack.c.l.b16 %v149
  %v166 = vunpack.c.h.b16 %v149
  %v167 = vunpack.c.l.b16 %v150
  %v168 = vunpack.c.h.b16 %v150
  %v169 = vunpack.c.l.b16 %v151
  %v170 = vunpack.c.h.b16 %v151
  %v171 = vunpack.c.l.b16 %v152
  %v172 = vunpack.c.h.b16 %v152
  %v173 = vunpack.c.l.b16 %v153
  %v174 = vunpack.c.h.b16 %v153
  %v175 = vunpack.c.l.b16 %v154
  %v176 = vunpack.c.h.b16 %v154
  %v177 = vunpack.c.l.b16 %v155
  %v178 = vunpack.c.h.b16 %v155
  %v179 = vunpack.c.l.b16 %v156
  %v180 = vunpack.c.h.b16 %v156
  %v181 = vpack.c.b16 %v165, %v165
  %v182 = vpack.c.b16 %v166, %v166
  %v183 = vpack.c.b16 %v167, %v167
  %v184 = vpack.c.b16 %v168, %v168
  %v185 = vpack.c.b16 %v169, %v169
  %v186 = vpack.c.b16 %v170, %v170
  %v187 = vpack.c.b16 %v171, %v171
  %v188 = vpack.c.b16 %v172, %v172
  %v189 = vpack.c.b16 %v173, %v173
  %v190 = vpack.c.b16 %v174, %v174
  %v191 = vpack.c.b16 %v175, %v175
  %v192 = vpack.c.b16 %v176, %v176
  %v193 = vpack.c.b16 %v177, %v177
  %v194 = vpack.c.b16 %v178, %v178
  %v195 = vpack.c.b16 %v179, %v179
  %v196 = vpack.c.b16 %v180, %v180
  %213 = vst [vmem:[%s4] sm:$0xf] %v181
  %214 = vst [vmem:[%s4 + $0x4] sm:$0xf] %v182
  %215 = vst [vmem:[%s4 + $0x8] sm:$0xf] %v183
  %216 = vst [vmem:[%s4 + $0xc] sm:$0xf] %v184
  %217 = vst [vmem:[%s4 + $0x10] sm:$0xf] %v185
  %218 = vst [vmem:[%s4 + $0x14] sm:$0xf] %v186
  %219 = vst [vmem:[%s4 + $0x18] sm:$0xf] %v187
  %220 = vst [vmem:[%s4 + $0x1c] sm:$0xf] %v188
  %221 = vst [vmem:[%s4 + $0x20] sm:$0xf] %v189
  %222 = vst [vmem:[%s4 + $0x24] sm:$0xf] %v190
  %223 = vst [vmem:[%s4 + $0x28] sm:$0xf] %v191
  %224 = vst [vmem:[%s4 + $0x2c] sm:$0xf] %v192
  %225 = vst [vmem:[%s4 + $0x30] sm:$0xf] %v193
  %226 = vst [vmem:[%s4 + $0x34] sm:$0xf] %v194
  %227 = vst [vmem:[%s4 + $0x38] sm:$0xf] %v195
  %228 = vst [vmem:[%s4 + $0x3c] sm:$0xf] %v196
  // Predicated region
  $region18: #{_lambda_.5} parent=0 // pred_check
    _
  $region19: #{_lambda_.5} parent=0 // pred_check_branch
    %230 = sbr.rel (0) target = $region21
  $region20: #{_lambda_.5} parent=0 // pred_region
    _
  $region21: #{_lambda_.5} parent=0 // pred_fallthru
    _
  // Predicated region
  $region22: #{_lambda_.5} parent=0 // pred_check
    _
  $region23: #{_lambda_.5} parent=0 // pred_check_branch
    %232 = sbr.rel (0) target = $region25
  $region24: #{_lambda_.5} parent=0 // pred_region
    _
  $region25: #{_lambda_.5} parent=0 // pred_fallthru
    _

// kernel: _lambda_.7
$region0: #{_lambda_.7}
  #allocation0 [shape = 'u32[]', space=smem, size = 0x4, offset = 0x4, fixed_abs, tag = 'smem constant byte address 0x4 - core index']
  #allocation1 [shape = 'u32[144,128]{1,0:T(1,128)}', space=vmem, size = 0x12000, scoped, tag = 'internal scratch']
  %s0 = inlined_call_operand.vmem [shape: f32[128,128], index: 0, kind: input, shape index: {}]
  %s1 = inlined_call_operand.vmem [shape: f32[2,2,128], index: 1, kind: input, shape index: {}]
  %s2 = inlined_call_operand.vmem [shape: f32[1,128], index: 2, kind: input, shape index: {}]
  %s3 = inlined_call_operand.vmem [shape: f32[1,128], index: 3, kind: input, shape index: {}]
  %s4 = inlined_call_operand.vmem [shape: f32[128,128], index: 4, kind: input, shape index: {}]
  %s5 = inlined_call_operand.vmem [shape: f32[2,2,128], index: 5, kind: input, shape index: {}]
  %s6 = inlined_call_operand.vmem [shape: f32[1,128], index: 6, kind: input, shape index: {}]
  %s7 = inlined_call_operand.vmem [shape: f32[1,128], index: 7, kind: input, shape index: {}]
  %s8 = inlined_call_operand.vmem [shape: f32[128,128], index: 8, kind: output, shape index: {}]
  %s9 = sld [smem:[#allocation0]]
  $region42: #{_lambda_.7} parent=0
    _
  %s11 = ssub.s32 1, %s9
  %s12 = scalar_select 0, %s11, %s9
  // Predicated region
  $region2: #{_lambda_.7} parent=0 // pred_check
    _
  $region3: #{_lambda_.7} parent=0 // pred_check_branch
    %14 = sbr.rel (0) target = $region5
  $region4: #{_lambda_.7} parent=0 // pred_region
    _
  $region5: #{_lambda_.7} parent=0 // pred_fallthru
    _
  // Predicated region
  $region6: #{_lambda_.7} parent=0 // pred_check
    _
  $region7: #{_lambda_.7} parent=0 // pred_check_branch
    %16 = sbr.rel (0) target = $region9
  $region8: #{_lambda_.7} parent=0 // pred_region
    _
  $region9: #{_lambda_.7} parent=0 // pred_fallthru
    _
  // Predicated region
  $region10: #{_lambda_.7} parent=0 // pred_check
    _
  $region11: #{_lambda_.7} parent=0 // pred_check_branch
    %18 = sbr.rel (0) target = $region13
  $region12: #{_lambda_.7} parent=0 // pred_region
    _
  $region13: #{_lambda_.7} parent=0 // pred_fallthru
    _
  // Predicated region
  $region14: #{_lambda_.7} parent=0 // pred_check
    _
  $region15: #{_lambda_.7} parent=0 // pred_check_branch
    %20 = sbr.rel (0) target = $region17
  $region16: #{_lambda_.7} parent=0 // pred_region
    _
  $region17: #{_lambda_.7} parent=0 // pred_fallthru
    _
  // Predicated region
  $region18: #{_lambda_.7} parent=0 // pred_check
    _
  $region19: #{_lambda_.7} parent=0 // pred_check_branch
    %22 = sbr.rel (0) target = $region21
  $region20: #{_lambda_.7} parent=0 // pred_region
    _
  $region21: #{_lambda_.7} parent=0 // pred_fallthru
    _
  // Predicated region
  $region22: #{_lambda_.7} parent=0 // pred_check
    _
  $region23: #{_lambda_.7} parent=0 // pred_check_branch
    %24 = sbr.rel (0) target = $region25
  $region24: #{_lambda_.7} parent=0 // pred_region
    _
  $region25: #{_lambda_.7} parent=0 // pred_fallthru
    _
  // Predicated region
  $region26: #{_lambda_.7} parent=0 // pred_check
    _
  $region27: #{_lambda_.7} parent=0 // pred_check_branch
    %26 = sbr.rel (0) target = $region29
  $region28: #{_lambda_.7} parent=0 // pred_region
    _
  $region29: #{_lambda_.7} parent=0 // pred_fallthru
    _
  // Predicated region
  $region30: #{_lambda_.7} parent=0 // pred_check
    _
  $region31: #{_lambda_.7} parent=0 // pred_check_branch
    %28 = sbr.rel (0) target = $region33
  $region32: #{_lambda_.7} parent=0 // pred_region
    _
  $region33: #{_lambda_.7} parent=0 // pred_fallthru
    _
  %v29 = vld [vmem:[%s0] sm:$0xff]
  %v30 = vld [vmem:[%s0 + $0x8] sm:$0xff]
  %v31 = vld [vmem:[%s0 + $0x10] sm:$0xff]
  %v32 = vld [vmem:[%s0 + $0x18] sm:$0xff]
  %v33 = vld [vmem:[%s0 + $0x20] sm:$0xff]
  %v34 = vld [vmem:[%s0 + $0x28] sm:$0xff]
  %v35 = vld [vmem:[%s0 + $0x30] sm:$0xff]
  %v36 = vld [vmem:[%s0 + $0x38] sm:$0xff]
  %v37 = vld [vmem:[%s0 + $0x40] sm:$0xff]
  %v38 = vld [vmem:[%s0 + $0x48] sm:$0xff]
  %v39 = vld [vmem:[%s0 + $0x50] sm:$0xff]
  %v40 = vld [vmem:[%s0 + $0x58] sm:$0xff]
  %v41 = vld [vmem:[%s0 + $0x60] sm:$0xff]
  %v42 = vld [vmem:[%s0 + $0x68] sm:$0xff]
  %v43 = vld [vmem:[%s0 + $0x70] sm:$0xff]
  %v44 = vld [vmem:[%s0 + $0x78] sm:$0xff]
  %v45 = vld [vmem:[%s1] sm:$0x3]
  %v46 = vld [vmem:[%s1 + $0x2] sm:$0x3]
  %vm47 = vcmask 1041408
  %v48 = vsel %vm47, %v45, 0.0
  %v49 = vsel %vm47, %v46, 0.0
  %v50 = vadd.f32 %v48, %v49
  %v51 = vmul.f32 %v50, 0.0078125
  %v52 = vmul.f32 %v51, %v51
  %v54 = vrot.slane %v52, 7
  %v56 = vsub.f32 %v51, %v54
  %v57 = vlaneseq
  %v58 = vshrl.u32 %v57, 7
  %v59 = vsub.s32 0, %v58
  %v60 = vrot.slane %v51, %v59
  %v61 = vsub.f32 %v29, %v60
  %v62 = vsub.f32 %v30, %v60
  %v63 = vsub.f32 %v31, %v60
  %v64 = vsub.f32 %v32, %v60
  %v65 = vsub.f32 %v33, %v60
  %v66 = vsub.f32 %v34, %v60
  %v67 = vsub.f32 %v35, %v60
  %v68 = vsub.f32 %v36, %v60
  %v69 = vsub.f32 %v37, %v60
  %v70 = vsub.f32 %v38, %v60
  %v71 = vsub.f32 %v39, %v60
  %v72 = vsub.f32 %v40, %v60
  %v73 = vsub.f32 %v41, %v60
  %v74 = vsub.f32 %v42, %v60
  %v75 = vsub.f32 %v43, %v60
  %v76 = vsub.f32 %v44, %v60
  %v77 = vadd.f32 %v56, 1e-05
  %v78 = vrsqrt.pop %v77
  %v79 = vlaneseq
  %v80 = vshrl.u32 %v79, 7
  %v81 = vsub.s32 1, %v80
  %v82 = vrot.slane %v78, %v81
  %v83 = vmul.f32 %v61, %v82
  %v84 = vmul.f32 %v62, %v82
  %v85 = vmul.f32 %v63, %v82
  %v86 = vmul.f32 %v64, %v82
  %v87 = vmul.f32 %v65, %v82
  %v88 = vmul.f32 %v66, %v82
  %v89 = vmul.f32 %v67, %v82
  %v90 = vmul.f32 %v68, %v82
  %v91 = vmul.f32 %v69, %v82
  %v92 = vmul.f32 %v70, %v82
  %v93 = vmul.f32 %v71, %v82
  %v94 = vmul.f32 %v72, %v82
  %v95 = vmul.f32 %v73, %v82
  %v96 = vmul.f32 %v74, %v82
  %v97 = vmul.f32 %v75, %v82
  %v98 = vmul.f32 %v76, %v82
  %v99 = vld [vmem:[%s2] sm:$0x1]
  %v101 = vlaneseq
  %v102 = vshrl.u32 %v101, 7
  %v103 = vsub.s32 0, %v102
  %v104 = vrot.slane %v99, %v103
  %v106 = vmul.f32 %v83, %v104
  %v107 = vmul.f32 %v84, %v104
  %v108 = vmul.f32 %v85, %v104
  %v109 = vmul.f32 %v86, %v104
  %v110 = vmul.f32 %v87, %v104
  %v111 = vmul.f32 %v88, %v104
  %v112 = vmul.f32 %v89, %v104
  %v113 = vmul.f32 %v90, %v104
  %v114 = vmul.f32 %v91, %v104
  %v115 = vmul.f32 %v92, %v104
  %v116 = vmul.f32 %v93, %v104
  %v117 = vmul.f32 %v94, %v104
  %v118 = vmul.f32 %v95, %v104
  %v119 = vmul.f32 %v96, %v104
  %v120 = vmul.f32 %v97, %v104
  %v121 = vmul.f32 %v98, %v104
  %v122 = vld [vmem:[%s3] sm:$0x1]
  %v124 = vlaneseq
  %v125 = vshrl.u32 %v124, 7
  %v126 = vsub.s32 0, %v125
  %v127 = vrot.slane %v122, %v126
  %v129 = vadd.f32 %v106, %v127
  %v130 = vadd.f32 %v107, %v127
  %v131 = vadd.f32 %v108, %v127
  %v132 = vadd.f32 %v109, %v127
  %v133 = vadd.f32 %v110, %v127
  %v134 = vadd.f32 %v111, %v127
  %v135 = vadd.f32 %v112, %v127
  %v136 = vadd.f32 %v113, %v127
  %v137 = vadd.f32 %v114, %v127
  %v138 = vadd.f32 %v115, %v127
  %v139 = vadd.f32 %v116, %v127
  %v140 = vadd.f32 %v117, %v127
  %v141 = vadd.f32 %v118, %v127
  %v142 = vadd.f32 %v119, %v127
  %v143 = vadd.f32 %v120, %v127
  %v144 = vadd.f32 %v121, %v127
  %v145 = vmax.f32 %v129, 0.0
  %v146 = vmax.f32 %v130, 0.0
  %v147 = vmax.f32 %v131, 0.0
  %v148 = vmax.f32 %v132, 0.0
  %v149 = vmax.f32 %v133, 0.0
  %v150 = vmax.f32 %v134, 0.0
  %v151 = vmax.f32 %v135, 0.0
  %v152 = vmax.f32 %v136, 0.0
  %v153 = vmax.f32 %v137, 0.0
  %v154 = vmax.f32 %v138, 0.0
  %v155 = vmax.f32 %v139, 0.0
  %v156 = vmax.f32 %v140, 0.0
  %v157 = vmax.f32 %v141, 0.0
  %v158 = vmax.f32 %v142, 0.0
  %v159 = vmax.f32 %v143, 0.0
  %v160 = vmax.f32 %v144, 0.0
  %v161 = vld [vmem:[%s4] sm:$0xff]
  %v162 = vld [vmem:[%s4 + $0x8] sm:$0xff]
  %v163 = vld [vmem:[%s4 + $0x10] sm:$0xff]
  %v164 = vld [vmem:[%s4 + $0x18] sm:$0xff]
  %v165 = vld [vmem:[%s4 + $0x20] sm:$0xff]
  %v166 = vld [vmem:[%s4 + $0x28] sm:$0xff]
  %v167 = vld [vmem:[%s4 + $0x30] sm:$0xff]
  %v168 = vld [vmem:[%s4 + $0x38] sm:$0xff]
  %v169 = vld [vmem:[%s4 + $0x40] sm:$0xff]
  %v170 = vld [vmem:[%s4 + $0x48] sm:$0xff]
  %v171 = vld [vmem:[%s4 + $0x50] sm:$0xff]
  %v172 = vld [vmem:[%s4 + $0x58] sm:$0xff]
  %v173 = vld [vmem:[%s4 + $0x60] sm:$0xff]
  %v174 = vld [vmem:[%s4 + $0x68] sm:$0xff]
  %v175 = vld [vmem:[%s4 + $0x70] sm:$0xff]
  %v176 = vld [vmem:[%s4 + $0x78] sm:$0xff]
  %v177 = vld [vmem:[%s5] sm:$0x3]
  %v178 = vld [vmem:[%s5 + $0x2] sm:$0x3]
  %v179 = vsel %vm47, %v177, 0.0
  %v180 = vsel %vm47, %v178, 0.0
  %v181 = vadd.f32 %v179, %v180
  %v182 = vmul.f32 %v181, 0.0078125
  %v183 = vmul.f32 %v182, %v182
  %v185 = vrot.slane %v183, 7
  %v187 = vsub.f32 %v182, %v185
  %v188 = vlaneseq
  %v189 = vshrl.u32 %v188, 7
  %v190 = vsub.s32 0, %v189
  %v191 = vrot.slane %v182, %v190
  %v192 = vsub.f32 %v161, %v191
  %v193 = vsub.f32 %v162, %v191
  %v194 = vsub.f32 %v163, %v191
  %v195 = vsub.f32 %v164, %v191
  %v196 = vsub.f32 %v165, %v191
  %v197 = vsub.f32 %v166, %v191
  %v198 = vsub.f32 %v167, %v191
  %v199 = vsub.f32 %v168, %v191
  %v200 = vsub.f32 %v169, %v191
  %v201 = vsub.f32 %v170, %v191
  %v202 = vsub.f32 %v171, %v191
  %v203 = vsub.f32 %v172, %v191
  %v204 = vsub.f32 %v173, %v191
  %v205 = vsub.f32 %v174, %v191
  %v206 = vsub.f32 %v175, %v191
  %v207 = vsub.f32 %v176, %v191
  %v208 = vadd.f32 %v187, 1e-05
  %v209 = vrsqrt.pop %v208
  %v210 = vlaneseq
  %v211 = vshrl.u32 %v210, 7
  %v212 = vsub.s32 1, %v211
  %v213 = vrot.slane %v209, %v212
  %v214 = vmul.f32 %v192, %v213
  %v215 = vmul.f32 %v193, %v213
  %v216 = vmul.f32 %v194, %v213
  %v217 = vmul.f32 %v195, %v213
  %v218 = vmul.f32 %v196, %v213
  %v219 = vmul.f32 %v197, %v213
  %v220 = vmul.f32 %v198, %v213
  %v221 = vmul.f32 %v199, %v213
  %v222 = vmul.f32 %v200, %v213
  %v223 = vmul.f32 %v201, %v213
  %v224 = vmul.f32 %v202, %v213
  %v225 = vmul.f32 %v203, %v213
  %v226 = vmul.f32 %v204, %v213
  %v227 = vmul.f32 %v205, %v213
  %v228 = vmul.f32 %v206, %v213
  %v229 = vmul.f32 %v207, %v213
  %v230 = vld [vmem:[%s6] sm:$0x1]
  %v232 = vlaneseq
  %v233 = vshrl.u32 %v232, 7
  %v234 = vsub.s32 0, %v233
  %v235 = vrot.slane %v230, %v234
  %v237 = vmul.f32 %v214, %v235
  %v238 = vmul.f32 %v215, %v235
  %v239 = vmul.f32 %v216, %v235
  %v240 = vmul.f32 %v217, %v235
  %v241 = vmul.f32 %v218, %v235
  %v242 = vmul.f32 %v219, %v235
  %v243 = vmul.f32 %v220, %v235
  %v244 = vmul.f32 %v221, %v235
  %v245 = vmul.f32 %v222, %v235
  %v246 = vmul.f32 %v223, %v235
  %v247 = vmul.f32 %v224, %v235
  %v248 = vmul.f32 %v225, %v235
  %v249 = vmul.f32 %v226, %v235
  %v250 = vmul.f32 %v227, %v235
  %v251 = vmul.f32 %v228, %v235
  %v252 = vmul.f32 %v229, %v235
  %v253 = vld [vmem:[%s7] sm:$0x1]
  %v255 = vlaneseq
  %v256 = vshrl.u32 %v255, 7
  %v257 = vsub.s32 0, %v256
  %v258 = vrot.slane %v253, %v257
  %v260 = vadd.f32 %v237, %v258
  %v261 = vadd.f32 %v238, %v258
  %v262 = vadd.f32 %v239, %v258
  %v263 = vadd.f32 %v240, %v258
  %v264 = vadd.f32 %v241, %v258
  %v265 = vadd.f32 %v242, %v258
  %v266 = vadd.f32 %v243, %v258
  %v267 = vadd.f32 %v244, %v258
  %v268 = vadd.f32 %v245, %v258
  %v269 = vadd.f32 %v246, %v258
  %v270 = vadd.f32 %v247, %v258
  %v271 = vadd.f32 %v248, %v258
  %v272 = vadd.f32 %v249, %v258
  %v273 = vadd.f32 %v250, %v258
  %v274 = vadd.f32 %v251, %v258
  %v275 = vadd.f32 %v252, %v258
  %v276 = vadd.f32 %v145, %v260
  %v277 = vadd.f32 %v146, %v261
  %v278 = vadd.f32 %v147, %v262
  %v279 = vadd.f32 %v148, %v263
  %v280 = vadd.f32 %v149, %v264
  %v281 = vadd.f32 %v150, %v265
  %v282 = vadd.f32 %v151, %v266
  %v283 = vadd.f32 %v152, %v267
  %v284 = vadd.f32 %v153, %v268
  %v285 = vadd.f32 %v154, %v269
  %v286 = vadd.f32 %v155, %v270
  %v287 = vadd.f32 %v156, %v271
  %v288 = vadd.f32 %v157, %v272
  %v289 = vadd.f32 %v158, %v273
  %v290 = vadd.f32 %v159, %v274
  %v291 = vadd.f32 %v160, %v275
  %v292 = vmax.f32 %v276, 0.0
  %v293 = vmax.f32 %v277, 0.0
  %v294 = vmax.f32 %v278, 0.0
  %v295 = vmax.f32 %v279, 0.0
  %v296 = vmax.f32 %v280, 0.0
  %v297 = vmax.f32 %v281, 0.0
  %v298 = vmax.f32 %v282, 0.0
  %v299 = vmax.f32 %v283, 0.0
  %v300 = vmax.f32 %v284, 0.0
  %v301 = vmax.f32 %v285, 0.0
  %v302 = vmax.f32 %v286, 0.0
  %v303 = vmax.f32 %v287, 0.0
  %v304 = vmax.f32 %v288, 0.0
  %v305 = vmax.f32 %v289, 0.0
  %v306 = vmax.f32 %v290, 0.0
  %v307 = vmax.f32 %v291, 0.0
  %308 = vst [vmem:[%s8] sm:$0xff] %v292
  %309 = vst [vmem:[%s8 + $0x8] sm:$0xff] %v293
  %310 = vst [vmem:[%s8 + $0x10] sm:$0xff] %v294
  %311 = vst [vmem:[%s8 + $0x18] sm:$0xff] %v295
  %312 = vst [vmem:[%s8 + $0x20] sm:$0xff] %v296
  %313 = vst [vmem:[%s8 + $0x28] sm:$0xff] %v297
  %314 = vst [vmem:[%s8 + $0x30] sm:$0xff] %v298
  %315 = vst [vmem:[%s8 + $0x38] sm:$0xff] %v299
  %316 = vst [vmem:[%s8 + $0x40] sm:$0xff] %v300
  %317 = vst [vmem:[%s8 + $0x48] sm:$0xff] %v301
  %318 = vst [vmem:[%s8 + $0x50] sm:$0xff] %v302
  %319 = vst [vmem:[%s8 + $0x58] sm:$0xff] %v303
  %320 = vst [vmem:[%s8 + $0x60] sm:$0xff] %v304
  %321 = vst [vmem:[%s8 + $0x68] sm:$0xff] %v305
  %322 = vst [vmem:[%s8 + $0x70] sm:$0xff] %v306
  %323 = vst [vmem:[%s8 + $0x78] sm:$0xff] %v307
  // Predicated region
  $region34: #{_lambda_.7} parent=0 // pred_check
    _
  $region35: #{_lambda_.7} parent=0 // pred_check_branch
    %325 = sbr.rel (0) target = $region37
  $region36: #{_lambda_.7} parent=0 // pred_region
    _
  $region37: #{_lambda_.7} parent=0 // pred_fallthru
    _
  // Predicated region
  $region38: #{_lambda_.7} parent=0 // pred_check
    _
  $region39: #{_lambda_.7} parent=0 // pred_check_branch
    %327 = sbr.rel (0) target = $region41
  $region40: #{_lambda_.7} parent=0 // pred_region
    _
  $region41: #{_lambda_.7} parent=0 // pred_fallthru
    _

// kernel: _lambda_.4
$region0: #{_lambda_.4}
  #allocation0 [shape = 'u32[]', space=smem, size = 0x4, offset = 0x4, fixed_abs, tag = 'smem constant byte address 0x4 - core index']
  #allocation1 [shape = 'u32[144,128]{1,0:T(1,128)}', space=vmem, size = 0x12000, scoped, tag = 'internal scratch']
  %s0 = inlined_call_operand.vmem [shape: f32[8,9,9,128], index: 0, kind: input, shape index: {}]
  %s1 = inlined_call_operand.vmem [shape: bf16[9,128,128], index: 1, kind: input, shape index: {}]
  %s2 = inlined_call_operand.vmem [shape: bf16[128,128], index: 2, kind: input, shape index: {}]
  %s3 = inlined_call_operand.vmem [shape: f32[128,128], index: 3, kind: output, shape index: {0}]
  %s4 = inlined_call_operand.vmem [shape: f32[2,2,128], index: 4, kind: output, shape index: {1}]
  %s5 = inlined_call_operand.vmem [shape: f32[128,128], index: 5, kind: output, shape index: {2}]
  %s6 = inlined_call_operand.vmem [shape: f32[2,2,128], index: 6, kind: output, shape index: {3}]
  %7 = xla_tuple %s3, %s4, %s5, %s6
  %s8 = sld [smem:[#allocation0]]
  $region69: #{_lambda_.4} parent=0
    _
  %s10 = ssub.s32 1, %s8
  %s11 = scalar_select 0, %s10, %s8
  loop: start=0, step=1, limit=4
  $region2: #{_lambda_.4} parent=0 // loop_pre_header
    _
  $region3: #{_lambda_.4} parent=0 // loop_header
    %s13 = sphi 0, %s17
    %p14 = scmp.ge.s32.totalorder %s13, 4
    %s20 = sphi 0, %s32
    %s21 = sphi 0, %s28
    %s22 = sphi 0, %s20
    %s23 = sphi 0, %s21
    %s24 = sphi 0, %s22
    %s25 = sphi 0, %s23
    %s35 = sphi 0, %s37
    %s38 = sphi 0, %s35
    %s39 = sphi 0, %s38
    %s55 = sphi 0, %s39
    %s59 = sphi 0, %s59
    %s61 = sphi 0, %s59
    %s62 = sphi 0, %s61
    %s76 = sphi 0, %s62
    %s80 = sphi 0, %s80
    %s82 = sphi 0, %s80
    %s83 = sphi 0, %s82
    %s97 = sphi 0, %s83
    %s105 = sphi 0, %s107
    %s108 = sphi 0, %s105
    %s109 = sphi 0, %s108
    %s125 = sphi 0, %s109
    %s133 = sphi 0, %s135
    %s136 = sphi 0, %s133
    %s137 = sphi 0, %s136
    %s153 = sphi 0, %s137
    %s161 = sphi 0, %s163
    %s164 = sphi 0, %s161
    %s165 = sphi 0, %s164
    %s181 = sphi 0, %s165
    %s189 = sphi 0, %s191
    %s192 = sphi 0, %s189
    %s193 = sphi 0, %s192
    %s209 = sphi 0, %s193
  $region4: #{_lambda_.4} parent=0 // loop_header_branch
    %16 = sbr.rel (%p14) target = $region8
  $region5: #{_lambda_.4} parent=0 // loop_body
    %s18 = ssub.s32 %s13, 1
    %s19 = ssub.s32 %s13, 2
    %s26 = sadd.s32 1, %s21
    %p27 = scmp.ge.s32.totalorder %s26, 1
    %s28 = scalar_select %p27, 0, %s26
    %s29 = sadd.s32 1, %s20
    %s30 = scalar_select %p27, %s29, %s20
    %p31 = scmp.ge.s32.totalorder %s30, 2
    %s32 = scalar_select %p31, 0, %s30
    %s33 = ssub.s32 %s20, %s32
    %p34 = scmp.eq.s32.totalorder %s33, 0
    %s36 = sadd.s32 %s35, 1
    %s37 = scalar_select %p34, %s35, %s36
    %p40 = pneg %p34
    %p41 = scmp.eq.s32.totalorder %s13, 1
    %p42 = por %p40, %p41
    %p43 = scmp.ne.s32.totalorder %s35, %s38
    %p44 = scmp.eq.s32.totalorder %s13, 0
    %p45 = por %p43, %p44
    %p46 = scmp.ne.s32.totalorder %s35, %s38
    %p47 = scmp.eq.s32.totalorder %s18, 1
    %p48 = por %p46, %p47
    %p49 = scmp.ne.s32.totalorder %s38, %s39
    %p50 = scmp.eq.s32.totalorder %s18, 0
    %p51 = por %p49, %p50
    %p52 = scmp.ne.s32.totalorder %s38, %s39
    %p53 = scmp.eq.s32.totalorder %s19, 1
    %p54 = por %p52, %p53
    %p56 = scmp.ne.s32.totalorder %s39, %s55
    %p57 = scmp.eq.s32.totalorder %s19, 0
    %p58 = por %p56, %p57
    %s60 = sadd.s32 %s59, 1
    %p63 = scmp.eq.s32.totalorder %s13, 1
    %p64 = scmp.ne.s32.totalorder %s59, %s61
    %p65 = scmp.eq.s32.totalorder %s13, 0
    %p66 = por %p64, %p65
    %p67 = scmp.ne.s32.totalorder %s59, %s61
    %p68 = scmp.eq.s32.totalorder %s18, 1
    %p69 = por %p67, %p68
    %p70 = scmp.ne.s32.totalorder %s61, %s62
    %p71 = scmp.eq.s32.totalorder %s18, 0
    %p72 = por %p70, %p71
    %p73 = scmp.ne.s32.totalorder %s61, %s62
    %p74 = scmp.eq.s32.totalorder %s19, 1
    %p75 = por %p73, %p74
    %p77 = scmp.ne.s32.totalorder %s62, %s76
    %p78 = scmp.eq.s32.totalorder %s19, 0
    %p79 = por %p77, %p78
    %s81 = sadd.s32 %s80, 1
    %p84 = scmp.eq.s32.totalorder %s13, 1
    %p85 = scmp.ne.s32.totalorder %s80, %s82
    %p86 = scmp.eq.s32.totalorder %s13, 0
    %p87 = por %p85, %p86
    %p88 = scmp.ne.s32.totalorder %s80, %s82
    %p89 = scmp.eq.s32.totalorder %s18, 1
    %p90 = por %p88, %p89
    %p91 = scmp.ne.s32.totalorder %s82, %s83
    %p92 = scmp.eq.s32.totalorder %s18, 0
    %p93 = por %p91, %p92
    %p94 = scmp.ne.s32.totalorder %s82, %s83
    %p95 = scmp.eq.s32.totalorder %s19, 1
    %p96 = por %p94, %p95
    %p98 = scmp.ne.s32.totalorder %s83, %s97
    %p99 = scmp.eq.s32.totalorder %s19, 0
    %p100 = por %p98, %p99
    %s101 = sadd.s32 %s20, %s21
    %s102 = sadd.s32 %s32, %s28
    %s103 = ssub.s32 %s101, %s102
    %p104 = scmp.eq.s32.totalorder %s103, 0
    %s106 = sadd.s32 %s105, 1
    %s107 = scalar_select %p104, %s105, %s106
    %p110 = pneg %p104
    %p111 = scmp.eq.s32.totalorder %s13, 1
    %p112 = por %p110, %p111
    %p113 = scmp.ne.s32.totalorder %s105, %s108
    %p114 = scmp.eq.s32.totalorder %s13, 0
    %p115 = por %p113, %p114
    %p116 = scmp.ne.s32.totalorder %s105, %s108
    %p117 = scmp.eq.s32.totalorder %s18, 1
    %p118 = por %p116, %p117
    %p119 = scmp.ne.s32.totalorder %s108, %s109
    %p120 = scmp.eq.s32.totalorder %s18, 0
    %p121 = por %p119, %p120
    %p122 = scmp.ne.s32.totalorder %s108, %s109
    %p123 = scmp.eq.s32.totalorder %s19, 1
    %p124 = por %p122, %p123
    %p126 = scmp.ne.s32.totalorder %s109, %s125
    %p127 = scmp.eq.s32.totalorder %s19, 0
    %p128 = por %p126, %p127
    %s129 = sadd.s32 %s20, %s21
    %s130 = sadd.s32 %s32, %s28
    %s131 = ssub.s32 %s129, %s130
    %p132 = scmp.eq.s32.totalorder %s131, 0
    %s134 = sadd.s32 %s133, 1
    %s135 = scalar_select %p132, %s133, %s134
    %p138 = pneg %p132
    %p139 = scmp.eq.s32.totalorder %s13, 1
    %p140 = por %p138, %p139
    %p141 = scmp.ne.s32.totalorder %s133, %s136
    %p142 = scmp.eq.s32.totalorder %s13, 0
    %p143 = por %p141, %p142
    %p144 = scmp.ne.s32.totalorder %s133, %s136
    %p145 = scmp.eq.s32.totalorder %s18, 1
    %p146 = por %p144, %p145
    %p147 = scmp.ne.s32.totalorder %s136, %s137
    %p148 = scmp.eq.s32.totalorder %s18, 0
    %p149 = por %p147, %p148
    %p150 = scmp.ne.s32.totalorder %s136, %s137
    %p151 = scmp.eq.s32.totalorder %s19, 1
    %p152 = por %p150, %p151
    %p154 = scmp.ne.s32.totalorder %s137, %s153
    %p155 = scmp.eq.s32.totalorder %s19, 0
    %p156 = por %p154, %p155
    %s157 = sadd.s32 %s20, %s21
    %s158 = sadd.s32 %s32, %s28
    %s159 = ssub.s32 %s157, %s158
    %p160 = scmp.eq.s32.totalorder %s159, 0
    %s162 = sadd.s32 %s161, 1
    %s163 = scalar_select %p160, %s161, %s162
    %p166 = pneg %p160
    %p167 = scmp.eq.s32.totalorder %s13, 1
    %p168 = por %p166, %p167
    %p169 = scmp.ne.s32.totalorder %s161, %s164
    %p170 = scmp.eq.s32.totalorder %s13, 0
    %p171 = por %p169, %p170
    %p172 = scmp.ne.s32.totalorder %s161, %s164
    %p173 = scmp.eq.s32.totalorder %s18, 1
    %p174 = por %p172, %p173
    %p175 = scmp.ne.s32.totalorder %s164, %s165
    %p176 = scmp.eq.s32.totalorder %s18, 0
    %p177 = por %p175, %p176
    %p178 = scmp.ne.s32.totalorder %s164, %s165
    %p179 = scmp.eq.s32.totalorder %s19, 1
    %p180 = por %p178, %p179
    %p182 = scmp.ne.s32.totalorder %s165, %s181
    %p183 = scmp.eq.s32.totalorder %s19, 0
    %p184 = por %p182, %p183
    %s185 = sadd.s32 %s20, %s21
    %s186 = sadd.s32 %s32, %s28
    %s187 = ssub.s32 %s185, %s186
    %p188 = scmp.eq.s32.totalorder %s187, 0
    %s190 = sadd.s32 %s189, 1
    %s191 = scalar_select %p188, %s189, %s190
    %p194 = pneg %p188
    %p195 = scmp.eq.s32.totalorder %s13, 1
    %p196 = por %p194, %p195
    %p197 = scmp.ne.s32.totalorder %s189, %s192
    %p198 = scmp.eq.s32.totalorder %s13, 0
    %p199 = por %p197, %p198
    %p200 = scmp.ne.s32.totalorder %s189, %s192
    %p201 = scmp.eq.s32.totalorder %s18, 1
    %p202 = por %p200, %p201
    %p203 = scmp.ne.s32.totalorder %s192, %s193
    %p204 = scmp.eq.s32.totalorder %s18, 0
    %p205 = por %p203, %p204
    %p206 = scmp.ne.s32.totalorder %s192, %s193
    %p207 = scmp.eq.s32.totalorder %s19, 1
    %p208 = por %p206, %p207
    %p210 = scmp.ne.s32.totalorder %s193, %s209
    %p211 = scmp.eq.s32.totalorder %s19, 0
    %p212 = por %p210, %p211
    %p213 = scmp.le.s32.totalorder 1, %s13
    %p214 = scmp.lt.s32.totalorder %s13, 3
    %p215 = pnand %p213, %p214
    %p216 = pneg %p215
    // Predicated region
    $region9: #{_lambda_.4} parent=5 // pred_check
      _
    $region10: #{_lambda_.4} parent=5 // pred_check_branch
      %218 = sbr.rel (%p215) target = $region12
    $region11: #{_lambda_.4} parent=5 // pred_region
      %s219 = ssub.s32 %s13, 1
      // Predicated region
      $region13: #{_lambda_.4} parent=11 // pred_check
        %p220 = pneg %p72
      $region14: #{_lambda_.4} parent=11 // pred_check_branch
        %222 = sbr.rel (%p220) target = $region16
      $region15: #{_lambda_.4} parent=11 // pred_region
        _
      $region16: #{_lambda_.4} parent=11 // pred_fallthru
        _
      // Predicated region
      $region17: #{_lambda_.4} parent=11 // pred_check
        %p223 = pneg %p93
      $region18: #{_lambda_.4} parent=11 // pred_check_branch
        %225 = sbr.rel (%p223) target = $region20
      $region19: #{_lambda_.4} parent=11 // pred_region
        _
      $region20: #{_lambda_.4} parent=11 // pred_fallthru
        _
    $region12: #{_lambda_.4} parent=5 // pred_fallthru
      _
    %p226 = scmp.lt.s32.totalorder %s13, 2
    // Predicated region
    $region21: #{_lambda_.4} parent=5 // pred_check
      %p227 = pneg %p226
    $region22: #{_lambda_.4} parent=5 // pred_check_branch
      %229 = sbr.rel (%p227) target = $region24
    $region23: #{_lambda_.4} parent=5 // pred_region
      // Predicated region
      $region25: #{_lambda_.4} parent=23 // pred_check
        %p230 = pneg %p45
      $region26: #{_lambda_.4} parent=23 // pred_check_branch
        %232 = sbr.rel (%p230) target = $region28
      $region27: #{_lambda_.4} parent=23 // pred_region
        %s233 = smul.u32 4, %s20
        %p234 = scmp.lt.s32.totalorder %s233, 7
        %s235 = scalar_select %p234, %s233, 7
        %s236 = smul.addr %s235, 18
        %s237 = smul.addr %s236, 8
        %s238 = scalar_lea.vmem %s0, %s237
        %s239 = smul.u32 4, %s20
      $region28: #{_lambda_.4} parent=23 // pred_fallthru
        _
    $region24: #{_lambda_.4} parent=5 // pred_fallthru
      _
    %p240 = scmp.le.s32.totalorder 1, %s13
    %p241 = scmp.lt.s32.totalorder %s13, 3
    %p242 = pnand %p240, %p241
    %p243 = pneg %p242
    // Predicated region
    $region29: #{_lambda_.4} parent=5 // pred_check
      _
    $region30: #{_lambda_.4} parent=5 // pred_check_branch
      %245 = sbr.rel (%p242) target = $region32
    $region31: #{_lambda_.4} parent=5 // pred_region
      %s246 = ssub.s32 %s13, 1
      %s247 = smul.u32 4, %s22
      %p248 = scmp.lt.s32.totalorder %s247, 7
      %s249 = scalar_select %p248, %s247, 7
      %s250 = smul.addr %s249, 18
      %s251 = smul.addr %s250, 8
      %s252 = scalar_lea.vmem %s0, %s251
      %p253 = pneg %p51
      %p254 = pneg %p48
      %p255 = pneg %p72
      %p256 = pneg %p69
      %p257 = pneg %p93
      %p258 = pneg %p90
      %p259 = pneg %p121
      %p260 = pneg %p118
      %s261 = sadd.s32 %s22, %s23
      %s262 = smul.u32 8, %s261
      %p263 = scmp.lt.s32.totalorder %s262, 15
      %s264 = scalar_select %p263, %s262, 15
      %s265 = smul.addr %s264, 8
      %s266 = scalar_lea.vmem %s3, %s265
      %p267 = pneg %p149
      %p268 = pneg %p146
      %s269 = sadd.s32 %s22, %s23
      %p270 = scmp.lt.s32.totalorder %s269, 1
      %s271 = scalar_select %p270, %s269, 1
      %s272 = smul.addr %s271, 2
      %s273 = scalar_lea.vmem %s4, %s272
      %p274 = pneg %p177
      %p275 = pneg %p174
      %s276 = sadd.s32 %s22, %s23
      %s277 = smul.u32 8, %s276
      %p278 = scmp.lt.s32.totalorder %s277, 15
      %s279 = scalar_select %p278, %s277, 15
      %s280 = smul.addr %s279, 8
      %s281 = scalar_lea.vmem %s5, %s280
      %p282 = pneg %p205
      %p283 = pneg %p202
      %s284 = sadd.s32 %s22, %s23
      %p285 = scmp.lt.s32.totalorder %s284, 1
      %s286 = scalar_select %p285, %s284, 1
      %s287 = smul.addr %s286, 2
      %s288 = scalar_lea.vmem %s6, %s287
      %s289 = smul.u32 4, %s22
      %p290 = scmp.lt.s32.totalorder %s289, 7
      %s291 = scalar_select %p290, %s289, 7
      %s292 = smul.addr %s291, 18
      %s293 = smul.addr %s292, 8
      %s294 = scalar_lea.vmem %s0, %s293
      %s295 = smul.u32 4, %s22
      %s296 = sadd.s32 %s22, %s23
      %s297 = smul.u32 8, %s296
      %p298 = scmp.lt.s32.totalorder %s297, 15
      %s299 = scalar_select %p298, %s297, 15
      %s300 = smul.addr %s299, 8
      %s301 = scalar_lea.vmem %s3, %s300
      %s302 = sadd.s32 %s22, %s23
      %s303 = smul.u32 8, %s302
      %s304 = sadd.s32 %s22, %s23
      %p305 = scmp.lt.s32.totalorder %s304, 1
      %s306 = scalar_select %p305, %s304, 1
      %s307 = smul.addr %s306, 2
      %s308 = scalar_lea.vmem %s4, %s307
      %s309 = sadd.s32 %s22, %s23
      %s310 = sadd.s32 %s22, %s23
      %s311 = smul.u32 8, %s310
      %p312 = scmp.lt.s32.totalorder %s311, 15
      %s313 = scalar_select %p312, %s311, 15
      %s314 = smul.addr %s313, 8
      %s315 = scalar_lea.vmem %s5, %s314
      %s316 = sadd.s32 %s22, %s23
      %s317 = smul.u32 8, %s316
      %s318 = sadd.s32 %s22, %s23
      %p319 = scmp.lt.s32.totalorder %s318, 1
      %s320 = scalar_select %p319, %s318, 1
      %s321 = smul.addr %s320, 2
      %s322 = scalar_lea.vmem %s6, %s321
      %s323 = sadd.s32 %s22, %s23
      %s325 = smul.u32 %s23, 8
      %s326 = smul.u32 %s325, 16
      %s327 = scalar_lea.vmem %s294, %s326
      %v328 = vld [vmem:[%s327] sm:$0xff]
      %v329 = vld [vmem:[%s327 + $0x10] sm:$0xff]
      %v330 = vld [vmem:[%s327 + $0x20] sm:$0xff]
      %v331 = vld [vmem:[%s327 + $0x30] sm:$0xff]
      %v332 = vld [vmem:[%s327 + $0x40] sm:$0xff]
      %v333 = vld [vmem:[%s327 + $0x50] sm:$0xff]
      %v334 = vld [vmem:[%s327 + $0x60] sm:$0xff]
      %v335 = vld [vmem:[%s327 + $0x70] sm:$0xff]
      %v336 = vpack.c.bf16 %v329, %v328
      %v337 = vpack.c.bf16 %v331, %v330
      %v338 = vpack.c.bf16 %v333, %v332
      %v339 = vpack.c.bf16 %v335, %v334
      %v340 = vld [vmem:[%s1] sm:$0xf]
      %v341 = vld [vmem:[%s1 + $0x4] sm:$0xf]
      %v342 = vld [vmem:[%s1 + $0x8] sm:$0xf]
      %v343 = vld [vmem:[%s1 + $0xc] sm:$0xf]
      %v344 = vld [vmem:[%s1 + $0x10] sm:$0xf]
      %v345 = vld [vmem:[%s1 + $0x14] sm:$0xf]
      %v346 = vld [vmem:[%s1 + $0x18] sm:$0xf]
      %v347 = vld [vmem:[%s1 + $0x1c] sm:$0xf]
      %v348 = vld [vmem:[%s1 + $0x20] sm:$0xf]
      %v349 = vld [vmem:[%s1 + $0x24] sm:$0xf]
      %v350 = vld [vmem:[%s1 + $0x28] sm:$0xf]
      %v351 = vld [vmem:[%s1 + $0x2c] sm:$0xf]
      %v352 = vld [vmem:[%s1 + $0x30] sm:$0xf]
      %v353 = vld [vmem:[%s1 + $0x34] sm:$0xf]
      %v354 = vld [vmem:[%s1 + $0x38] sm:$0xf]
      %v355 = vld [vmem:[%s1 + $0x3c] sm:$0xf]
      %s356 = sadd.s32 %s326, 144
      %s357 = scalar_lea.vmem %s294, %s356
      %v358 = vld [vmem:[%s357] sm:$0xff]
      %v359 = vld [vmem:[%s357 + $0x10] sm:$0xff]
      %v360 = vld [vmem:[%s357 + $0x20] sm:$0xff]
      %v361 = vld [vmem:[%s357 + $0x30] sm:$0xff]
      %v362 = vld [vmem:[%s357 + $0x40] sm:$0xff]
      %v363 = vld [vmem:[%s357 + $0x50] sm:$0xff]
      %v364 = vld [vmem:[%s357 + $0x60] sm:$0xff]
      %v365 = vld [vmem:[%s357 + $0x70] sm:$0xff]
      %v366 = vpack.c.bf16 %v359, %v358
      %v367 = vpack.c.bf16 %v361, %v360
      %v368 = vpack.c.bf16 %v363, %v362
      %v369 = vpack.c.bf16 %v365, %v364
      %s370 = scalar_lea.vmem %s1, 64
      %v371 = vld [vmem:[%s370] sm:$0xf]
      %v372 = vld [vmem:[%s370 + $0x4] sm:$0xf]
      %v373 = vld [vmem:[%s370 + $0x8] sm:$0xf]
      %v374 = vld [vmem:[%s370 + $0xc] sm:$0xf]
      %v375 = vld [vmem:[%s370 + $0x10] sm:$0xf]
      %v376 = vld [vmem:[%s370 + $0x14] sm:$0xf]
      %v377 = vld [vmem:[%s370 + $0x18] sm:$0xf]
      %v378 = vld [vmem:[%s370 + $0x1c] sm:$0xf]
      %v379 = vld [vmem:[%s370 + $0x20] sm:$0xf]
      %v380 = vld [vmem:[%s370 + $0x24] sm:$0xf]
      %v381 = vld [vmem:[%s370 + $0x28] sm:$0xf]
      %v382 = vld [vmem:[%s370 + $0x2c] sm:$0xf]
      %v383 = vld [vmem:[%s370 + $0x30] sm:$0xf]
      %v384 = vld [vmem:[%s370 + $0x34] sm:$0xf]
      %v385 = vld [vmem:[%s370 + $0x38] sm:$0xf]
      %v386 = vld [vmem:[%s370 + $0x3c] sm:$0xf]
      %v403 = vunpack.c.l.b16 %v371
      %v404 = vunpack.c.l.b16 %v372
      %v405 = vunpack.c.l.b16 %v373
      %v406 = vunpack.c.l.b16 %v374
      %v407 = vunpack.c.l.b16 %v375
      %v408 = vunpack.c.l.b16 %v376
      %v409 = vunpack.c.l.b16 %v377
      %v410 = vunpack.c.l.b16 %v378
      %v411 = vunpack.c.l.b16 %v379
      %v412 = vunpack.c.l.b16 %v380
      %v413 = vunpack.c.l.b16 %v381
      %v414 = vunpack.c.l.b16 %v382
      %v415 = vunpack.c.l.b16 %v383
      %v416 = vunpack.c.l.b16 %v384
      %v417 = vunpack.c.l.b16 %v385
      %v418 = vunpack.c.l.b16 %v386
      %v419 = vpack.c.b16 %v404, %v403
      %v420 = vpack.c.b16 %v406, %v405
      %v421 = vpack.c.b16 %v408, %v407
      %v422 = vpack.c.b16 %v410, %v409
      %v423 = vpack.c.b16 %v412, %v411
      %v424 = vpack.c.b16 %v414, %v413
      %v425 = vpack.c.b16 %v416, %v415
      %v426 = vpack.c.b16 %v418, %v417
      %435 = vmatprep.subr.bf16.mxu0 0
      %436 = vmatpush1.bf16.msra.mxu0 %v426
      %437 = vmatprep.subr.bf16.mxu0 0
      %438 = vmatpush1.bf16.msra.mxu0 %v425
      %439 = vmatprep.subr.bf16.mxu0 0
      %440 = vmatpush1.bf16.msra.mxu0 %v424
      %441 = vmatprep.subr.bf16.mxu0 0
      %442 = vmatpush1.bf16.msra.mxu0 %v423
      %443 = vmatprep.subr.bf16.mxu0 0
      %444 = vmatpush1.bf16.msra.mxu0 %v422
      %445 = vmatprep.subr.bf16.mxu0 0
      %446 = vmatpush1.bf16.msra.mxu0 %v421
      %447 = vmatprep.subr.bf16.mxu0 0
      %448 = vmatpush1.bf16.msra.mxu0 %v420
      %449 = vmatprep.subr.bf16.mxu0 0
      %450 = vmatpush1.bf16.msra.mxu0 %v419
      %451 = vmatprep.subr.bf16.mxu0 0
      %452 = vmatpush2.bf16.msra.mxu0 0
      %453 = vmatprep.subr.bf16.mxu0 0
      %454 = vmatpush2.bf16.msra.mxu0 0
      %455 = vmatprep.subr.bf16.mxu0 0
      %456 = vmatpush2.bf16.msra.mxu0 0
      %457 = vmatprep.subr.bf16.mxu0 0
      %458 = vmatpush2.bf16.msra.mxu0 0
      %459 = vmatprep.subr.bf16.mxu0 0
      %460 = vmatpush2.bf16.msra.mxu0 0
      %461 = vmatprep.subr.bf16.mxu0 0
      %462 = vmatpush2.bf16.msra.mxu0 0
      %463 = vmatprep.subr.bf16.mxu0 0
      %464 = vmatpush2.bf16.msra.mxu0 0
      %465 = vmatprep.subr.bf16.mxu0 0
      %466 = vmatpush2.bf16.msra.mxu0 0
      %467 = vmatprep.mubr.bf16.mxu0 0
      %468 = vmatmul.mubr.bf16.gmra.mxu0 %v366
      %v469 = vpop.f32.mrf.mxu0
      %v470 = vadd.f32 0.0, %v469
      %v471 = vpop.f32.mrf.mxu0
      %v472 = vpop.f32.mrf.mxu0
      %v473 = vadd.f32 0.0, %v472
      %v474 = vpop.f32.mrf.mxu0
      %475 = vmatprep.mubr.bf16.mxu0 0
      %476 = vmatmul.mubr.bf16.gmra.mxu0 %v367
      %v477 = vpop.f32.mrf.mxu0
      %v478 = vadd.f32 0.0, %v477
      %v479 = vpop.f32.mrf.mxu0
      %v480 = vpop.f32.mrf.mxu0
      %v481 = vadd.f32 0.0, %v480
      %v482 = vpop.f32.mrf.mxu0
      %483 = vmatprep.mubr.bf16.mxu0 0
      %484 = vmatmul.mubr.bf16.gmra.mxu0 %v368
      %v485 = vpop.f32.mrf.mxu0
      %v486 = vadd.f32 0.0, %v485
      %v487 = vpop.f32.mrf.mxu0
      %v488 = vpop.f32.mrf.mxu0
      %v489 = vadd.f32 0.0, %v488
      %v490 = vpop.f32.mrf.mxu0
      %491 = vmatprep.mubr.bf16.mxu0 0
      %492 = vmatmul.mubr.bf16.gmra.mxu0 %v369
      %v493 = vpop.f32.mrf.mxu0
      %v494 = vadd.f32 0.0, %v493
      %v495 = vpop.f32.mrf.mxu0
      %v496 = vpop.f32.mrf.mxu0
      %v497 = vadd.f32 0.0, %v496
      %v498 = vpop.f32.mrf.mxu0
      %499 = vdwg.mxu0
      %v516 = vunpack.c.l.b16 %v340
      %v517 = vunpack.c.l.b16 %v341
      %v518 = vunpack.c.l.b16 %v342
      %v519 = vunpack.c.l.b16 %v343
      %v520 = vunpack.c.l.b16 %v344
      %v521 = vunpack.c.l.b16 %v345
      %v522 = vunpack.c.l.b16 %v346
      %v523 = vunpack.c.l.b16 %v347
      %v524 = vunpack.c.l.b16 %v348
      %v525 = vunpack.c.l.b16 %v349
      %v526 = vunpack.c.l.b16 %v350
      %v527 = vunpack.c.l.b16 %v351
      %v528 = vunpack.c.l.b16 %v352
      %v529 = vunpack.c.l.b16 %v353
      %v530 = vunpack.c.l.b16 %v354
      %v531 = vunpack.c.l.b16 %v355
      %v532 = vpack.c.b16 %v517, %v516
      %v533 = vpack.c.b16 %v519, %v518
      %v534 = vpack.c.b16 %v521, %v520
      %v535 = vpack.c.b16 %v523, %v522
      %v536 = vpack.c.b16 %v525, %v524
      %v537 = vpack.c.b16 %v527, %v526
      %v538 = vpack.c.b16 %v529, %v528
      %v539 = vpack.c.b16 %v531, %v530
      %548 = vmatprep.subr.bf16.mxu0 0
      %549 = vmatpush1.bf16.msra.mxu0 %v539
      %550 = vmatprep.subr.bf16.mxu0 0
      %551 = vmatpush1.bf16.msra.mxu0 %v538
      %552 = vmatprep.subr.bf16.mxu0 0
      %553 = vmatpush1.bf16.msra.mxu0 %v537
      %554 = vmatprep.subr.bf16.mxu0 0
      %555 = vmatpush1.bf16.msra.mxu0 %v536
      %556 = vmatprep.subr.bf16.mxu0 0
      %557 = vmatpush1.bf16.msra.mxu0 %v535
      %558 = vmatprep.subr.bf16.mxu0 0
      %559 = vmatpush1.bf16.msra.mxu0 %v534
      %560 = vmatprep.subr.bf16.mxu0 0
      %561 = vmatpush1.bf16.msra.mxu0 %v533
      %562 = vmatprep.subr.bf16.mxu0 0
      %563 = vmatpush1.bf16.msra.mxu0 %v532
      %564 = vmatprep.subr.bf16.mxu0 0
      %565 = vmatpush2.bf16.msra.mxu0 0
      %566 = vmatprep.subr.bf16.mxu0 0
      %567 = vmatpush2.bf16.msra.mxu0 0
      %568 = vmatprep.subr.bf16.mxu0 0
      %569 = vmatpush2.bf16.msra.mxu0 0
      %570 = vmatprep.subr.bf16.mxu0 0
      %571 = vmatpush2.bf16.msra.mxu0 0
      %572 = vmatprep.subr.bf16.mxu0 0
      %573 = vmatpush2.bf16.msra.mxu0 0
      %574 = vmatprep.subr.bf16.mxu0 0
      %575 = vmatpush2.bf16.msra.mxu0 0
      %576 = vmatprep.subr.bf16.mxu0 0
      %577 = vmatpush2.bf16.msra.mxu0 0
      %578 = vmatprep.subr.bf16.mxu0 0
      %579 = vmatpush2.bf16.msra.mxu0 0
      %580 = vmatprep.mubr.bf16.mxu0 0
      %581 = vmatmul.mubr.bf16.gmra.mxu0 %v336
      %v582 = vpop.f32.mrf.mxu0
      %v583 = vadd.f32 %v470, %v582
      %v584 = vpop.f32.mrf.mxu0
      %v585 = vpop.f32.mrf.mxu0
      %v586 = vadd.f32 %v473, %v585
      %v587 = vpop.f32.mrf.mxu0
      %588 = vmatprep.mubr.bf16.mxu0 0
      %589 = vmatmul.mubr.bf16.gmra.mxu0 %v337
      %v590 = vpop.f32.mrf.mxu0
      %v591 = vadd.f32 %v478, %v590
      %v592 = vpop.f32.mrf.mxu0
      %v593 = vpop.f32.mrf.mxu0
      %v594 = vadd.f32 %v481, %v593
      %v595 = vpop.f32.mrf.mxu0
      %596 = vmatprep.mubr.bf16.mxu0 0
      %597 = vmatmul.mubr.bf16.gmra.mxu0 %v338
      %v598 = vpop.f32.mrf.mxu0
      %v599 = vadd.f32 %v486, %v598
      %v600 = vpop.f32.mrf.mxu0
      %v601 = vpop.f32.mrf.mxu0
      %v602 = vadd.f32 %v489, %v601
      %v603 = vpop.f32.mrf.mxu0
      %604 = vmatprep.mubr.bf16.mxu0 0
      %605 = vmatmul.mubr.bf16.gmra.mxu0 %v339
      %v606 = vpop.f32.mrf.mxu0
      %v607 = vadd.f32 %v494, %v606
      %v608 = vpop.f32.mrf.mxu0
      %v609 = vpop.f32.mrf.mxu0
      %v610 = vadd.f32 %v497, %v609
      %v611 = vpop.f32.mrf.mxu0
      %612 = vdwg.mxu0
      %v613 = vld [vmem:[%s327 + $0x1] sm:$0xff]
      %v614 = vld [vmem:[%s327 + $0x11] sm:$0xff]
      %v615 = vld [vmem:[%s327 + $0x21] sm:$0xff]
      %v616 = vld [vmem:[%s327 + $0x31] sm:$0xff]
      %v617 = vld [vmem:[%s327 + $0x41] sm:$0xff]
      %v618 = vld [vmem:[%s327 + $0x51] sm:$0xff]
      %v619 = vld [vmem:[%s327 + $0x61] sm:$0xff]
      %v620 = vld [vmem:[%s327 + $0x71] sm:$0xff]
      %v621 = vpack.c.bf16 %v614, %v613
      %v622 = vpack.c.bf16 %v616, %v615
      %v623 = vpack.c.bf16 %v618, %v617
      %v624 = vpack.c.bf16 %v620, %v619
      %s625 = scalar_lea.vmem %s1, 128
      %v626 = vld [vmem:[%s625] sm:$0xf]
      %v627 = vld [vmem:[%s625 + $0x4] sm:$0xf]
      %v628 = vld [vmem:[%s625 + $0x8] sm:$0xf]
      %v629 = vld [vmem:[%s625 + $0xc] sm:$0xf]
      %v630 = vld [vmem:[%s625 + $0x10] sm:$0xf]
      %v631 = vld [vmem:[%s625 + $0x14] sm:$0xf]
      %v632 = vld [vmem:[%s625 + $0x18] sm:$0xf]
      %v633 = vld [vmem:[%s625 + $0x1c] sm:$0xf]
      %v634 = vld [vmem:[%s625 + $0x20] sm:$0xf]
      %v635 = vld [vmem:[%s625 + $0x24] sm:$0xf]
      %v636 = vld [vmem:[%s625 + $0x28] sm:$0xf]
      %v637 = vld [vmem:[%s625 + $0x2c] sm:$0xf]
      %v638 = vld [vmem:[%s625 + $0x30] sm:$0xf]
      %v639 = vld [vmem:[%s625 + $0x34] sm:$0xf]
      %v640 = vld [vmem:[%s625 + $0x38] sm:$0xf]
      %v641 = vld [vmem:[%s625 + $0x3c] sm:$0xf]
      %v658 = vunpack.c.l.b16 %v626
      %v659 = vunpack.c.l.b16 %v627
      %v660 = vunpack.c.l.b16 %v628
      %v661 = vunpack.c.l.b16 %v629
      %v662 = vunpack.c.l.b16 %v630
      %v663 = vunpack.c.l.b16 %v631
      %v664 = vunpack.c.l.b16 %v632
      %v665 = vunpack.c.l.b16 %v633
      %v666 = vunpack.c.l.b16 %v634
      %v667 = vunpack.c.l.b16 %v635
      %v668 = vunpack.c.l.b16 %v636
      %v669 = vunpack.c.l.b16 %v637
      %v670 = vunpack.c.l.b16 %v638
      %v671 = vunpack.c.l.b16 %v639
      %v672 = vunpack.c.l.b16 %v640
      %v673 = vunpack.c.l.b16 %v641
      %v674 = vpack.c.b16 %v659, %v658
      %v675 = vpack.c.b16 %v661, %v660
      %v676 = vpack.c.b16 %v663, %v662
      %v677 = vpack.c.b16 %v665, %v664
      %v678 = vpack.c.b16 %v667, %v666
      %v679 = vpack.c.b16 %v669, %v668
      %v680 = vpack.c.b16 %v671, %v670
      %v681 = vpack.c.b16 %v673, %v672
      %690 = vmatprep.subr.bf16.mxu0 0
      %691 = vmatpush1.bf16.msra.mxu0 %v681
      %692 = vmatprep.subr.bf16.mxu0 0
      %693 = vmatpush1.bf16.msra.mxu0 %v680
      %694 = vmatprep.subr.bf16.mxu0 0
      %695 = vmatpush1.bf16.msra.mxu0 %v679
      %696 = vmatprep.subr.bf16.mxu0 0
      %697 = vmatpush1.bf16.msra.mxu0 %v678
      %698 = vmatprep.subr.bf16.mxu0 0
      %699 = vmatpush1.bf16.msra.mxu0 %v677
      %700 = vmatprep.subr.bf16.mxu0 0
      %701 = vmatpush1.bf16.msra.mxu0 %v676
      %702 = vmatprep.subr.bf16.mxu0 0
      %703 = vmatpush1.bf16.msra.mxu0 %v675
      %704 = vmatprep.subr.bf16.mxu0 0
      %705 = vmatpush1.bf16.msra.mxu0 %v674
      %706 = vmatprep.subr.bf16.mxu0 0
      %707 = vmatpush2.bf16.msra.mxu0 0
      %708 = vmatprep.subr.bf16.mxu0 0
      %709 = vmatpush2.bf16.msra.mxu0 0
      %710 = vmatprep.subr.bf16.mxu0 0
      %711 = vmatpush2.bf16.msra.mxu0 0
      %712 = vmatprep.subr.bf16.mxu0 0
      %713 = vmatpush2.bf16.msra.mxu0 0
      %714 = vmatprep.subr.bf16.mxu0 0
      %715 = vmatpush2.bf16.msra.mxu0 0
      %716 = vmatprep.subr.bf16.mxu0 0
      %717 = vmatpush2.bf16.msra.mxu0 0
      %718 = vmatprep.subr.bf16.mxu0 0
      %719 = vmatpush2.bf16.msra.mxu0 0
      %720 = vmatprep.subr.bf16.mxu0 0
      %721 = vmatpush2.bf16.msra.mxu0 0
      %722 = vmatprep.mubr.bf16.mxu0 0
      %723 = vmatmul.mubr.bf16.gmra.mxu0 %v621
      %v724 = vpop.f32.mrf.mxu0
      %v725 = vadd.f32 0.0, %v724
      %v726 = vpop.f32.mrf.mxu0
      %v727 = vpop.f32.mrf.mxu0
      %v728 = vadd.f32 0.0, %v727
      %v729 = vpop.f32.mrf.mxu0
      %730 = vmatprep.mubr.bf16.mxu0 0
      %731 = vmatmul.mubr.bf16.gmra.mxu0 %v622
      %v732 = vpop.f32.mrf.mxu0
      %v733 = vadd.f32 0.0, %v732
      %v734 = vpop.f32.mrf.mxu0
      %v735 = vpop.f32.mrf.mxu0
      %v736 = vadd.f32 0.0, %v735
      %v737 = vpop.f32.mrf.mxu0
      %738 = vmatprep.mubr.bf16.mxu0 0
      %739 = vmatmul.mubr.bf16.gmra.mxu0 %v623
      %v740 = vpop.f32.mrf.mxu0
      %v741 = vadd.f32 0.0, %v740
      %v742 = vpop.f32.mrf.mxu0
      %v743 = vpop.f32.mrf.mxu0
      %v744 = vadd.f32 0.0, %v743
      %v745 = vpop.f32.mrf.mxu0
      %746 = vmatprep.mubr.bf16.mxu0 0
      %747 = vmatmul.mubr.bf16.gmra.mxu0 %v624
      %v748 = vpop.f32.mrf.mxu0
      %v749 = vadd.f32 0.0, %v748
      %v750 = vpop.f32.mrf.mxu0
      %v751 = vpop.f32.mrf.mxu0
      %v752 = vadd.f32 0.0, %v751
      %v753 = vpop.f32.mrf.mxu0
      %754 = vdwg.mxu0
      %v755 = vadd.f32 %v583, %v725
      %v756 = vadd.f32 %v586, %v728
      %v757 = vadd.f32 %v591, %v733
      %v758 = vadd.f32 %v594, %v736
      %v759 = vadd.f32 %v599, %v741
      %v760 = vadd.f32 %v602, %v744
      %v761 = vadd.f32 %v607, %v749
      %v762 = vadd.f32 %v610, %v752
      %s763 = sadd.s32 %s326, 288
      %s764 = scalar_lea.vmem %s294, %s763
      %v765 = vld [vmem:[%s764] sm:$0xff]
      %v766 = vld [vmem:[%s764 + $0x10] sm:$0xff]
      %v767 = vld [vmem:[%s764 + $0x20] sm:$0xff]
      %v768 = vld [vmem:[%s764 + $0x30] sm:$0xff]
      %v769 = vld [vmem:[%s764 + $0x40] sm:$0xff]
      %v770 = vld [vmem:[%s764 + $0x50] sm:$0xff]
      %v771 = vld [vmem:[%s764 + $0x60] sm:$0xff]
      %v772 = vld [vmem:[%s764 + $0x70] sm:$0xff]
      %v773 = vpack.c.bf16 %v766, %v765
      %v774 = vpack.c.bf16 %v768, %v767
      %v775 = vpack.c.bf16 %v770, %v769
      %v776 = vpack.c.bf16 %v772, %v771
      %s777 = scalar_lea.vmem %s1, 192
      %v778 = vld [vmem:[%s777] sm:$0xf]
      %v779 = vld [vmem:[%s777 + $0x4] sm:$0xf]
      %v780 = vld [vmem:[%s777 + $0x8] sm:$0xf]
      %v781 = vld [vmem:[%s777 + $0xc] sm:$0xf]
      %v782 = vld [vmem:[%s777 + $0x10] sm:$0xf]
      %v783 = vld [vmem:[%s777 + $0x14] sm:$0xf]
      %v784 = vld [vmem:[%s777 + $0x18] sm:$0xf]
      %v785 = vld [vmem:[%s777 + $0x1c] sm:$0xf]
      %v786 = vld [vmem:[%s777 + $0x20] sm:$0xf]
      %v787 = vld [vmem:[%s777 + $0x24] sm:$0xf]
      %v788 = vld [vmem:[%s777 + $0x28] sm:$0xf]
      %v789 = vld [vmem:[%s777 + $0x2c] sm:$0xf]
      %v790 = vld [vmem:[%s777 + $0x30] sm:$0xf]
      %v791 = vld [vmem:[%s777 + $0x34] sm:$0xf]
      %v792 = vld [vmem:[%s777 + $0x38] sm:$0xf]
      %v793 = vld [vmem:[%s777 + $0x3c] sm:$0xf]
      %v810 = vunpack.c.l.b16 %v778
      %v811 = vunpack.c.l.b16 %v779
      %v812 = vunpack.c.l.b16 %v780
      %v813 = vunpack.c.l.b16 %v781
      %v814 = vunpack.c.l.b16 %v782
      %v815 = vunpack.c.l.b16 %v783
      %v816 = vunpack.c.l.b16 %v784
      %v817 = vunpack.c.l.b16 %v785
      %v818 = vunpack.c.l.b16 %v786
      %v819 = vunpack.c.l.b16 %v787
      %v820 = vunpack.c.l.b16 %v788
      %v821 = vunpack.c.l.b16 %v789
      %v822 = vunpack.c.l.b16 %v790
      %v823 = vunpack.c.l.b16 %v791
      %v824 = vunpack.c.l.b16 %v792
      %v825 = vunpack.c.l.b16 %v793
      %v826 = vpack.c.b16 %v811, %v810
      %v827 = vpack.c.b16 %v813, %v812
      %v828 = vpack.c.b16 %v815, %v814
      %v829 = vpack.c.b16 %v817, %v816
      %v830 = vpack.c.b16 %v819, %v818
      %v831 = vpack.c.b16 %v821, %v820
      %v832 = vpack.c.b16 %v823, %v822
      %v833 = vpack.c.b16 %v825, %v824
      %842 = vmatprep.subr.bf16.mxu0 0
      %843 = vmatpush1.bf16.msra.mxu0 %v833
      %844 = vmatprep.subr.bf16.mxu0 0
      %845 = vmatpush1.bf16.msra.mxu0 %v832
      %846 = vmatprep.subr.bf16.mxu0 0
      %847 = vmatpush1.bf16.msra.mxu0 %v831
      %848 = vmatprep.subr.bf16.mxu0 0
      %849 = vmatpush1.bf16.msra.mxu0 %v830
      %850 = vmatprep.subr.bf16.mxu0 0
      %851 = vmatpush1.bf16.msra.mxu0 %v829
      %852 = vmatprep.subr.bf16.mxu0 0
      %853 = vmatpush1.bf16.msra.mxu0 %v828
      %854 = vmatprep.subr.bf16.mxu0 0
      %855 = vmatpush1.bf16.msra.mxu0 %v827
      %856 = vmatprep.subr.bf16.mxu0 0
      %857 = vmatpush1.bf16.msra.mxu0 %v826
      %858 = vmatprep.subr.bf16.mxu0 0
      %859 = vmatpush2.bf16.msra.mxu0 0
      %860 = vmatprep.subr.bf16.mxu0 0
      %861 = vmatpush2.bf16.msra.mxu0 0
      %862 = vmatprep.subr.bf16.mxu0 0
      %863 = vmatpush2.bf16.msra.mxu0 0
      %864 = vmatprep.subr.bf16.mxu0 0
      %865 = vmatpush2.bf16.msra.mxu0 0
      %866 = vmatprep.subr.bf16.mxu0 0
      %867 = vmatpush2.bf16.msra.mxu0 0
      %868 = vmatprep.subr.bf16.mxu0 0
      %869 = vmatpush2.bf16.msra.mxu0 0
      %870 = vmatprep.subr.bf16.mxu0 0
      %871 = vmatpush2.bf16.msra.mxu0 0
      %872 = vmatprep.subr.bf16.mxu0 0
      %873 = vmatpush2.bf16.msra.mxu0 0
      %874 = vmatprep.mubr.bf16.mxu0 0
      %875 = vmatmul.mubr.bf16.gmra.mxu0 %v773
      %v876 = vpop.f32.mrf.mxu0
      %v877 = vadd.f32 0.0, %v876
      %v878 = vpop.f32.mrf.mxu0
      %v879 = vpop.f32.mrf.mxu0
      %v880 = vadd.f32 0.0, %v879
      %v881 = vpop.f32.mrf.mxu0
      %882 = vmatprep.mubr.bf16.mxu0 0
      %883 = vmatmul.mubr.bf16.gmra.mxu0 %v774
      %v884 = vpop.f32.mrf.mxu0
      %v885 = vadd.f32 0.0, %v884
      %v886 = vpop.f32.mrf.mxu0
      %v887 = vpop.f32.mrf.mxu0
      %v888 = vadd.f32 0.0, %v887
      %v889 = vpop.f32.mrf.mxu0
      %890 = vmatprep.mubr.bf16.mxu0 0
      %891 = vmatmul.mubr.bf16.gmra.mxu0 %v775
      %v892 = vpop.f32.mrf.mxu0
      %v893 = vadd.f32 0.0, %v892
      %v894 = vpop.f32.mrf.mxu0
      %v895 = vpop.f32.mrf.mxu0
      %v896 = vadd.f32 0.0, %v895
      %v897 = vpop.f32.mrf.mxu0
      %898 = vmatprep.mubr.bf16.mxu0 0
      %899 = vmatmul.mubr.bf16.gmra.mxu0 %v776
      %v900 = vpop.f32.mrf.mxu0
      %v901 = vadd.f32 0.0, %v900
      %v902 = vpop.f32.mrf.mxu0
      %v903 = vpop.f32.mrf.mxu0
      %v904 = vadd.f32 0.0, %v903
      %v905 = vpop.f32.mrf.mxu0
      %906 = vdwg.mxu0
      %v907 = vadd.f32 %v755, %v877
      %v908 = vadd.f32 %v756, %v880
      %v909 = vadd.f32 %v757, %v885
      %v910 = vadd.f32 %v758, %v888
      %v911 = vadd.f32 %v759, %v893
      %v912 = vadd.f32 %v760, %v896
      %v913 = vadd.f32 %v761, %v901
      %v914 = vadd.f32 %v762, %v904
      %s915 = sadd.s32 %s326, 432
      %s916 = scalar_lea.vmem %s294, %s915
      %v917 = vld [vmem:[%s916] sm:$0xff]
      %v918 = vld [vmem:[%s916 + $0x10] sm:$0xff]
      %v919 = vld [vmem:[%s916 + $0x20] sm:$0xff]
      %v920 = vld [vmem:[%s916 + $0x30] sm:$0xff]
      %v921 = vld [vmem:[%s916 + $0x40] sm:$0xff]
      %v922 = vld [vmem:[%s916 + $0x50] sm:$0xff]
      %v923 = vld [vmem:[%s916 + $0x60] sm:$0xff]
      %v924 = vld [vmem:[%s916 + $0x70] sm:$0xff]
      %v925 = vpack.c.bf16 %v918, %v917
      %v926 = vpack.c.bf16 %v920, %v919
      %v927 = vpack.c.bf16 %v922, %v921
      %v928 = vpack.c.bf16 %v924, %v923
      %s929 = scalar_lea.vmem %s1, 256
      %v930 = vld [vmem:[%s929] sm:$0xf]
      %v931 = vld [vmem:[%s929 + $0x4] sm:$0xf]
      %v932 = vld [vmem:[%s929 + $0x8] sm:$0xf]
      %v933 = vld [vmem:[%s929 + $0xc] sm:$0xf]
      %v934 = vld [vmem:[%s929 + $0x10] sm:$0xf]
      %v935 = vld [vmem:[%s929 + $0x14] sm:$0xf]
      %v936 = vld [vmem:[%s929 + $0x18] sm:$0xf]
      %v937 = vld [vmem:[%s929 + $0x1c] sm:$0xf]
      %v938 = vld [vmem:[%s929 + $0x20] sm:$0xf]
      %v939 = vld [vmem:[%s929 + $0x24] sm:$0xf]
      %v940 = vld [vmem:[%s929 + $0x28] sm:$0xf]
      %v941 = vld [vmem:[%s929 + $0x2c] sm:$0xf]
      %v942 = vld [vmem:[%s929 + $0x30] sm:$0xf]
      %v943 = vld [vmem:[%s929 + $0x34] sm:$0xf]
      %v944 = vld [vmem:[%s929 + $0x38] sm:$0xf]
      %v945 = vld [vmem:[%s929 + $0x3c] sm:$0xf]
      %v962 = vunpack.c.l.b16 %v930
      %v963 = vunpack.c.l.b16 %v931
      %v964 = vunpack.c.l.b16 %v932
      %v965 = vunpack.c.l.b16 %v933
      %v966 = vunpack.c.l.b16 %v934
      %v967 = vunpack.c.l.b16 %v935
      %v968 = vunpack.c.l.b16 %v936
      %v969 = vunpack.c.l.b16 %v937
      %v970 = vunpack.c.l.b16 %v938
      %v971 = vunpack.c.l.b16 %v939
      %v972 = vunpack.c.l.b16 %v940
      %v973 = vunpack.c.l.b16 %v941
      %v974 = vunpack.c.l.b16 %v942
      %v975 = vunpack.c.l.b16 %v943
      %v976 = vunpack.c.l.b16 %v944
      %v977 = vunpack.c.l.b16 %v945
      %v978 = vpack.c.b16 %v963, %v962
      %v979 = vpack.c.b16 %v965, %v964
      %v980 = vpack.c.b16 %v967, %v966
      %v981 = vpack.c.b16 %v969, %v968
      %v982 = vpack.c.b16 %v971, %v970
      %v983 = vpack.c.b16 %v973, %v972
      %v984 = vpack.c.b16 %v975, %v974
      %v985 = vpack.c.b16 %v977, %v976
      %994 = vmatprep.subr.bf16.mxu0 0
      %995 = vmatpush1.bf16.msra.mxu0 %v985
      %996 = vmatprep.subr.bf16.mxu0 0
      %997 = vmatpush1.bf16.msra.mxu0 %v984
      %998 = vmatprep.subr.bf16.mxu0 0
      %999 = vmatpush1.bf16.msra.mxu0 %v983
      %1000 = vmatprep.subr.bf16.mxu0 0
      %1001 = vmatpush1.bf16.msra.mxu0 %v982
      %1002 = vmatprep.subr.bf16.mxu0 0
      %1003 = vmatpush1.bf16.msra.mxu0 %v981
      %1004 = vmatprep.subr.bf16.mxu0 0
      %1005 = vmatpush1.bf16.msra.mxu0 %v980
      %1006 = vmatprep.subr.bf16.mxu0 0
      %1007 = vmatpush1.bf16.msra.mxu0 %v979
      %1008 = vmatprep.subr.bf16.mxu0 0
      %1009 = vmatpush1.bf16.msra.mxu0 %v978
      %1010 = vmatprep.subr.bf16.mxu0 0
      %1011 = vmatpush2.bf16.msra.mxu0 0
      %1012 = vmatprep.subr.bf16.mxu0 0
      %1013 = vmatpush2.bf16.msra.mxu0 0
      %1014 = vmatprep.subr.bf16.mxu0 0
      %1015 = vmatpush2.bf16.msra.mxu0 0
      %1016 = vmatprep.subr.bf16.mxu0 0
      %1017 = vmatpush2.bf16.msra.mxu0 0
      %1018 = vmatprep.subr.bf16.mxu0 0
      %1019 = vmatpush2.bf16.msra.mxu0 0
      %1020 = vmatprep.subr.bf16.mxu0 0
      %1021 = vmatpush2.bf16.msra.mxu0 0
      %1022 = vmatprep.subr.bf16.mxu0 0
      %1023 = vmatpush2.bf16.msra.mxu0 0
      %1024 = vmatprep.subr.bf16.mxu0 0
      %1025 = vmatpush2.bf16.msra.mxu0 0
      %1026 = vmatprep.mubr.bf16.mxu0 0
      %1027 = vmatmul.mubr.bf16.gmra.mxu0 %v925
      %v1028 = vpop.f32.mrf.mxu0
      %v1029 = vadd.f32 0.0, %v1028
      %v1030 = vpop.f32.mrf.mxu0
      %v1031 = vpop.f32.mrf.mxu0
      %v1032 = vadd.f32 0.0, %v1031
      %v1033 = vpop.f32.mrf.mxu0
      %1034 = vmatprep.mubr.bf16.mxu0 0
      %1035 = vmatmul.mubr.bf16.gmra.mxu0 %v926
      %v1036 = vpop.f32.mrf.mxu0
      %v1037 = vadd.f32 0.0, %v1036
      %v1038 = vpop.f32.mrf.mxu0
      %v1039 = vpop.f32.mrf.mxu0
      %v1040 = vadd.f32 0.0, %v1039
      %v1041 = vpop.f32.mrf.mxu0
      %1042 = vmatprep.mubr.bf16.mxu0 0
      %1043 = vmatmul.mubr.bf16.gmra.mxu0 %v927
      %v1044 = vpop.f32.mrf.mxu0
      %v1045 = vadd.f32 0.0, %v1044
      %v1046 = vpop.f32.mrf.mxu0
      %v1047 = vpop.f32.mrf.mxu0
      %v1048 = vadd.f32 0.0, %v1047
      %v1049 = vpop.f32.mrf.mxu0
      %1050 = vmatprep.mubr.bf16.mxu0 0
      %1051 = vmatmul.mubr.bf16.gmra.mxu0 %v928
      %v1052 = vpop.f32.mrf.mxu0
      %v1053 = vadd.f32 0.0, %v1052
      %v1054 = vpop.f32.mrf.mxu0
      %v1055 = vpop.f32.mrf.mxu0
      %v1056 = vadd.f32 0.0, %v1055
      %v1057 = vpop.f32.mrf.mxu0
      %1058 = vdwg.mxu0
      %v1059 = vadd.f32 %v907, %v1029
      %v1060 = vadd.f32 %v908, %v1032
      %v1061 = vadd.f32 %v909, %v1037
      %v1062 = vadd.f32 %v910, %v1040
      %v1063 = vadd.f32 %v911, %v1045
      %v1064 = vadd.f32 %v912, %v1048
      %v1065 = vadd.f32 %v913, %v1053
      %v1066 = vadd.f32 %v914, %v1056
      %v1067 = vld [vmem:[%s764 + $0x1] sm:$0xff]
      %v1068 = vld [vmem:[%s764 + $0x11] sm:$0xff]
      %v1069 = vld [vmem:[%s764 + $0x21] sm:$0xff]
      %v1070 = vld [vmem:[%s764 + $0x31] sm:$0xff]
      %v1071 = vld [vmem:[%s764 + $0x41] sm:$0xff]
      %v1072 = vld [vmem:[%s764 + $0x51] sm:$0xff]
      %v1073 = vld [vmem:[%s764 + $0x61] sm:$0xff]
      %v1074 = vld [vmem:[%s764 + $0x71] sm:$0xff]
      %v1075 = vpack.c.bf16 %v1068, %v1067
      %v1076 = vpack.c.bf16 %v1070, %v1069
      %v1077 = vpack.c.bf16 %v1072, %v1071
      %v1078 = vpack.c.bf16 %v1074, %v1073
      %s1079 = scalar_lea.vmem %s1, 320
      %v1080 = vld [vmem:[%s1079] sm:$0xf]
      %v1081 = vld [vmem:[%s1079 + $0x4] sm:$0xf]
      %v1082 = vld [vmem:[%s1079 + $0x8] sm:$0xf]
      %v1083 = vld [vmem:[%s1079 + $0xc] sm:$0xf]
      %v1084 = vld [vmem:[%s1079 + $0x10] sm:$0xf]
      %v1085 = vld [vmem:[%s1079 + $0x14] sm:$0xf]
      %v1086 = vld [vmem:[%s1079 + $0x18] sm:$0xf]
      %v1087 = vld [vmem:[%s1079 + $0x1c] sm:$0xf]
      %v1088 = vld [vmem:[%s1079 + $0x20] sm:$0xf]
      %v1089 = vld [vmem:[%s1079 + $0x24] sm:$0xf]
      %v1090 = vld [vmem:[%s1079 + $0x28] sm:$0xf]
      %v1091 = vld [vmem:[%s1079 + $0x2c] sm:$0xf]
      %v1092 = vld [vmem:[%s1079 + $0x30] sm:$0xf]
      %v1093 = vld [vmem:[%s1079 + $0x34] sm:$0xf]
      %v1094 = vld [vmem:[%s1079 + $0x38] sm:$0xf]
      %v1095 = vld [vmem:[%s1079 + $0x3c] sm:$0xf]
      %v1112 = vunpack.c.l.b16 %v1080
      %v1113 = vunpack.c.l.b16 %v1081
      %v1114 = vunpack.c.l.b16 %v1082
      %v1115 = vunpack.c.l.b16 %v1083
      %v1116 = vunpack.c.l.b16 %v1084
      %v1117 = vunpack.c.l.b16 %v1085
      %v1118 = vunpack.c.l.b16 %v1086
      %v1119 = vunpack.c.l.b16 %v1087
      %v1120 = vunpack.c.l.b16 %v1088
      %v1121 = vunpack.c.l.b16 %v1089
      %v1122 = vunpack.c.l.b16 %v1090
      %v1123 = vunpack.c.l.b16 %v1091
      %v1124 = vunpack.c.l.b16 %v1092
      %v1125 = vunpack.c.l.b16 %v1093
      %v1126 = vunpack.c.l.b16 %v1094
      %v1127 = vunpack.c.l.b16 %v1095
      %v1128 = vpack.c.b16 %v1113, %v1112
      %v1129 = vpack.c.b16 %v1115, %v1114
      %v1130 = vpack.c.b16 %v1117, %v1116
      %v1131 = vpack.c.b16 %v1119, %v1118
      %v1132 = vpack.c.b16 %v1121, %v1120
      %v1133 = vpack.c.b16 %v1123, %v1122
      %v1134 = vpack.c.b16 %v1125, %v1124
      %v1135 = vpack.c.b16 %v1127, %v1126
      %1144 = vmatprep.subr.bf16.mxu0 0
      %1145 = vmatpush1.bf16.msra.mxu0 %v1135
      %1146 = vmatprep.subr.bf16.mxu0 0
      %1147 = vmatpush1.bf16.msra.mxu0 %v1134
      %1148 = vmatprep.subr.bf16.mxu0 0
      %1149 = vmatpush1.bf16.msra.mxu0 %v1133
      %1150 = vmatprep.subr.bf16.mxu0 0
      %1151 = vmatpush1.bf16.msra.mxu0 %v1132
      %1152 = vmatprep.subr.bf16.mxu0 0
      %1153 = vmatpush1.bf16.msra.mxu0 %v1131
      %1154 = vmatprep.subr.bf16.mxu0 0
      %1155 = vmatpush1.bf16.msra.mxu0 %v1130
      %1156 = vmatprep.subr.bf16.mxu0 0
      %1157 = vmatpush1.bf16.msra.mxu0 %v1129
      %1158 = vmatprep.subr.bf16.mxu0 0
      %1159 = vmatpush1.bf16.msra.mxu0 %v1128
      %1160 = vmatprep.subr.bf16.mxu0 0
      %1161 = vmatpush2.bf16.msra.mxu0 0
      %1162 = vmatprep.subr.bf16.mxu0 0
      %1163 = vmatpush2.bf16.msra.mxu0 0
      %1164 = vmatprep.subr.bf16.mxu0 0
      %1165 = vmatpush2.bf16.msra.mxu0 0
      %1166 = vmatprep.subr.bf16.mxu0 0
      %1167 = vmatpush2.bf16.msra.mxu0 0
      %1168 = vmatprep.subr.bf16.mxu0 0
      %1169 = vmatpush2.bf16.msra.mxu0 0
      %1170 = vmatprep.subr.bf16.mxu0 0
      %1171 = vmatpush2.bf16.msra.mxu0 0
      %1172 = vmatprep.subr.bf16.mxu0 0
      %1173 = vmatpush2.bf16.msra.mxu0 0
      %1174 = vmatprep.subr.bf16.mxu0 0
      %1175 = vmatpush2.bf16.msra.mxu0 0
      %1176 = vmatprep.mubr.bf16.mxu0 0
      %1177 = vmatmul.mubr.bf16.gmra.mxu0 %v1075
      %v1178 = vpop.f32.mrf.mxu0
      %v1179 = vadd.f32 0.0, %v1178
      %v1180 = vpop.f32.mrf.mxu0
      %v1181 = vpop.f32.mrf.mxu0
      %v1182 = vadd.f32 0.0, %v1181
      %v1183 = vpop.f32.mrf.mxu0
      %1184 = vmatprep.mubr.bf16.mxu0 0
      %1185 = vmatmul.mubr.bf16.gmra.mxu0 %v1076
      %v1186 = vpop.f32.mrf.mxu0
      %v1187 = vadd.f32 0.0, %v1186
      %v1188 = vpop.f32.mrf.mxu0
      %v1189 = vpop.f32.mrf.mxu0
      %v1190 = vadd.f32 0.0, %v1189
      %v1191 = vpop.f32.mrf.mxu0
      %1192 = vmatprep.mubr.bf16.mxu0 0
      %1193 = vmatmul.mubr.bf16.gmra.mxu0 %v1077
      %v1194 = vpop.f32.mrf.mxu0
      %v1195 = vadd.f32 0.0, %v1194
      %v1196 = vpop.f32.mrf.mxu0
      %v1197 = vpop.f32.mrf.mxu0
      %v1198 = vadd.f32 0.0, %v1197
      %v1199 = vpop.f32.mrf.mxu0
      %1200 = vmatprep.mubr.bf16.mxu0 0
      %1201 = vmatmul.mubr.bf16.gmra.mxu0 %v1078
      %v1202 = vpop.f32.mrf.mxu0
      %v1203 = vadd.f32 0.0, %v1202
      %v1204 = vpop.f32.mrf.mxu0
      %v1205 = vpop.f32.mrf.mxu0
      %v1206 = vadd.f32 0.0, %v1205
      %v1207 = vpop.f32.mrf.mxu0
      %1208 = vdwg.mxu0
      %v1209 = vadd.f32 %v1059, %v1179
      %v1210 = vadd.f32 %v1060, %v1182
      %v1211 = vadd.f32 %v1061, %v1187
      %v1212 = vadd.f32 %v1062, %v1190
      %v1213 = vadd.f32 %v1063, %v1195
      %v1214 = vadd.f32 %v1064, %v1198
      %v1215 = vadd.f32 %v1065, %v1203
      %v1216 = vadd.f32 %v1066, %v1206
      %s1217 = sadd.s32 %s325, 1
      %s1218 = smul.u32 %s1217, 16
      %s1219 = scalar_lea.vmem %s294, %s1218
      %v1220 = vld [vmem:[%s1219] sm:$0xff]
      %v1221 = vld [vmem:[%s1219 + $0x10] sm:$0xff]
      %v1222 = vld [vmem:[%s1219 + $0x20] sm:$0xff]
      %v1223 = vld [vmem:[%s1219 + $0x30] sm:$0xff]
      %v1224 = vld [vmem:[%s1219 + $0x40] sm:$0xff]
      %v1225 = vld [vmem:[%s1219 + $0x50] sm:$0xff]
      %v1226 = vld [vmem:[%s1219 + $0x60] sm:$0xff]
      %v1227 = vld [vmem:[%s1219 + $0x70] sm:$0xff]
      %v1228 = vpack.c.bf16 %v1221, %v1220
      %v1229 = vpack.c.bf16 %v1223, %v1222
      %v1230 = vpack.c.bf16 %v1225, %v1224
      %v1231 = vpack.c.bf16 %v1227, %v1226
      %s1232 = scalar_lea.vmem %s1, 384
      %v1233 = vld [vmem:[%s1232] sm:$0xf]
      %v1234 = vld [vmem:[%s1232 + $0x4] sm:$0xf]
      %v1235 = vld [vmem:[%s1232 + $0x8] sm:$0xf]
      %v1236 = vld [vmem:[%s1232 + $0xc] sm:$0xf]
      %v1237 = vld [vmem:[%s1232 + $0x10] sm:$0xf]
      %v1238 = vld [vmem:[%s1232 + $0x14] sm:$0xf]
      %v1239 = vld [vmem:[%s1232 + $0x18] sm:$0xf]
      %v1240 = vld [vmem:[%s1232 + $0x1c] sm:$0xf]
      %v1241 = vld [vmem:[%s1232 + $0x20] sm:$0xf]
      %v1242 = vld [vmem:[%s1232 + $0x24] sm:$0xf]
      %v1243 = vld [vmem:[%s1232 + $0x28] sm:$0xf]
      %v1244 = vld [vmem:[%s1232 + $0x2c] sm:$0xf]
      %v1245 = vld [vmem:[%s1232 + $0x30] sm:$0xf]
      %v1246 = vld [vmem:[%s1232 + $0x34] sm:$0xf]
      %v1247 = vld [vmem:[%s1232 + $0x38] sm:$0xf]
      %v1248 = vld [vmem:[%s1232 + $0x3c] sm:$0xf]
      %v1265 = vunpack.c.l.b16 %v1233
      %v1266 = vunpack.c.l.b16 %v1234
      %v1267 = vunpack.c.l.b16 %v1235
      %v1268 = vunpack.c.l.b16 %v1236
      %v1269 = vunpack.c.l.b16 %v1237
      %v1270 = vunpack.c.l.b16 %v1238
      %v1271 = vunpack.c.l.b16 %v1239
      %v1272 = vunpack.c.l.b16 %v1240
      %v1273 = vunpack.c.l.b16 %v1241
      %v1274 = vunpack.c.l.b16 %v1242
      %v1275 = vunpack.c.l.b16 %v1243
      %v1276 = vunpack.c.l.b16 %v1244
      %v1277 = vunpack.c.l.b16 %v1245
      %v1278 = vunpack.c.l.b16 %v1246
      %v1279 = vunpack.c.l.b16 %v1247
      %v1280 = vunpack.c.l.b16 %v1248
      %v1281 = vpack.c.b16 %v1266, %v1265
      %v1282 = vpack.c.b16 %v1268, %v1267
      %v1283 = vpack.c.b16 %v1270, %v1269
      %v1284 = vpack.c.b16 %v1272, %v1271
      %v1285 = vpack.c.b16 %v1274, %v1273
      %v1286 = vpack.c.b16 %v1276, %v1275
      %v1287 = vpack.c.b16 %v1278, %v1277
      %v1288 = vpack.c.b16 %v1280, %v1279
      %1297 = vmatprep.subr.bf16.mxu0 0
      %1298 = vmatpush1.bf16.msra.mxu0 %v1288
      %1299 = vmatprep.subr.bf16.mxu0 0
      %1300 = vmatpush1.bf16.msra.mxu0 %v1287
      %1301 = vmatprep.subr.bf16.mxu0 0
      %1302 = vmatpush1.bf16.msra.mxu0 %v1286
      %1303 = vmatprep.subr.bf16.mxu0 0
      %1304 = vmatpush1.bf16.msra.mxu0 %v1285
      %1305 = vmatprep.subr.bf16.mxu0 0
      %1306 = vmatpush1.bf16.msra.mxu0 %v1284
      %1307 = vmatprep.subr.bf16.mxu0 0
      %1308 = vmatpush1.bf16.msra.mxu0 %v1283
      %1309 = vmatprep.subr.bf16.mxu0 0
      %1310 = vmatpush1.bf16.msra.mxu0 %v1282
      %1311 = vmatprep.subr.bf16.mxu0 0
      %1312 = vmatpush1.bf16.msra.mxu0 %v1281
      %1313 = vmatprep.subr.bf16.mxu0 0
      %1314 = vmatpush2.bf16.msra.mxu0 0
      %1315 = vmatprep.subr.bf16.mxu0 0
      %1316 = vmatpush2.bf16.msra.mxu0 0
      %1317 = vmatprep.subr.bf16.mxu0 0
      %1318 = vmatpush2.bf16.msra.mxu0 0
      %1319 = vmatprep.subr.bf16.mxu0 0
      %1320 = vmatpush2.bf16.msra.mxu0 0
      %1321 = vmatprep.subr.bf16.mxu0 0
      %1322 = vmatpush2.bf16.msra.mxu0 0
      %1323 = vmatprep.subr.bf16.mxu0 0
      %1324 = vmatpush2.bf16.msra.mxu0 0
      %1325 = vmatprep.subr.bf16.mxu0 0
      %1326 = vmatpush2.bf16.msra.mxu0 0
      %1327 = vmatprep.subr.bf16.mxu0 0
      %1328 = vmatpush2.bf16.msra.mxu0 0
      %1329 = vmatprep.mubr.bf16.mxu0 0
      %1330 = vmatmul.mubr.bf16.gmra.mxu0 %v1228
      %v1331 = vpop.f32.mrf.mxu0
      %v1332 = vadd.f32 0.0, %v1331
      %v1333 = vpop.f32.mrf.mxu0
      %v1334 = vpop.f32.mrf.mxu0
      %v1335 = vadd.f32 0.0, %v1334
      %v1336 = vpop.f32.mrf.mxu0
      %1337 = vmatprep.mubr.bf16.mxu0 0
      %1338 = vmatmul.mubr.bf16.gmra.mxu0 %v1229
      %v1339 = vpop.f32.mrf.mxu0
      %v1340 = vadd.f32 0.0, %v1339
      %v1341 = vpop.f32.mrf.mxu0
      %v1342 = vpop.f32.mrf.mxu0
      %v1343 = vadd.f32 0.0, %v1342
      %v1344 = vpop.f32.mrf.mxu0
      %1345 = vmatprep.mubr.bf16.mxu0 0
      %1346 = vmatmul.mubr.bf16.gmra.mxu0 %v1230
      %v1347 = vpop.f32.mrf.mxu0
      %v1348 = vadd.f32 0.0, %v1347
      %v1349 = vpop.f32.mrf.mxu0
      %v1350 = vpop.f32.mrf.mxu0
      %v1351 = vadd.f32 0.0, %v1350
      %v1352 = vpop.f32.mrf.mxu0
      %1353 = vmatprep.mubr.bf16.mxu0 0
      %1354 = vmatmul.mubr.bf16.gmra.mxu0 %v1231
      %v1355 = vpop.f32.mrf.mxu0
      %v1356 = vadd.f32 0.0, %v1355
      %v1357 = vpop.f32.mrf.mxu0
      %v1358 = vpop.f32.mrf.mxu0
      %v1359 = vadd.f32 0.0, %v1358
      %v1360 = vpop.f32.mrf.mxu0
      %1361 = vdwg.mxu0
      %v1362 = vadd.f32 %v1209, %v1332
      %v1363 = vadd.f32 %v1210, %v1335
      %v1364 = vadd.f32 %v1211, %v1340
      %v1365 = vadd.f32 %v1212, %v1343
      %v1366 = vadd.f32 %v1213, %v1348
      %v1367 = vadd.f32 %v1214, %v1351
      %v1368 = vadd.f32 %v1215, %v1356
      %v1369 = vadd.f32 %v1216, %v1359
      %s1370 = sadd.s32 %s1218, 144
      %s1371 = scalar_lea.vmem %s294, %s1370
      %v1372 = vld [vmem:[%s1371] sm:$0xff]
      %v1373 = vld [vmem:[%s1371 + $0x10] sm:$0xff]
      %v1374 = vld [vmem:[%s1371 + $0x20] sm:$0xff]
      %v1375 = vld [vmem:[%s1371 + $0x30] sm:$0xff]
      %v1376 = vld [vmem:[%s1371 + $0x40] sm:$0xff]
      %v1377 = vld [vmem:[%s1371 + $0x50] sm:$0xff]
      %v1378 = vld [vmem:[%s1371 + $0x60] sm:$0xff]
      %v1379 = vld [vmem:[%s1371 + $0x70] sm:$0xff]
      %v1380 = vpack.c.bf16 %v1373, %v1372
      %v1381 = vpack.c.bf16 %v1375, %v1374
      %v1382 = vpack.c.bf16 %v1377, %v1376
      %v1383 = vpack.c.bf16 %v1379, %v1378
      %s1384 = scalar_lea.vmem %s1, 448
      %v1385 = vld [vmem:[%s1384] sm:$0xf]
      %v1386 = vld [vmem:[%s1384 + $0x4] sm:$0xf]
      %v1387 = vld [vmem:[%s1384 + $0x8] sm:$0xf]
      %v1388 = vld [vmem:[%s1384 + $0xc] sm:$0xf]
      %v1389 = vld [vmem:[%s1384 + $0x10] sm:$0xf]
      %v1390 = vld [vmem:[%s1384 + $0x14] sm:$0xf]
      %v1391 = vld [vmem:[%s1384 + $0x18] sm:$0xf]
      %v1392 = vld [vmem:[%s1384 + $0x1c] sm:$0xf]
      %v1393 = vld [vmem:[%s1384 + $0x20] sm:$0xf]
      %v1394 = vld [vmem:[%s1384 + $0x24] sm:$0xf]
      %v1395 = vld [vmem:[%s1384 + $0x28] sm:$0xf]
      %v1396 = vld [vmem:[%s1384 + $0x2c] sm:$0xf]
      %v1397 = vld [vmem:[%s1384 + $0x30] sm:$0xf]
      %v1398 = vld [vmem:[%s1384 + $0x34] sm:$0xf]
      %v1399 = vld [vmem:[%s1384 + $0x38] sm:$0xf]
      %v1400 = vld [vmem:[%s1384 + $0x3c] sm:$0xf]
      %v1417 = vunpack.c.l.b16 %v1385
      %v1418 = vunpack.c.l.b16 %v1386
      %v1419 = vunpack.c.l.b16 %v1387
      %v1420 = vunpack.c.l.b16 %v1388
      %v1421 = vunpack.c.l.b16 %v1389
      %v1422 = vunpack.c.l.b16 %v1390
      %v1423 = vunpack.c.l.b16 %v1391
      %v1424 = vunpack.c.l.b16 %v1392
      %v1425 = vunpack.c.l.b16 %v1393
      %v1426 = vunpack.c.l.b16 %v1394
      %v1427 = vunpack.c.l.b16 %v1395
      %v1428 = vunpack.c.l.b16 %v1396
      %v1429 = vunpack.c.l.b16 %v1397
      %v1430 = vunpack.c.l.b16 %v1398
      %v1431 = vunpack.c.l.b16 %v1399
      %v1432 = vunpack.c.l.b16 %v1400
      %v1433 = vpack.c.b16 %v1418, %v1417
      %v1434 = vpack.c.b16 %v1420, %v1419
      %v1435 = vpack.c.b16 %v1422, %v1421
      %v1436 = vpack.c.b16 %v1424, %v1423
      %v1437 = vpack.c.b16 %v1426, %v1425
      %v1438 = vpack.c.b16 %v1428, %v1427
      %v1439 = vpack.c.b16 %v1430, %v1429
      %v1440 = vpack.c.b16 %v1432, %v1431
      %1449 = vmatprep.subr.bf16.mxu0 0
      %1450 = vmatpush1.bf16.msra.mxu0 %v1440
      %1451 = vmatprep.subr.bf16.mxu0 0
      %1452 = vmatpush1.bf16.msra.mxu0 %v1439
      %1453 = vmatprep.subr.bf16.mxu0 0
      %1454 = vmatpush1.bf16.msra.mxu0 %v1438
      %1455 = vmatprep.subr.bf16.mxu0 0
      %1456 = vmatpush1.bf16.msra.mxu0 %v1437
      %1457 = vmatprep.subr.bf16.mxu0 0
      %1458 = vmatpush1.bf16.msra.mxu0 %v1436
      %1459 = vmatprep.subr.bf16.mxu0 0
      %1460 = vmatpush1.bf16.msra.mxu0 %v1435
      %1461 = vmatprep.subr.bf16.mxu0 0
      %1462 = vmatpush1.bf16.msra.mxu0 %v1434
      %1463 = vmatprep.subr.bf16.mxu0 0
      %1464 = vmatpush1.bf16.msra.mxu0 %v1433
      %1465 = vmatprep.subr.bf16.mxu0 0
      %1466 = vmatpush2.bf16.msra.mxu0 0
      %1467 = vmatprep.subr.bf16.mxu0 0
      %1468 = vmatpush2.bf16.msra.mxu0 0
      %1469 = vmatprep.subr.bf16.mxu0 0
      %1470 = vmatpush2.bf16.msra.mxu0 0
      %1471 = vmatprep.subr.bf16.mxu0 0
      %1472 = vmatpush2.bf16.msra.mxu0 0
      %1473 = vmatprep.subr.bf16.mxu0 0
      %1474 = vmatpush2.bf16.msra.mxu0 0
      %1475 = vmatprep.subr.bf16.mxu0 0
      %1476 = vmatpush2.bf16.msra.mxu0 0
      %1477 = vmatprep.subr.bf16.mxu0 0
      %1478 = vmatpush2.bf16.msra.mxu0 0
      %1479 = vmatprep.subr.bf16.mxu0 0
      %1480 = vmatpush2.bf16.msra.mxu0 0
      %1481 = vmatprep.mubr.bf16.mxu0 0
      %1482 = vmatmul.mubr.bf16.gmra.mxu0 %v1380
      %v1483 = vpop.f32.mrf.mxu0
      %v1484 = vadd.f32 0.0, %v1483
      %v1485 = vpop.f32.mrf.mxu0
      %v1486 = vpop.f32.mrf.mxu0
      %v1487 = vadd.f32 0.0, %v1486
      %v1488 = vpop.f32.mrf.mxu0
      %1489 = vmatprep.mubr.bf16.mxu0 0
      %1490 = vmatmul.mubr.bf16.gmra.mxu0 %v1381
      %v1491 = vpop.f32.mrf.mxu0
      %v1492 = vadd.f32 0.0, %v1491
      %v1493 = vpop.f32.mrf.mxu0
      %v1494 = vpop.f32.mrf.mxu0
      %v1495 = vadd.f32 0.0, %v1494
      %v1496 = vpop.f32.mrf.mxu0
      %1497 = vmatprep.mubr.bf16.mxu0 0
      %1498 = vmatmul.mubr.bf16.gmra.mxu0 %v1382
      %v1499 = vpop.f32.mrf.mxu0
      %v1500 = vadd.f32 0.0, %v1499
      %v1501 = vpop.f32.mrf.mxu0
      %v1502 = vpop.f32.mrf.mxu0
      %v1503 = vadd.f32 0.0, %v1502
      %v1504 = vpop.f32.mrf.mxu0
      %1505 = vmatprep.mubr.bf16.mxu0 0
      %1506 = vmatmul.mubr.bf16.gmra.mxu0 %v1383
      %v1507 = vpop.f32.mrf.mxu0
      %v1508 = vadd.f32 0.0, %v1507
      %v1509 = vpop.f32.mrf.mxu0
      %v1510 = vpop.f32.mrf.mxu0
      %v1511 = vadd.f32 0.0, %v1510
      %v1512 = vpop.f32.mrf.mxu0
      %1513 = vdwg.mxu0
      %v1514 = vadd.f32 %v1362, %v1484
      %v1515 = vadd.f32 %v1363, %v1487
      %v1516 = vadd.f32 %v1364, %v1492
      %v1517 = vadd.f32 %v1365, %v1495
      %v1518 = vadd.f32 %v1366, %v1500
      %v1519 = vadd.f32 %v1367, %v1503
      %v1520 = vadd.f32 %v1368, %v1508
      %v1521 = vadd.f32 %v1369, %v1511
      %v1522 = vld [vmem:[%s1219 + $0x1] sm:$0xff]
      %v1523 = vld [vmem:[%s1219 + $0x11] sm:$0xff]
      %v1524 = vld [vmem:[%s1219 + $0x21] sm:$0xff]
      %v1525 = vld [vmem:[%s1219 + $0x31] sm:$0xff]
      %v1526 = vld [vmem:[%s1219 + $0x41] sm:$0xff]
      %v1527 = vld [vmem:[%s1219 + $0x51] sm:$0xff]
      %v1528 = vld [vmem:[%s1219 + $0x61] sm:$0xff]
      %v1529 = vld [vmem:[%s1219 + $0x71] sm:$0xff]
      %v1530 = vpack.c.bf16 %v1523, %v1522
      %v1531 = vpack.c.bf16 %v1525, %v1524
      %v1532 = vpack.c.bf16 %v1527, %v1526
      %v1533 = vpack.c.bf16 %v1529, %v1528
      %s1534 = scalar_lea.vmem %s1, 512
      %v1535 = vld [vmem:[%s1534] sm:$0xf]
      %v1536 = vld [vmem:[%s1534 + $0x4] sm:$0xf]
      %v1537 = vld [vmem:[%s1534 + $0x8] sm:$0xf]
      %v1538 = vld [vmem:[%s1534 + $0xc] sm:$0xf]
      %v1539 = vld [vmem:[%s1534 + $0x10] sm:$0xf]
      %v1540 = vld [vmem:[%s1534 + $0x14] sm:$0xf]
      %v1541 = vld [vmem:[%s1534 + $0x18] sm:$0xf]
      %v1542 = vld [vmem:[%s1534 + $0x1c] sm:$0xf]
      %v1543 = vld [vmem:[%s1534 + $0x20] sm:$0xf]
      %v1544 = vld [vmem:[%s1534 + $0x24] sm:$0xf]
      %v1545 = vld [vmem:[%s1534 + $0x28] sm:$0xf]
      %v1546 = vld [vmem:[%s1534 + $0x2c] sm:$0xf]
      %v1547 = vld [vmem:[%s1534 + $0x30] sm:$0xf]
      %v1548 = vld [vmem:[%s1534 + $0x34] sm:$0xf]
      %v1549 = vld [vmem:[%s1534 + $0x38] sm:$0xf]
      %v1550 = vld [vmem:[%s1534 + $0x3c] sm:$0xf]
      %v1567 = vunpack.c.l.b16 %v1535
      %v1568 = vunpack.c.l.b16 %v1536
      %v1569 = vunpack.c.l.b16 %v1537
      %v1570 = vunpack.c.l.b16 %v1538
      %v1571 = vunpack.c.l.b16 %v1539
      %v1572 = vunpack.c.l.b16 %v1540
      %v1573 = vunpack.c.l.b16 %v1541
      %v1574 = vunpack.c.l.b16 %v1542
      %v1575 = vunpack.c.l.b16 %v1543
      %v1576 = vunpack.c.l.b16 %v1544
      %v1577 = vunpack.c.l.b16 %v1545
      %v1578 = vunpack.c.l.b16 %v1546
      %v1579 = vunpack.c.l.b16 %v1547
      %v1580 = vunpack.c.l.b16 %v1548
      %v1581 = vunpack.c.l.b16 %v1549
      %v1582 = vunpack.c.l.b16 %v1550
      %v1583 = vpack.c.b16 %v1568, %v1567
      %v1584 = vpack.c.b16 %v1570, %v1569
      %v1585 = vpack.c.b16 %v1572, %v1571
      %v1586 = vpack.c.b16 %v1574, %v1573
      %v1587 = vpack.c.b16 %v1576, %v1575
      %v1588 = vpack.c.b16 %v1578, %v1577
      %v1589 = vpack.c.b16 %v1580, %v1579
      %v1590 = vpack.c.b16 %v1582, %v1581
      %1599 = vmatprep.subr.bf16.mxu0 0
      %1600 = vmatpush1.bf16.msra.mxu0 %v1590
      %1601 = vmatprep.subr.bf16.mxu0 0
      %1602 = vmatpush1.bf16.msra.mxu0 %v1589
      %1603 = vmatprep.subr.bf16.mxu0 0
      %1604 = vmatpush1.bf16.msra.mxu0 %v1588
      %1605 = vmatprep.subr.bf16.mxu0 0
      %1606 = vmatpush1.bf16.msra.mxu0 %v1587
      %1607 = vmatprep.subr.bf16.mxu0 0
      %1608 = vmatpush1.bf16.msra.mxu0 %v1586
      %1609 = vmatprep.subr.bf16.mxu0 0
      %1610 = vmatpush1.bf16.msra.mxu0 %v1585
      %1611 = vmatprep.subr.bf16.mxu0 0
      %1612 = vmatpush1.bf16.msra.mxu0 %v1584
      %1613 = vmatprep.subr.bf16.mxu0 0
      %1614 = vmatpush1.bf16.msra.mxu0 %v1583
      %1615 = vmatprep.subr.bf16.mxu0 0
      %1616 = vmatpush2.bf16.msra.mxu0 0
      %1617 = vmatprep.subr.bf16.mxu0 0
      %1618 = vmatpush2.bf16.msra.mxu0 0
      %1619 = vmatprep.subr.bf16.mxu0 0
      %1620 = vmatpush2.bf16.msra.mxu0 0
      %1621 = vmatprep.subr.bf16.mxu0 0
      %1622 = vmatpush2.bf16.msra.mxu0 0
      %1623 = vmatprep.subr.bf16.mxu0 0
      %1624 = vmatpush2.bf16.msra.mxu0 0
      %1625 = vmatprep.subr.bf16.mxu0 0
      %1626 = vmatpush2.bf16.msra.mxu0 0
      %1627 = vmatprep.subr.bf16.mxu0 0
      %1628 = vmatpush2.bf16.msra.mxu0 0
      %1629 = vmatprep.subr.bf16.mxu0 0
      %1630 = vmatpush2.bf16.msra.mxu0 0
      %1631 = vmatprep.mubr.bf16.mxu0 0
      %1632 = vmatmul.mubr.bf16.gmra.mxu0 %v1530
      %v1633 = vpop.f32.mrf.mxu0
      %v1634 = vadd.f32 0.0, %v1633
      %v1635 = vpop.f32.mrf.mxu0
      %v1636 = vpop.f32.mrf.mxu0
      %v1637 = vadd.f32 0.0, %v1636
      %v1638 = vpop.f32.mrf.mxu0
      %1639 = vmatprep.mubr.bf16.mxu0 0
      %1640 = vmatmul.mubr.bf16.gmra.mxu0 %v1531
      %v1641 = vpop.f32.mrf.mxu0
      %v1642 = vadd.f32 0.0, %v1641
      %v1643 = vpop.f32.mrf.mxu0
      %v1644 = vpop.f32.mrf.mxu0
      %v1645 = vadd.f32 0.0, %v1644
      %v1646 = vpop.f32.mrf.mxu0
      %1647 = vmatprep.mubr.bf16.mxu0 0
      %1648 = vmatmul.mubr.bf16.gmra.mxu0 %v1532
      %v1649 = vpop.f32.mrf.mxu0
      %v1650 = vadd.f32 0.0, %v1649
      %v1651 = vpop.f32.mrf.mxu0
      %v1652 = vpop.f32.mrf.mxu0
      %v1653 = vadd.f32 0.0, %v1652
      %v1654 = vpop.f32.mrf.mxu0
      %1655 = vmatprep.mubr.bf16.mxu0 0
      %1656 = vmatmul.mubr.bf16.gmra.mxu0 %v1533
      %v1657 = vpop.f32.mrf.mxu0
      %v1658 = vadd.f32 0.0, %v1657
      %v1659 = vpop.f32.mrf.mxu0
      %v1660 = vpop.f32.mrf.mxu0
      %v1661 = vadd.f32 0.0, %v1660
      %v1662 = vpop.f32.mrf.mxu0
      %1663 = vdwg.mxu0
      %v1664 = vadd.f32 %v1514, %v1634
      %v1665 = vadd.f32 %v1515, %v1637
      %v1666 = vadd.f32 %v1516, %v1642
      %v1667 = vadd.f32 %v1517, %v1645
      %v1668 = vadd.f32 %v1518, %v1650
      %v1669 = vadd.f32 %v1519, %v1653
      %v1670 = vadd.f32 %v1520, %v1658
      %v1671 = vadd.f32 %v1521, %v1661
      %1672 = vst [vmem:[%s301] sm:$0xff] %v1664
      %1673 = vst [vmem:[%s301 + $0x8] sm:$0xff] %v1665
      %1674 = vst [vmem:[%s301 + $0x10] sm:$0xff] %v1666
      %1675 = vst [vmem:[%s301 + $0x18] sm:$0xff] %v1667
      %1676 = vst [vmem:[%s301 + $0x20] sm:$0xff] %v1668
      %1677 = vst [vmem:[%s301 + $0x28] sm:$0xff] %v1669
      %1678 = vst [vmem:[%s301 + $0x30] sm:$0xff] %v1670
      %1679 = vst [vmem:[%s301 + $0x38] sm:$0xff] %v1671
      %v1680 = vadd.f32 %v1664, %v1665
      %v1681 = vadd.f32 %v1680, %v1666
      %v1682 = vadd.f32 %v1681, %v1667
      %v1683 = vadd.f32 %v1682, %v1668
      %v1684 = vadd.f32 %v1683, %v1669
      %v1685 = vadd.f32 %v1684, %v1670
      %v1686 = vadd.f32 %v1685, %v1671
      %v1687 = vrot.slane %v1686, 4
      %v1688 = vadd.f32 %v1686, %v1687
      %v1689 = vrot.slane %v1688, 2
      %v1690 = vadd.f32 %v1688, %v1689
      %v1691 = vrot.slane %v1690, 1
      %v1692 = vadd.f32 %v1690, %v1691
      %v1693 = vmul.f32 %v1664, %v1664
      %v1694 = vmul.f32 %v1665, %v1665
      %v1695 = vmul.f32 %v1666, %v1666
      %v1696 = vmul.f32 %v1667, %v1667
      %v1697 = vmul.f32 %v1668, %v1668
      %v1698 = vmul.f32 %v1669, %v1669
      %v1699 = vmul.f32 %v1670, %v1670
      %v1700 = vmul.f32 %v1671, %v1671
      %v1701 = vadd.f32 %v1693, %v1694
      %v1702 = vadd.f32 %v1701, %v1695
      %v1703 = vadd.f32 %v1702, %v1696
      %v1704 = vadd.f32 %v1703, %v1697
      %v1705 = vadd.f32 %v1704, %v1698
      %v1706 = vadd.f32 %v1705, %v1699
      %v1707 = vadd.f32 %v1706, %v1700
      %v1708 = vrot.slane %v1707, 4
      %v1709 = vadd.f32 %v1707, %v1708
      %v1710 = vrot.slane %v1709, 2
      %v1711 = vadd.f32 %v1709, %v1710
      %v1712 = vrot.slane %v1711, 1
      %v1713 = vadd.f32 %v1711, %v1712
      %vm1714 = vcmask 1040384
      %v1715 = vsel %vm1714, %v1692, %v1713
      %1716 = vst [vmem:[%s308] sm:$0x3] %v1715
      %v1717 = vld [vmem:[%s916] sm:$0xff]
      %v1718 = vld [vmem:[%s916 + $0x10] sm:$0xff]
      %v1719 = vld [vmem:[%s916 + $0x20] sm:$0xff]
      %v1720 = vld [vmem:[%s916 + $0x30] sm:$0xff]
      %v1721 = vld [vmem:[%s916 + $0x40] sm:$0xff]
      %v1722 = vld [vmem:[%s916 + $0x50] sm:$0xff]
      %v1723 = vld [vmem:[%s916 + $0x60] sm:$0xff]
      %v1724 = vld [vmem:[%s916 + $0x70] sm:$0xff]
      %v1725 = vpack.c.bf16 %v1718, %v1717
      %v1726 = vpack.c.bf16 %v1720, %v1719
      %v1727 = vpack.c.bf16 %v1722, %v1721
      %v1728 = vpack.c.bf16 %v1724, %v1723
      %v1729 = vld [vmem:[%s2] sm:$0xf]
      %v1730 = vld [vmem:[%s2 + $0x4] sm:$0xf]
      %v1731 = vld [vmem:[%s2 + $0x8] sm:$0xf]
      %v1732 = vld [vmem:[%s2 + $0xc] sm:$0xf]
      %v1733 = vld [vmem:[%s2 + $0x10] sm:$0xf]
      %v1734 = vld [vmem:[%s2 + $0x14] sm:$0xf]
      %v1735 = vld [vmem:[%s2 + $0x18] sm:$0xf]
      %v1736 = vld [vmem:[%s2 + $0x1c] sm:$0xf]
      %v1737 = vld [vmem:[%s2 + $0x20] sm:$0xf]
      %v1738 = vld [vmem:[%s2 + $0x24] sm:$0xf]
      %v1739 = vld [vmem:[%s2 + $0x28] sm:$0xf]
      %v1740 = vld [vmem:[%s2 + $0x2c] sm:$0xf]
      %v1741 = vld [vmem:[%s2 + $0x30] sm:$0xf]
      %v1742 = vld [vmem:[%s2 + $0x34] sm:$0xf]
      %v1743 = vld [vmem:[%s2 + $0x38] sm:$0xf]
      %v1744 = vld [vmem:[%s2 + $0x3c] sm:$0xf]
      %v1761 = vunpack.c.l.b16 %v1729
      %v1762 = vunpack.c.l.b16 %v1730
      %v1763 = vunpack.c.l.b16 %v1731
      %v1764 = vunpack.c.l.b16 %v1732
      %v1765 = vunpack.c.l.b16 %v1733
      %v1766 = vunpack.c.l.b16 %v1734
      %v1767 = vunpack.c.l.b16 %v1735
      %v1768 = vunpack.c.l.b16 %v1736
      %v1769 = vunpack.c.l.b16 %v1737
      %v1770 = vunpack.c.l.b16 %v1738
      %v1771 = vunpack.c.l.b16 %v1739
      %v1772 = vunpack.c.l.b16 %v1740
      %v1773 = vunpack.c.l.b16 %v1741
      %v1774 = vunpack.c.l.b16 %v1742
      %v1775 = vunpack.c.l.b16 %v1743
      %v1776 = vunpack.c.l.b16 %v1744
      %v1777 = vpack.c.b16 %v1762, %v1761
      %v1778 = vpack.c.b16 %v1764, %v1763
      %v1779 = vpack.c.b16 %v1766, %v1765
      %v1780 = vpack.c.b16 %v1768, %v1767
      %v1781 = vpack.c.b16 %v1770, %v1769
      %v1782 = vpack.c.b16 %v1772, %v1771
      %v1783 = vpack.c.b16 %v1774, %v1773
      %v1784 = vpack.c.b16 %v1776, %v1775
      %1793 = vmatprep.subr.bf16.mxu0 0
      %1794 = vmatpush1.bf16.msra.mxu0 %v1784
      %1795 = vmatprep.subr.bf16.mxu0 0
      %1796 = vmatpush1.bf16.msra.mxu0 %v1783
      %1797 = vmatprep.subr.bf16.mxu0 0
      %1798 = vmatpush1.bf16.msra.mxu0 %v1782
      %1799 = vmatprep.subr.bf16.mxu0 0
      %1800 = vmatpush1.bf16.msra.mxu0 %v1781
      %1801 = vmatprep.subr.bf16.mxu0 0
      %1802 = vmatpush1.bf16.msra.mxu0 %v1780
      %1803 = vmatprep.subr.bf16.mxu0 0
      %1804 = vmatpush1.bf16.msra.mxu0 %v1779
      %1805 = vmatprep.subr.bf16.mxu0 0
      %1806 = vmatpush1.bf16.msra.mxu0 %v1778
      %1807 = vmatprep.subr.bf16.mxu0 0
      %1808 = vmatpush1.bf16.msra.mxu0 %v1777
      %1809 = vmatprep.subr.bf16.mxu0 0
      %1810 = vmatpush2.bf16.msra.mxu0 0
      %1811 = vmatprep.subr.bf16.mxu0 0
      %1812 = vmatpush2.bf16.msra.mxu0 0
      %1813 = vmatprep.subr.bf16.mxu0 0
      %1814 = vmatpush2.bf16.msra.mxu0 0
      %1815 = vmatprep.subr.bf16.mxu0 0
      %1816 = vmatpush2.bf16.msra.mxu0 0
      %1817 = vmatprep.subr.bf16.mxu0 0
      %1818 = vmatpush2.bf16.msra.mxu0 0
      %1819 = vmatprep.subr.bf16.mxu0 0
      %1820 = vmatpush2.bf16.msra.mxu0 0
      %1821 = vmatprep.subr.bf16.mxu0 0
      %1822 = vmatpush2.bf16.msra.mxu0 0
      %1823 = vmatprep.subr.bf16.mxu0 0
      %1824 = vmatpush2.bf16.msra.mxu0 0
      %1825 = vmatprep.mubr.bf16.mxu0 0
      %1826 = vmatmul.mubr.bf16.gmra.mxu0 %v1725
      %v1827 = vpop.f32.mrf.mxu0
      %v1828 = vadd.f32 0.0, %v1827
      %v1829 = vpop.f32.mrf.mxu0
      %v1830 = vpop.f32.mrf.mxu0
      %v1831 = vadd.f32 0.0, %v1830
      %v1832 = vpop.f32.mrf.mxu0
      %1833 = vmatprep.mubr.bf16.mxu0 0
      %1834 = vmatmul.mubr.bf16.gmra.mxu0 %v1726
      %v1835 = vpop.f32.mrf.mxu0
      %v1836 = vadd.f32 0.0, %v1835
      %v1837 = vpop.f32.mrf.mxu0
      %v1838 = vpop.f32.mrf.mxu0
      %v1839 = vadd.f32 0.0, %v1838
      %v1840 = vpop.f32.mrf.mxu0
      %1841 = vmatprep.mubr.bf16.mxu0 0
      %1842 = vmatmul.mubr.bf16.gmra.mxu0 %v1727
      %v1843 = vpop.f32.mrf.mxu0
      %v1844 = vadd.f32 0.0, %v1843
      %v1845 = vpop.f32.mrf.mxu0
      %v1846 = vpop.f32.mrf.mxu0
      %v1847 = vadd.f32 0.0, %v1846
      %v1848 = vpop.f32.mrf.mxu0
      %1849 = vmatprep.mubr.bf16.mxu0 0
      %1850 = vmatmul.mubr.bf16.gmra.mxu0 %v1728
      %v1851 = vpop.f32.mrf.mxu0
      %v1852 = vadd.f32 0.0, %v1851
      %v1853 = vpop.f32.mrf.mxu0
      %v1854 = vpop.f32.mrf.mxu0
      %v1855 = vadd.f32 0.0, %v1854
      %v1856 = vpop.f32.mrf.mxu0
      %1857 = vdwg.mxu0
      %1858 = vst [vmem:[%s315] sm:$0xff] %v1828
      %1859 = vst [vmem:[%s315 + $0x8] sm:$0xff] %v1831
      %1860 = vst [vmem:[%s315 + $0x10] sm:$0xff] %v1836
      %1861 = vst [vmem:[%s315 + $0x18] sm:$0xff] %v1839
      %1862 = vst [vmem:[%s315 + $0x20] sm:$0xff] %v1844
      %1863 = vst [vmem:[%s315 + $0x28] sm:$0xff] %v1847
      %1864 = vst [vmem:[%s315 + $0x30] sm:$0xff] %v1852
      %1865 = vst [vmem:[%s315 + $0x38] sm:$0xff] %v1855
      %v1866 = vadd.f32 %v1828, %v1831
      %v1867 = vadd.f32 %v1866, %v1836
      %v1868 = vadd.f32 %v1867, %v1839
      %v1869 = vadd.f32 %v1868, %v1844
      %v1870 = vadd.f32 %v1869, %v1847
      %v1871 = vadd.f32 %v1870, %v1852
      %v1872 = vadd.f32 %v1871, %v1855
      %v1873 = vrot.slane %v1872, 4
      %v1874 = vadd.f32 %v1872, %v1873
      %v1875 = vrot.slane %v1874, 2
      %v1876 = vadd.f32 %v1874, %v1875
      %v1877 = vrot.slane %v1876, 1
      %v1878 = vadd.f32 %v1876, %v1877
      %v1879 = vmul.f32 %v1828, %v1828
      %v1880 = vmul.f32 %v1831, %v1831
      %v1881 = vmul.f32 %v1836, %v1836
      %v1882 = vmul.f32 %v1839, %v1839
      %v1883 = vmul.f32 %v1844, %v1844
      %v1884 = vmul.f32 %v1847, %v1847
      %v1885 = vmul.f32 %v1852, %v1852
      %v1886 = vmul.f32 %v1855, %v1855
      %v1887 = vadd.f32 %v1879, %v1880
      %v1888 = vadd.f32 %v1887, %v1881
      %v1889 = vadd.f32 %v1888, %v1882
      %v1890 = vadd.f32 %v1889, %v1883
      %v1891 = vadd.f32 %v1890, %v1884
      %v1892 = vadd.f32 %v1891, %v1885
      %v1893 = vadd.f32 %v1892, %v1886
      %v1894 = vrot.slane %v1893, 4
      %v1895 = vadd.f32 %v1893, %v1894
      %v1896 = vrot.slane %v1895, 2
      %v1897 = vadd.f32 %v1895, %v1896
      %v1898 = vrot.slane %v1897, 1
      %v1899 = vadd.f32 %v1897, %v1898
      %v1900 = vsel %vm1714, %v1878, %v1899
      %1901 = vst [vmem:[%s322] sm:$0x3] %v1900
      %s1902 = sadd.s32 %s22, %s23
      %s1903 = smul.u32 8, %s1902
      %p1904 = scmp.lt.s32.totalorder %s1903, 15
      %s1905 = scalar_select %p1904, %s1903, 15
      %s1906 = smul.addr %s1905, 8
      %s1907 = scalar_lea.vmem %s3, %s1906
      %s1908 = sadd.s32 %s22, %s23
      %p1909 = scmp.lt.s32.totalorder %s1908, 1
      %s1910 = scalar_select %p1909, %s1908, 1
      %s1911 = smul.addr %s1910, 2
      %s1912 = scalar_lea.vmem %s4, %s1911
      %s1913 = sadd.s32 %s22, %s23
      %s1914 = smul.u32 8, %s1913
      %p1915 = scmp.lt.s32.totalorder %s1914, 15
      %s1916 = scalar_select %p1915, %s1914, 15
      %s1917 = smul.addr %s1916, 8
      %s1918 = scalar_lea.vmem %s5, %s1917
      %s1919 = sadd.s32 %s22, %s23
      %p1920 = scmp.lt.s32.totalorder %s1919, 1
      %s1921 = scalar_select %p1920, %s1919, 1
      %s1922 = smul.addr %s1921, 2
      %s1923 = scalar_lea.vmem %s6, %s1922
      // Predicated region
      $region33: #{_lambda_.4} parent=31 // pred_check
        %p1924 = pneg %p118
      $region34: #{_lambda_.4} parent=31 // pred_check_branch
        %1926 = sbr.rel (%p1924) target = $region36
      $region35: #{_lambda_.4} parent=31 // pred_region
        %s1927 = sadd.s32 %s22, %s23
        %s1928 = smul.u32 8, %s1927
      $region36: #{_lambda_.4} parent=31 // pred_fallthru
        _
      // Predicated region
      $region37: #{_lambda_.4} parent=31 // pred_check
        %p1929 = pneg %p146
      $region38: #{_lambda_.4} parent=31 // pred_check_branch
        %1931 = sbr.rel (%p1929) target = $region40
      $region39: #{_lambda_.4} parent=31 // pred_region
        %s1932 = sadd.s32 %s22, %s23
      $region40: #{_lambda_.4} parent=31 // pred_fallthru
        _
      // Predicated region
      $region41: #{_lambda_.4} parent=31 // pred_check
        %p1933 = pneg %p174
      $region42: #{_lambda_.4} parent=31 // pred_check_branch
        %1935 = sbr.rel (%p1933) target = $region44
      $region43: #{_lambda_.4} parent=31 // pred_region
        %s1936 = sadd.s32 %s22, %s23
        %s1937 = smul.u32 8, %s1936
      $region44: #{_lambda_.4} parent=31 // pred_fallthru
        _
      // Predicated region
      $region45: #{_lambda_.4} parent=31 // pred_check
        %p1938 = pneg %p202
      $region46: #{_lambda_.4} parent=31 // pred_check_branch
        %1940 = sbr.rel (%p1938) target = $region48
      $region47: #{_lambda_.4} parent=31 // pred_region
        %s1941 = sadd.s32 %s22, %s23
      $region48: #{_lambda_.4} parent=31 // pred_fallthru
        _
    $region32: #{_lambda_.4} parent=5 // pred_fallthru
      _
    %p1942 = scmp.le.s32.totalorder 2, %s13
    // Predicated region
    $region49: #{_lambda_.4} parent=5 // pred_check
      %p1943 = pneg %p1942
    $region50: #{_lambda_.4} parent=5 // pred_check_branch
      %1945 = sbr.rel (%p1943) target = $region52
    $region51: #{_lambda_.4} parent=5 // pred_region
      %s1946 = ssub.s32 %s13, 2
      // Predicated region
      $region53: #{_lambda_.4} parent=51 // pred_check
        %p1947 = pneg %p124
      $region54: #{_lambda_.4} parent=51 // pred_check_branch
        %1949 = sbr.rel (%p1947) target = $region56
      $region55: #{_lambda_.4} parent=51 // pred_region
        %s1950 = sadd.s32 %s24, %s25
        %s1951 = smul.u32 8, %s1950
        %p1952 = scmp.lt.s32.totalorder %s1951, 15
        %s1953 = scalar_select %p1952, %s1951, 15
        %s1954 = smul.addr %s1953, 8
        %s1955 = scalar_lea.vmem %s3, %s1954
      $region56: #{_lambda_.4} parent=51 // pred_fallthru
        _
      // Predicated region
      $region57: #{_lambda_.4} parent=51 // pred_check
        %p1956 = pneg %p152
      $region58: #{_lambda_.4} parent=51 // pred_check_branch
        %1958 = sbr.rel (%p1956) target = $region60
      $region59: #{_lambda_.4} parent=51 // pred_region
        %s1959 = sadd.s32 %s24, %s25
        %p1960 = scmp.lt.s32.totalorder %s1959, 1
        %s1961 = scalar_select %p1960, %s1959, 1
        %s1962 = smul.addr %s1961, 2
        %s1963 = scalar_lea.vmem %s4, %s1962
      $region60: #{_lambda_.4} parent=51 // pred_fallthru
        _
      // Predicated region
      $region61: #{_lambda_.4} parent=51 // pred_check
        %p1964 = pneg %p180
      $region62: #{_lambda_.4} parent=51 // pred_check_branch
        %1966 = sbr.rel (%p1964) target = $region64
      $region63: #{_lambda_.4} parent=51 // pred_region
        %s1967 = sadd.s32 %s24, %s25
        %s1968 = smul.u32 8, %s1967
        %p1969 = scmp.lt.s32.totalorder %s1968, 15
        %s1970 = scalar_select %p1969, %s1968, 15
        %s1971 = smul.addr %s1970, 8
        %s1972 = scalar_lea.vmem %s5, %s1971
      $region64: #{_lambda_.4} parent=51 // pred_fallthru
        _
      // Predicated region
      $region65: #{_lambda_.4} parent=51 // pred_check
        %p1973 = pneg %p208
      $region66: #{_lambda_.4} parent=51 // pred_check_branch
        %1975 = sbr.rel (%p1973) target = $region68
      $region67: #{_lambda_.4} parent=51 // pred_region
        %s1976 = sadd.s32 %s24, %s25
        %p1977 = scmp.lt.s32.totalorder %s1976, 1
        %s1978 = scalar_select %p1977, %s1976, 1
        %s1979 = smul.addr %s1978, 2
        %s1980 = scalar_lea.vmem %s6, %s1979
      $region68: #{_lambda_.4} parent=51 // pred_fallthru
        _
    $region52: #{_lambda_.4} parent=5 // pred_fallthru
      _
  $region6: #{_lambda_.4} parent=0 // loop_footer
    %s17 = sadd.s32 1, %s13
  $region7: #{_lambda_.4} parent=0 // loop_footer_branch
    %12 = sbr.rel target = $region3
  $region8: #{_lambda_.4} parent=0 // loop_exit
    _

// kernel: _lambda_.6
$region0: #{_lambda_.6}
  #allocation0 [shape = 'u32[]', space=smem, size = 0x4, offset = 0x4, fixed_abs, tag = 'smem constant byte address 0x4 - core index']
  #allocation1 [shape = 'u32[144,128]{1,0:T(1,128)}', space=vmem, size = 0x12000, scoped, tag = 'internal scratch']
  %s0 = inlined_call_operand.vmem [shape: bf16[2,10,10,128], index: 0, kind: input, shape index: {}]
  %s1 = inlined_call_operand.vmem [shape: bf16[9,128,128], index: 1, kind: input, shape index: {}]
  %s2 = inlined_call_operand.vmem [shape: f32[128,128], index: 2, kind: output, shape index: {0}]
  %s3 = inlined_call_operand.vmem [shape: f32[2,2,128], index: 3, kind: output, shape index: {1}]
  %4 = xla_tuple %s2, %s3
  %s5 = sld [smem:[#allocation0]]
  $region49: #{_lambda_.6} parent=0
    _
  %s7 = ssub.s32 1, %s5
  %s8 = scalar_select 0, %s7, %s5
  loop: start=0, step=1, limit=4
  $region2: #{_lambda_.6} parent=0 // loop_pre_header
    _
  $region3: #{_lambda_.6} parent=0 // loop_header
    %s10 = sphi 0, %s14
    %p11 = scmp.ge.s32.totalorder %s10, 4
    %s17 = sphi 0, %s29
    %s18 = sphi 0, %s25
    %s19 = sphi 0, %s17
    %s20 = sphi 0, %s18
    %s21 = sphi 0, %s19
    %s22 = sphi 0, %s20
    %s32 = sphi 0, %s34
    %s35 = sphi 0, %s32
    %s36 = sphi 0, %s35
    %s52 = sphi 0, %s36
    %s56 = sphi 0, %s56
    %s58 = sphi 0, %s56
    %s59 = sphi 0, %s58
    %s73 = sphi 0, %s59
    %s81 = sphi 0, %s83
    %s84 = sphi 0, %s81
    %s85 = sphi 0, %s84
    %s101 = sphi 0, %s85
    %s109 = sphi 0, %s111
    %s112 = sphi 0, %s109
    %s113 = sphi 0, %s112
    %s129 = sphi 0, %s113
  $region4: #{_lambda_.6} parent=0 // loop_header_branch
    %13 = sbr.rel (%p11) target = $region8
  $region5: #{_lambda_.6} parent=0 // loop_body
    %s15 = ssub.s32 %s10, 1
    %s16 = ssub.s32 %s10, 2
    %s23 = sadd.s32 1, %s18
    %p24 = scmp.ge.s32.totalorder %s23, 1
    %s25 = scalar_select %p24, 0, %s23
    %s26 = sadd.s32 1, %s17
    %s27 = scalar_select %p24, %s26, %s17
    %p28 = scmp.ge.s32.totalorder %s27, 2
    %s29 = scalar_select %p28, 0, %s27
    %s30 = ssub.s32 %s17, %s29
    %p31 = scmp.eq.s32.totalorder %s30, 0
    %s33 = sadd.s32 %s32, 1
    %s34 = scalar_select %p31, %s32, %s33
    %p37 = pneg %p31
    %p38 = scmp.eq.s32.totalorder %s10, 1
    %p39 = por %p37, %p38
    %p40 = scmp.ne.s32.totalorder %s32, %s35
    %p41 = scmp.eq.s32.totalorder %s10, 0
    %p42 = por %p40, %p41
    %p43 = scmp.ne.s32.totalorder %s32, %s35
    %p44 = scmp.eq.s32.totalorder %s15, 1
    %p45 = por %p43, %p44
    %p46 = scmp.ne.s32.totalorder %s35, %s36
    %p47 = scmp.eq.s32.totalorder %s15, 0
    %p48 = por %p46, %p47
    %p49 = scmp.ne.s32.totalorder %s35, %s36
    %p50 = scmp.eq.s32.totalorder %s16, 1
    %p51 = por %p49, %p50
    %p53 = scmp.ne.s32.totalorder %s36, %s52
    %p54 = scmp.eq.s32.totalorder %s16, 0
    %p55 = por %p53, %p54
    %s57 = sadd.s32 %s56, 1
    %p60 = scmp.eq.s32.totalorder %s10, 1
    %p61 = scmp.ne.s32.totalorder %s56, %s58
    %p62 = scmp.eq.s32.totalorder %s10, 0
    %p63 = por %p61, %p62
    %p64 = scmp.ne.s32.totalorder %s56, %s58
    %p65 = scmp.eq.s32.totalorder %s15, 1
    %p66 = por %p64, %p65
    %p67 = scmp.ne.s32.totalorder %s58, %s59
    %p68 = scmp.eq.s32.totalorder %s15, 0
    %p69 = por %p67, %p68
    %p70 = scmp.ne.s32.totalorder %s58, %s59
    %p71 = scmp.eq.s32.totalorder %s16, 1
    %p72 = por %p70, %p71
    %p74 = scmp.ne.s32.totalorder %s59, %s73
    %p75 = scmp.eq.s32.totalorder %s16, 0
    %p76 = por %p74, %p75
    %s77 = sadd.s32 %s17, %s18
    %s78 = sadd.s32 %s29, %s25
    %s79 = ssub.s32 %s77, %s78
    %p80 = scmp.eq.s32.totalorder %s79, 0
    %s82 = sadd.s32 %s81, 1
    %s83 = scalar_select %p80, %s81, %s82
    %p86 = pneg %p80
    %p87 = scmp.eq.s32.totalorder %s10, 1
    %p88 = por %p86, %p87
    %p89 = scmp.ne.s32.totalorder %s81, %s84
    %p90 = scmp.eq.s32.totalorder %s10, 0
    %p91 = por %p89, %p90
    %p92 = scmp.ne.s32.totalorder %s81, %s84
    %p93 = scmp.eq.s32.totalorder %s15, 1
    %p94 = por %p92, %p93
    %p95 = scmp.ne.s32.totalorder %s84, %s85
    %p96 = scmp.eq.s32.totalorder %s15, 0
    %p97 = por %p95, %p96
    %p98 = scmp.ne.s32.totalorder %s84, %s85
    %p99 = scmp.eq.s32.totalorder %s16, 1
    %p100 = por %p98, %p99
    %p102 = scmp.ne.s32.totalorder %s85, %s101
    %p103 = scmp.eq.s32.totalorder %s16, 0
    %p104 = por %p102, %p103
    %s105 = sadd.s32 %s17, %s18
    %s106 = sadd.s32 %s29, %s25
    %s107 = ssub.s32 %s105, %s106
    %p108 = scmp.eq.s32.totalorder %s107, 0
    %s110 = sadd.s32 %s109, 1
    %s111 = scalar_select %p108, %s109, %s110
    %p114 = pneg %p108
    %p115 = scmp.eq.s32.totalorder %s10, 1
    %p116 = por %p114, %p115
    %p117 = scmp.ne.s32.totalorder %s109, %s112
    %p118 = scmp.eq.s32.totalorder %s10, 0
    %p119 = por %p117, %p118
    %p120 = scmp.ne.s32.totalorder %s109, %s112
    %p121 = scmp.eq.s32.totalorder %s15, 1
    %p122 = por %p120, %p121
    %p123 = scmp.ne.s32.totalorder %s112, %s113
    %p124 = scmp.eq.s32.totalorder %s15, 0
    %p125 = por %p123, %p124
    %p126 = scmp.ne.s32.totalorder %s112, %s113
    %p127 = scmp.eq.s32.totalorder %s16, 1
    %p128 = por %p126, %p127
    %p130 = scmp.ne.s32.totalorder %s113, %s129
    %p131 = scmp.eq.s32.totalorder %s16, 0
    %p132 = por %p130, %p131
    %p133 = scmp.le.s32.totalorder 1, %s10
    %p134 = scmp.lt.s32.totalorder %s10, 3
    %p135 = pnand %p133, %p134
    %p136 = pneg %p135
    // Predicated region
    $region9: #{_lambda_.6} parent=5 // pred_check
      _
    $region10: #{_lambda_.6} parent=5 // pred_check_branch
      %138 = sbr.rel (%p135) target = $region12
    $region11: #{_lambda_.6} parent=5 // pred_region
      %s139 = ssub.s32 %s10, 1
      // Predicated region
      $region13: #{_lambda_.6} parent=11 // pred_check
        %p140 = pneg %p69
      $region14: #{_lambda_.6} parent=11 // pred_check_branch
        %142 = sbr.rel (%p140) target = $region16
      $region15: #{_lambda_.6} parent=11 // pred_region
        _
      $region16: #{_lambda_.6} parent=11 // pred_fallthru
        _
    $region12: #{_lambda_.6} parent=5 // pred_fallthru
      _
    %p143 = scmp.lt.s32.totalorder %s10, 2
    // Predicated region
    $region17: #{_lambda_.6} parent=5 // pred_check
      %p144 = pneg %p143
    $region18: #{_lambda_.6} parent=5 // pred_check_branch
      %146 = sbr.rel (%p144) target = $region20
    $region19: #{_lambda_.6} parent=5 // pred_region
      // Predicated region
      $region21: #{_lambda_.6} parent=19 // pred_check
        %p147 = pneg %p42
      $region22: #{_lambda_.6} parent=19 // pred_check_branch
        %149 = sbr.rel (%p147) target = $region24
      $region23: #{_lambda_.6} parent=19 // pred_region
        %p150 = scmp.lt.s32.totalorder %s17, 1
        %s151 = scalar_select %p150, %s17, 1
        %s152 = smul.addr %s151, 20
        %s153 = smul.addr %s152, 4
        %s154 = scalar_lea.vmem %s0, %s153
      $region24: #{_lambda_.6} parent=19 // pred_fallthru
        _
    $region20: #{_lambda_.6} parent=5 // pred_fallthru
      _
    %p155 = scmp.le.s32.totalorder 1, %s10
    %p156 = scmp.lt.s32.totalorder %s10, 3
    %p157 = pnand %p155, %p156
    %p158 = pneg %p157
    // Predicated region
    $region25: #{_lambda_.6} parent=5 // pred_check
      _
    $region26: #{_lambda_.6} parent=5 // pred_check_branch
      %160 = sbr.rel (%p157) target = $region28
    $region27: #{_lambda_.6} parent=5 // pred_region
      %s161 = ssub.s32 %s10, 1
      %p162 = scmp.lt.s32.totalorder %s19, 1
      %s163 = scalar_select %p162, %s19, 1
      %s164 = smul.addr %s163, 20
      %s165 = smul.addr %s164, 4
      %s166 = scalar_lea.vmem %s0, %s165
      %p167 = pneg %p48
      %p168 = pneg %p45
      %p169 = pneg %p69
      %p170 = pneg %p66
      %p171 = pneg %p97
      %p172 = pneg %p94
      %s173 = sadd.s32 %s19, %s20
      %s174 = smul.u32 8, %s173
      %p175 = scmp.lt.s32.totalorder %s174, 15
      %s176 = scalar_select %p175, %s174, 15
      %s177 = smul.addr %s176, 8
      %s178 = scalar_lea.vmem %s2, %s177
      %p179 = pneg %p125
      %p180 = pneg %p122
      %s181 = sadd.s32 %s19, %s20
      %p182 = scmp.lt.s32.totalorder %s181, 1
      %s183 = scalar_select %p182, %s181, 1
      %s184 = smul.addr %s183, 2
      %s185 = scalar_lea.vmem %s3, %s184
      %p186 = scmp.lt.s32.totalorder %s19, 1
      %s187 = scalar_select %p186, %s19, 1
      %s188 = smul.addr %s187, 20
      %s189 = smul.addr %s188, 4
      %s190 = scalar_lea.vmem %s0, %s189
      %s191 = sadd.s32 %s19, %s20
      %s192 = smul.u32 8, %s191
      %p193 = scmp.lt.s32.totalorder %s192, 15
      %s194 = scalar_select %p193, %s192, 15
      %s195 = smul.addr %s194, 8
      %s196 = scalar_lea.vmem %s2, %s195
      %s197 = sadd.s32 %s19, %s20
      %s198 = smul.u32 8, %s197
      %s199 = sadd.s32 %s19, %s20
      %p200 = scmp.lt.s32.totalorder %s199, 1
      %s201 = scalar_select %p200, %s199, 1
      %s202 = smul.addr %s201, 2
      %s203 = scalar_lea.vmem %s3, %s202
      %s204 = sadd.s32 %s19, %s20
      %s206 = smul.u32 %s20, 8
      %s207 = smul.u32 %s206, 2
      %s208 = smul.addr %s207, 4
      %s209 = scalar_lea.vmem %s190, %s208
      %v210 = vld [vmem:[%s209] sm:$0xf]
      %v211 = vld [vmem:[%s209 + $0x8] sm:$0xf]
      %v212 = vld [vmem:[%s209 + $0x10] sm:$0xf]
      %v213 = vld [vmem:[%s209 + $0x18] sm:$0xf]
      %v214 = vld [vmem:[%s209 + $0x20] sm:$0xf]
      %v215 = vld [vmem:[%s209 + $0x28] sm:$0xf]
      %v216 = vld [vmem:[%s209 + $0x30] sm:$0xf]
      %v217 = vld [vmem:[%s209 + $0x38] sm:$0xf]
      %v218 = vld [vmem:[%s1] sm:$0xf]
      %v219 = vld [vmem:[%s1 + $0x4] sm:$0xf]
      %v220 = vld [vmem:[%s1 + $0x8] sm:$0xf]
      %v221 = vld [vmem:[%s1 + $0xc] sm:$0xf]
      %v222 = vld [vmem:[%s1 + $0x10] sm:$0xf]
      %v223 = vld [vmem:[%s1 + $0x14] sm:$0xf]
      %v224 = vld [vmem:[%s1 + $0x18] sm:$0xf]
      %v225 = vld [vmem:[%s1 + $0x1c] sm:$0xf]
      %v226 = vld [vmem:[%s1 + $0x20] sm:$0xf]
      %v227 = vld [vmem:[%s1 + $0x24] sm:$0xf]
      %v228 = vld [vmem:[%s1 + $0x28] sm:$0xf]
      %v229 = vld [vmem:[%s1 + $0x2c] sm:$0xf]
      %v230 = vld [vmem:[%s1 + $0x30] sm:$0xf]
      %v231 = vld [vmem:[%s1 + $0x34] sm:$0xf]
      %v232 = vld [vmem:[%s1 + $0x38] sm:$0xf]
      %v233 = vld [vmem:[%s1 + $0x3c] sm:$0xf]
      %v234 = vld [vmem:[%s209 + $0x4] sm:$0x1]
      %v235 = vld [vmem:[%s209 + $0xc] sm:$0x1]
      %v236 = vld [vmem:[%s209 + $0x14] sm:$0x1]
      %v237 = vld [vmem:[%s209 + $0x1c] sm:$0x1]
      %v238 = vld [vmem:[%s209 + $0x24] sm:$0x1]
      %v239 = vld [vmem:[%s209 + $0x2c] sm:$0x1]
      %v240 = vld [vmem:[%s209 + $0x34] sm:$0x1]
      %v241 = vld [vmem:[%s209 + $0x3c] sm:$0x1]
      %vm242 = vsmask.f32 3328
      %vm243 = vsmask.f32 7440
      %vm244 = vmor %vm242, %vm243
      %v246 = vshrl.u32 %v210, 16
      %v248 = vrot.slane %v246, 4
      %v249 = vshll.u32 %v210, 16
      %v251 = vrot.slane %v249, 5
      %v252 = vor.u32 %v248, %v251
      %v253 = vrot.slane %v252, 4
      %v255 = vshll.u32 %v234, 16
      %v257 = vrot.slane %v255, 5
      %v258 = vsel %vm244, %v253, %v257
      %v260 = vshrl.u32 %v211, 16
      %v262 = vrot.slane %v260, 4
      %v263 = vshll.u32 %v211, 16
      %v265 = vrot.slane %v263, 5
      %v266 = vor.u32 %v262, %v265
      %v267 = vrot.slane %v266, 4
      %v269 = vshll.u32 %v235, 16
      %v271 = vrot.slane %v269, 5
      %v272 = vsel %vm244, %v267, %v271
      %v274 = vshrl.u32 %v212, 16
      %v276 = vrot.slane %v274, 4
      %v277 = vshll.u32 %v212, 16
      %v279 = vrot.slane %v277, 5
      %v280 = vor.u32 %v276, %v279
      %v281 = vrot.slane %v280, 4
      %v283 = vshll.u32 %v236, 16
      %v285 = vrot.slane %v283, 5
      %v286 = vsel %vm244, %v281, %v285
      %v288 = vshrl.u32 %v213, 16
      %v290 = vrot.slane %v288, 4
      %v291 = vshll.u32 %v213, 16
      %v293 = vrot.slane %v291, 5
      %v294 = vor.u32 %v290, %v293
      %v295 = vrot.slane %v294, 4
      %v297 = vshll.u32 %v237, 16
      %v299 = vrot.slane %v297, 5
      %v300 = vsel %vm244, %v295, %v299
      %v302 = vshrl.u32 %v214, 16
      %v304 = vrot.slane %v302, 4
      %v305 = vshll.u32 %v214, 16
      %v307 = vrot.slane %v305, 5
      %v308 = vor.u32 %v304, %v307
      %v309 = vrot.slane %v308, 4
      %v311 = vshll.u32 %v238, 16
      %v313 = vrot.slane %v311, 5
      %v314 = vsel %vm244, %v309, %v313
      %v316 = vshrl.u32 %v215, 16
      %v318 = vrot.slane %v316, 4
      %v319 = vshll.u32 %v215, 16
      %v321 = vrot.slane %v319, 5
      %v322 = vor.u32 %v318, %v321
      %v323 = vrot.slane %v322, 4
      %v325 = vshll.u32 %v239, 16
      %v327 = vrot.slane %v325, 5
      %v328 = vsel %vm244, %v323, %v327
      %v330 = vshrl.u32 %v216, 16
      %v332 = vrot.slane %v330, 4
      %v333 = vshll.u32 %v216, 16
      %v335 = vrot.slane %v333, 5
      %v336 = vor.u32 %v332, %v335
      %v337 = vrot.slane %v336, 4
      %v339 = vshll.u32 %v240, 16
      %v341 = vrot.slane %v339, 5
      %v342 = vsel %vm244, %v337, %v341
      %v344 = vshrl.u32 %v217, 16
      %v346 = vrot.slane %v344, 4
      %v347 = vshll.u32 %v217, 16
      %v349 = vrot.slane %v347, 5
      %v350 = vor.u32 %v346, %v349
      %v351 = vrot.slane %v350, 4
      %v353 = vshll.u32 %v241, 16
      %v355 = vrot.slane %v353, 5
      %v356 = vsel %vm244, %v351, %v355
      %s357 = scalar_lea.vmem %s1, 64
      %v358 = vld [vmem:[%s357] sm:$0xf]
      %v359 = vld [vmem:[%s357 + $0x4] sm:$0xf]
      %v360 = vld [vmem:[%s357 + $0x8] sm:$0xf]
      %v361 = vld [vmem:[%s357 + $0xc] sm:$0xf]
      %v362 = vld [vmem:[%s357 + $0x10] sm:$0xf]
      %v363 = vld [vmem:[%s357 + $0x14] sm:$0xf]
      %v364 = vld [vmem:[%s357 + $0x18] sm:$0xf]
      %v365 = vld [vmem:[%s357 + $0x1c] sm:$0xf]
      %v366 = vld [vmem:[%s357 + $0x20] sm:$0xf]
      %v367 = vld [vmem:[%s357 + $0x24] sm:$0xf]
      %v368 = vld [vmem:[%s357 + $0x28] sm:$0xf]
      %v369 = vld [vmem:[%s357 + $0x2c] sm:$0xf]
      %v370 = vld [vmem:[%s357 + $0x30] sm:$0xf]
      %v371 = vld [vmem:[%s357 + $0x34] sm:$0xf]
      %v372 = vld [vmem:[%s357 + $0x38] sm:$0xf]
      %v373 = vld [vmem:[%s357 + $0x3c] sm:$0xf]
      %v374 = vunpack.c.l.b16 %v258
      %v375 = vunpack.c.l.b16 %v272
      %v376 = vunpack.c.l.b16 %v286
      %v377 = vunpack.c.l.b16 %v300
      %v378 = vunpack.c.l.b16 %v314
      %v379 = vunpack.c.l.b16 %v328
      %v380 = vunpack.c.l.b16 %v342
      %v381 = vunpack.c.l.b16 %v356
      %v382 = vpack.c.b16 %v375, %v374
      %v383 = vpack.c.b16 %v377, %v376
      %v384 = vpack.c.b16 %v379, %v378
      %v385 = vpack.c.b16 %v381, %v380
      %v406 = vunpack.c.l.b16 %v358
      %v407 = vunpack.c.l.b16 %v359
      %v408 = vunpack.c.l.b16 %v360
      %v409 = vunpack.c.l.b16 %v361
      %v410 = vunpack.c.l.b16 %v362
      %v411 = vunpack.c.l.b16 %v363
      %v412 = vunpack.c.l.b16 %v364
      %v413 = vunpack.c.l.b16 %v365
      %v414 = vunpack.c.l.b16 %v366
      %v415 = vunpack.c.l.b16 %v367
      %v416 = vunpack.c.l.b16 %v368
      %v417 = vunpack.c.l.b16 %v369
      %v418 = vunpack.c.l.b16 %v370
      %v419 = vunpack.c.l.b16 %v371
      %v420 = vunpack.c.l.b16 %v372
      %v421 = vunpack.c.l.b16 %v373
      %v422 = vpack.c.b16 %v407, %v406
      %v423 = vpack.c.b16 %v409, %v408
      %v424 = vpack.c.b16 %v411, %v410
      %v425 = vpack.c.b16 %v413, %v412
      %v426 = vpack.c.b16 %v415, %v414
      %v427 = vpack.c.b16 %v417, %v416
      %v428 = vpack.c.b16 %v419, %v418
      %v429 = vpack.c.b16 %v421, %v420
      %438 = vmatprep.subr.bf16.mxu0 0
      %439 = vmatpush1.bf16.msra.mxu0 %v429
      %440 = vmatprep.subr.bf16.mxu0 0
      %441 = vmatpush1.bf16.msra.mxu0 %v428
      %442 = vmatprep.subr.bf16.mxu0 0
      %443 = vmatpush1.bf16.msra.mxu0 %v427
      %444 = vmatprep.subr.bf16.mxu0 0
      %445 = vmatpush1.bf16.msra.mxu0 %v426
      %446 = vmatprep.subr.bf16.mxu0 0
      %447 = vmatpush1.bf16.msra.mxu0 %v425
      %448 = vmatprep.subr.bf16.mxu0 0
      %449 = vmatpush1.bf16.msra.mxu0 %v424
      %450 = vmatprep.subr.bf16.mxu0 0
      %451 = vmatpush1.bf16.msra.mxu0 %v423
      %452 = vmatprep.subr.bf16.mxu0 0
      %453 = vmatpush1.bf16.msra.mxu0 %v422
      %454 = vmatprep.subr.bf16.mxu0 0
      %455 = vmatpush2.bf16.msra.mxu0 0
      %456 = vmatprep.subr.bf16.mxu0 0
      %457 = vmatpush2.bf16.msra.mxu0 0
      %458 = vmatprep.subr.bf16.mxu0 0
      %459 = vmatpush2.bf16.msra.mxu0 0
      %460 = vmatprep.subr.bf16.mxu0 0
      %461 = vmatpush2.bf16.msra.mxu0 0
      %462 = vmatprep.subr.bf16.mxu0 0
      %463 = vmatpush2.bf16.msra.mxu0 0
      %464 = vmatprep.subr.bf16.mxu0 0
      %465 = vmatpush2.bf16.msra.mxu0 0
      %466 = vmatprep.subr.bf16.mxu0 0
      %467 = vmatpush2.bf16.msra.mxu0 0
      %468 = vmatprep.subr.bf16.mxu0 0
      %469 = vmatpush2.bf16.msra.mxu0 0
      %470 = vmatprep.mubr.bf16.mxu0 0
      %471 = vmatmul.mubr.bf16.gmra.mxu0 %v382
      %v472 = vpop.f32.mrf.mxu0
      %v473 = vadd.f32 0.0, %v472
      %v474 = vpop.f32.mrf.mxu0
      %v475 = vpop.f32.mrf.mxu0
      %v476 = vadd.f32 0.0, %v475
      %v477 = vpop.f32.mrf.mxu0
      %478 = vmatprep.mubr.bf16.mxu0 0
      %479 = vmatmul.mubr.bf16.gmra.mxu0 %v383
      %v480 = vpop.f32.mrf.mxu0
      %v481 = vadd.f32 0.0, %v480
      %v482 = vpop.f32.mrf.mxu0
      %v483 = vpop.f32.mrf.mxu0
      %v484 = vadd.f32 0.0, %v483
      %v485 = vpop.f32.mrf.mxu0
      %486 = vmatprep.mubr.bf16.mxu0 0
      %487 = vmatmul.mubr.bf16.gmra.mxu0 %v384
      %v488 = vpop.f32.mrf.mxu0
      %v489 = vadd.f32 0.0, %v488
      %v490 = vpop.f32.mrf.mxu0
      %v491 = vpop.f32.mrf.mxu0
      %v492 = vadd.f32 0.0, %v491
      %v493 = vpop.f32.mrf.mxu0
      %494 = vmatprep.mubr.bf16.mxu0 0
      %495 = vmatmul.mubr.bf16.gmra.mxu0 %v385
      %v496 = vpop.f32.mrf.mxu0
      %v497 = vadd.f32 0.0, %v496
      %v498 = vpop.f32.mrf.mxu0
      %v499 = vpop.f32.mrf.mxu0
      %v500 = vadd.f32 0.0, %v499
      %v501 = vpop.f32.mrf.mxu0
      %502 = vdwg.mxu0
      %v511 = vunpack.c.l.b16 %v210
      %v512 = vunpack.c.l.b16 %v211
      %v513 = vunpack.c.l.b16 %v212
      %v514 = vunpack.c.l.b16 %v213
      %v515 = vunpack.c.l.b16 %v214
      %v516 = vunpack.c.l.b16 %v215
      %v517 = vunpack.c.l.b16 %v216
      %v518 = vunpack.c.l.b16 %v217
      %v519 = vpack.c.b16 %v512, %v511
      %v520 = vpack.c.b16 %v514, %v513
      %v521 = vpack.c.b16 %v516, %v515
      %v522 = vpack.c.b16 %v518, %v517
      %v543 = vunpack.c.l.b16 %v218
      %v544 = vunpack.c.l.b16 %v219
      %v545 = vunpack.c.l.b16 %v220
      %v546 = vunpack.c.l.b16 %v221
      %v547 = vunpack.c.l.b16 %v222
      %v548 = vunpack.c.l.b16 %v223
      %v549 = vunpack.c.l.b16 %v224
      %v550 = vunpack.c.l.b16 %v225
      %v551 = vunpack.c.l.b16 %v226
      %v552 = vunpack.c.l.b16 %v227
      %v553 = vunpack.c.l.b16 %v228
      %v554 = vunpack.c.l.b16 %v229
      %v555 = vunpack.c.l.b16 %v230
      %v556 = vunpack.c.l.b16 %v231
      %v557 = vunpack.c.l.b16 %v232
      %v558 = vunpack.c.l.b16 %v233
      %v559 = vpack.c.b16 %v544, %v543
      %v560 = vpack.c.b16 %v546, %v545
      %v561 = vpack.c.b16 %v548, %v547
      %v562 = vpack.c.b16 %v550, %v549
      %v563 = vpack.c.b16 %v552, %v551
      %v564 = vpack.c.b16 %v554, %v553
      %v565 = vpack.c.b16 %v556, %v555
      %v566 = vpack.c.b16 %v558, %v557
      %575 = vmatprep.subr.bf16.mxu0 0
      %576 = vmatpush1.bf16.msra.mxu0 %v566
      %577 = vmatprep.subr.bf16.mxu0 0
      %578 = vmatpush1.bf16.msra.mxu0 %v565
      %579 = vmatprep.subr.bf16.mxu0 0
      %580 = vmatpush1.bf16.msra.mxu0 %v564
      %581 = vmatprep.subr.bf16.mxu0 0
      %582 = vmatpush1.bf16.msra.mxu0 %v563
      %583 = vmatprep.subr.bf16.mxu0 0
      %584 = vmatpush1.bf16.msra.mxu0 %v562
      %585 = vmatprep.subr.bf16.mxu0 0
      %586 = vmatpush1.bf16.msra.mxu0 %v561
      %587 = vmatprep.subr.bf16.mxu0 0
      %588 = vmatpush1.bf16.msra.mxu0 %v560
      %589 = vmatprep.subr.bf16.mxu0 0
      %590 = vmatpush1.bf16.msra.mxu0 %v559
      %591 = vmatprep.subr.bf16.mxu0 0
      %592 = vmatpush2.bf16.msra.mxu0 0
      %593 = vmatprep.subr.bf16.mxu0 0
      %594 = vmatpush2.bf16.msra.mxu0 0
      %595 = vmatprep.subr.bf16.mxu0 0
      %596 = vmatpush2.bf16.msra.mxu0 0
      %597 = vmatprep.subr.bf16.mxu0 0
      %598 = vmatpush2.bf16.msra.mxu0 0
      %599 = vmatprep.subr.bf16.mxu0 0
      %600 = vmatpush2.bf16.msra.mxu0 0
      %601 = vmatprep.subr.bf16.mxu0 0
      %602 = vmatpush2.bf16.msra.mxu0 0
      %603 = vmatprep.subr.bf16.mxu0 0
      %604 = vmatpush2.bf16.msra.mxu0 0
      %605 = vmatprep.subr.bf16.mxu0 0
      %606 = vmatpush2.bf16.msra.mxu0 0
      %607 = vmatprep.mubr.bf16.mxu0 0
      %608 = vmatmul.mubr.bf16.gmra.mxu0 %v519
      %v609 = vpop.f32.mrf.mxu0
      %v610 = vadd.f32 %v473, %v609
      %v611 = vpop.f32.mrf.mxu0
      %v612 = vpop.f32.mrf.mxu0
      %v613 = vadd.f32 %v476, %v612
      %v614 = vpop.f32.mrf.mxu0
      %615 = vmatprep.mubr.bf16.mxu0 0
      %616 = vmatmul.mubr.bf16.gmra.mxu0 %v520
      %v617 = vpop.f32.mrf.mxu0
      %v618 = vadd.f32 %v481, %v617
      %v619 = vpop.f32.mrf.mxu0
      %v620 = vpop.f32.mrf.mxu0
      %v621 = vadd.f32 %v484, %v620
      %v622 = vpop.f32.mrf.mxu0
      %623 = vmatprep.mubr.bf16.mxu0 0
      %624 = vmatmul.mubr.bf16.gmra.mxu0 %v521
      %v625 = vpop.f32.mrf.mxu0
      %v626 = vadd.f32 %v489, %v625
      %v627 = vpop.f32.mrf.mxu0
      %v628 = vpop.f32.mrf.mxu0
      %v629 = vadd.f32 %v492, %v628
      %v630 = vpop.f32.mrf.mxu0
      %631 = vmatprep.mubr.bf16.mxu0 0
      %632 = vmatmul.mubr.bf16.gmra.mxu0 %v522
      %v633 = vpop.f32.mrf.mxu0
      %v634 = vadd.f32 %v497, %v633
      %v635 = vpop.f32.mrf.mxu0
      %v636 = vpop.f32.mrf.mxu0
      %v637 = vadd.f32 %v500, %v636
      %v638 = vpop.f32.mrf.mxu0
      %639 = vdwg.mxu0
      %v640 = vld [vmem:[%s209] sm:$0xe]
      %v641 = vld [vmem:[%s209 + $0x8] sm:$0xe]
      %v642 = vld [vmem:[%s209 + $0x10] sm:$0xe]
      %v643 = vld [vmem:[%s209 + $0x18] sm:$0xe]
      %v644 = vld [vmem:[%s209 + $0x20] sm:$0xe]
      %v645 = vld [vmem:[%s209 + $0x28] sm:$0xe]
      %v646 = vld [vmem:[%s209 + $0x30] sm:$0xe]
      %v647 = vld [vmem:[%s209 + $0x38] sm:$0xe]
      %vm664 = vcmask 1042432
      %vm665 = vcmask 1046532
      %vm666 = vmor %vm664, %vm665
      %v667 = vrot.slane %v640, 5
      %v668 = vrot.slane %v667, 4
      %v669 = vrot.slane %v234, 5
      %v670 = vsel %vm666, %v668, %v669
      %v671 = vrot.slane %v641, 5
      %v672 = vrot.slane %v671, 4
      %v673 = vrot.slane %v235, 5
      %v674 = vsel %vm666, %v672, %v673
      %v675 = vrot.slane %v642, 5
      %v676 = vrot.slane %v675, 4
      %v677 = vrot.slane %v236, 5
      %v678 = vsel %vm666, %v676, %v677
      %v679 = vrot.slane %v643, 5
      %v680 = vrot.slane %v679, 4
      %v681 = vrot.slane %v237, 5
      %v682 = vsel %vm666, %v680, %v681
      %v683 = vrot.slane %v644, 5
      %v684 = vrot.slane %v683, 4
      %v685 = vrot.slane %v238, 5
      %v686 = vsel %vm666, %v684, %v685
      %v687 = vrot.slane %v645, 5
      %v688 = vrot.slane %v687, 4
      %v689 = vrot.slane %v239, 5
      %v690 = vsel %vm666, %v688, %v689
      %v691 = vrot.slane %v646, 5
      %v692 = vrot.slane %v691, 4
      %v693 = vrot.slane %v240, 5
      %v694 = vsel %vm666, %v692, %v693
      %v695 = vrot.slane %v647, 5
      %v696 = vrot.slane %v695, 4
      %v697 = vrot.slane %v241, 5
      %v698 = vsel %vm666, %v696, %v697
      %s699 = scalar_lea.vmem %s1, 128
      %v700 = vld [vmem:[%s699] sm:$0xf]
      %v701 = vld [vmem:[%s699 + $0x4] sm:$0xf]
      %v702 = vld [vmem:[%s699 + $0x8] sm:$0xf]
      %v703 = vld [vmem:[%s699 + $0xc] sm:$0xf]
      %v704 = vld [vmem:[%s699 + $0x10] sm:$0xf]
      %v705 = vld [vmem:[%s699 + $0x14] sm:$0xf]
      %v706 = vld [vmem:[%s699 + $0x18] sm:$0xf]
      %v707 = vld [vmem:[%s699 + $0x1c] sm:$0xf]
      %v708 = vld [vmem:[%s699 + $0x20] sm:$0xf]
      %v709 = vld [vmem:[%s699 + $0x24] sm:$0xf]
      %v710 = vld [vmem:[%s699 + $0x28] sm:$0xf]
      %v711 = vld [vmem:[%s699 + $0x2c] sm:$0xf]
      %v712 = vld [vmem:[%s699 + $0x30] sm:$0xf]
      %v713 = vld [vmem:[%s699 + $0x34] sm:$0xf]
      %v714 = vld [vmem:[%s699 + $0x38] sm:$0xf]
      %v715 = vld [vmem:[%s699 + $0x3c] sm:$0xf]
      %v716 = vunpack.c.l.b16 %v670
      %v717 = vunpack.c.l.b16 %v674
      %v718 = vunpack.c.l.b16 %v678
      %v719 = vunpack.c.l.b16 %v682
      %v720 = vunpack.c.l.b16 %v686
      %v721 = vunpack.c.l.b16 %v690
      %v722 = vunpack.c.l.b16 %v694
      %v723 = vunpack.c.l.b16 %v698
      %v724 = vpack.c.b16 %v717, %v716
      %v725 = vpack.c.b16 %v719, %v718
      %v726 = vpack.c.b16 %v721, %v720
      %v727 = vpack.c.b16 %v723, %v722
      %v748 = vunpack.c.l.b16 %v700
      %v749 = vunpack.c.l.b16 %v701
      %v750 = vunpack.c.l.b16 %v702
      %v751 = vunpack.c.l.b16 %v703
      %v752 = vunpack.c.l.b16 %v704
      %v753 = vunpack.c.l.b16 %v705
      %v754 = vunpack.c.l.b16 %v706
      %v755 = vunpack.c.l.b16 %v707
      %v756 = vunpack.c.l.b16 %v708
      %v757 = vunpack.c.l.b16 %v709
      %v758 = vunpack.c.l.b16 %v710
      %v759 = vunpack.c.l.b16 %v711
      %v760 = vunpack.c.l.b16 %v712
      %v761 = vunpack.c.l.b16 %v713
      %v762 = vunpack.c.l.b16 %v714
      %v763 = vunpack.c.l.b16 %v715
      %v764 = vpack.c.b16 %v749, %v748
      %v765 = vpack.c.b16 %v751, %v750
      %v766 = vpack.c.b16 %v753, %v752
      %v767 = vpack.c.b16 %v755, %v754
      %v768 = vpack.c.b16 %v757, %v756
      %v769 = vpack.c.b16 %v759, %v758
      %v770 = vpack.c.b16 %v761, %v760
      %v771 = vpack.c.b16 %v763, %v762
      %780 = vmatprep.subr.bf16.mxu0 0
      %781 = vmatpush1.bf16.msra.mxu0 %v771
      %782 = vmatprep.subr.bf16.mxu0 0
      %783 = vmatpush1.bf16.msra.mxu0 %v770
      %784 = vmatprep.subr.bf16.mxu0 0
      %785 = vmatpush1.bf16.msra.mxu0 %v769
      %786 = vmatprep.subr.bf16.mxu0 0
      %787 = vmatpush1.bf16.msra.mxu0 %v768
      %788 = vmatprep.subr.bf16.mxu0 0
      %789 = vmatpush1.bf16.msra.mxu0 %v767
      %790 = vmatprep.subr.bf16.mxu0 0
      %791 = vmatpush1.bf16.msra.mxu0 %v766
      %792 = vmatprep.subr.bf16.mxu0 0
      %793 = vmatpush1.bf16.msra.mxu0 %v765
      %794 = vmatprep.subr.bf16.mxu0 0
      %795 = vmatpush1.bf16.msra.mxu0 %v764
      %796 = vmatprep.subr.bf16.mxu0 0
      %797 = vmatpush2.bf16.msra.mxu0 0
      %798 = vmatprep.subr.bf16.mxu0 0
      %799 = vmatpush2.bf16.msra.mxu0 0
      %800 = vmatprep.subr.bf16.mxu0 0
      %801 = vmatpush2.bf16.msra.mxu0 0
      %802 = vmatprep.subr.bf16.mxu0 0
      %803 = vmatpush2.bf16.msra.mxu0 0
      %804 = vmatprep.subr.bf16.mxu0 0
      %805 = vmatpush2.bf16.msra.mxu0 0
      %806 = vmatprep.subr.bf16.mxu0 0
      %807 = vmatpush2.bf16.msra.mxu0 0
      %808 = vmatprep.subr.bf16.mxu0 0
      %809 = vmatpush2.bf16.msra.mxu0 0
      %810 = vmatprep.subr.bf16.mxu0 0
      %811 = vmatpush2.bf16.msra.mxu0 0
      %812 = vmatprep.mubr.bf16.mxu0 0
      %813 = vmatmul.mubr.bf16.gmra.mxu0 %v724
      %v814 = vpop.f32.mrf.mxu0
      %v815 = vadd.f32 0.0, %v814
      %v816 = vpop.f32.mrf.mxu0
      %v817 = vpop.f32.mrf.mxu0
      %v818 = vadd.f32 0.0, %v817
      %v819 = vpop.f32.mrf.mxu0
      %820 = vmatprep.mubr.bf16.mxu0 0
      %821 = vmatmul.mubr.bf16.gmra.mxu0 %v725
      %v822 = vpop.f32.mrf.mxu0
      %v823 = vadd.f32 0.0, %v822
      %v824 = vpop.f32.mrf.mxu0
      %v825 = vpop.f32.mrf.mxu0
      %v826 = vadd.f32 0.0, %v825
      %v827 = vpop.f32.mrf.mxu0
      %828 = vmatprep.mubr.bf16.mxu0 0
      %829 = vmatmul.mubr.bf16.gmra.mxu0 %v726
      %v830 = vpop.f32.mrf.mxu0
      %v831 = vadd.f32 0.0, %v830
      %v832 = vpop.f32.mrf.mxu0
      %v833 = vpop.f32.mrf.mxu0
      %v834 = vadd.f32 0.0, %v833
      %v835 = vpop.f32.mrf.mxu0
      %836 = vmatprep.mubr.bf16.mxu0 0
      %837 = vmatmul.mubr.bf16.gmra.mxu0 %v727
      %v838 = vpop.f32.mrf.mxu0
      %v839 = vadd.f32 0.0, %v838
      %v840 = vpop.f32.mrf.mxu0
      %v841 = vpop.f32.mrf.mxu0
      %v842 = vadd.f32 0.0, %v841
      %v843 = vpop.f32.mrf.mxu0
      %844 = vdwg.mxu0
      %v845 = vadd.f32 %v610, %v815
      %v846 = vadd.f32 %v613, %v818
      %v847 = vadd.f32 %v618, %v823
      %v848 = vadd.f32 %v621, %v826
      %v849 = vadd.f32 %v626, %v831
      %v850 = vadd.f32 %v629, %v834
      %v851 = vadd.f32 %v634, %v839
      %v852 = vadd.f32 %v637, %v842
      %s853 = sadd.s32 %s206, 1
      %s854 = smul.u32 %s853, 2
      %s855 = smul.addr %s854, 4
      %s856 = scalar_lea.vmem %s190, %s855
      %v857 = vld [vmem:[%s856] sm:$0xf]
      %v858 = vld [vmem:[%s856 + $0x8] sm:$0xf]
      %v859 = vld [vmem:[%s856 + $0x10] sm:$0xf]
      %v860 = vld [vmem:[%s856 + $0x18] sm:$0xf]
      %v861 = vld [vmem:[%s856 + $0x20] sm:$0xf]
      %v862 = vld [vmem:[%s856 + $0x28] sm:$0xf]
      %v863 = vld [vmem:[%s856 + $0x30] sm:$0xf]
      %v864 = vld [vmem:[%s856 + $0x38] sm:$0xf]
      %s865 = scalar_lea.vmem %s1, 192
      %v866 = vld [vmem:[%s865] sm:$0xf]
      %v867 = vld [vmem:[%s865 + $0x4] sm:$0xf]
      %v868 = vld [vmem:[%s865 + $0x8] sm:$0xf]
      %v869 = vld [vmem:[%s865 + $0xc] sm:$0xf]
      %v870 = vld [vmem:[%s865 + $0x10] sm:$0xf]
      %v871 = vld [vmem:[%s865 + $0x14] sm:$0xf]
      %v872 = vld [vmem:[%s865 + $0x18] sm:$0xf]
      %v873 = vld [vmem:[%s865 + $0x1c] sm:$0xf]
      %v874 = vld [vmem:[%s865 + $0x20] sm:$0xf]
      %v875 = vld [vmem:[%s865 + $0x24] sm:$0xf]
      %v876 = vld [vmem:[%s865 + $0x28] sm:$0xf]
      %v877 = vld [vmem:[%s865 + $0x2c] sm:$0xf]
      %v878 = vld [vmem:[%s865 + $0x30] sm:$0xf]
      %v879 = vld [vmem:[%s865 + $0x34] sm:$0xf]
      %v880 = vld [vmem:[%s865 + $0x38] sm:$0xf]
      %v881 = vld [vmem:[%s865 + $0x3c] sm:$0xf]
      %v890 = vunpack.c.l.b16 %v857
      %v891 = vunpack.c.l.b16 %v858
      %v892 = vunpack.c.l.b16 %v859
      %v893 = vunpack.c.l.b16 %v860
      %v894 = vunpack.c.l.b16 %v861
      %v895 = vunpack.c.l.b16 %v862
      %v896 = vunpack.c.l.b16 %v863
      %v897 = vunpack.c.l.b16 %v864
      %v898 = vpack.c.b16 %v891, %v890
      %v899 = vpack.c.b16 %v893, %v892
      %v900 = vpack.c.b16 %v895, %v894
      %v901 = vpack.c.b16 %v897, %v896
      %v922 = vunpack.c.l.b16 %v866
      %v923 = vunpack.c.l.b16 %v867
      %v924 = vunpack.c.l.b16 %v868
      %v925 = vunpack.c.l.b16 %v869
      %v926 = vunpack.c.l.b16 %v870
      %v927 = vunpack.c.l.b16 %v871
      %v928 = vunpack.c.l.b16 %v872
      %v929 = vunpack.c.l.b16 %v873
      %v930 = vunpack.c.l.b16 %v874
      %v931 = vunpack.c.l.b16 %v875
      %v932 = vunpack.c.l.b16 %v876
      %v933 = vunpack.c.l.b16 %v877
      %v934 = vunpack.c.l.b16 %v878
      %v935 = vunpack.c.l.b16 %v879
      %v936 = vunpack.c.l.b16 %v880
      %v937 = vunpack.c.l.b16 %v881
      %v938 = vpack.c.b16 %v923, %v922
      %v939 = vpack.c.b16 %v925, %v924
      %v940 = vpack.c.b16 %v927, %v926
      %v941 = vpack.c.b16 %v929, %v928
      %v942 = vpack.c.b16 %v931, %v930
      %v943 = vpack.c.b16 %v933, %v932
      %v944 = vpack.c.b16 %v935, %v934
      %v945 = vpack.c.b16 %v937, %v936
      %954 = vmatprep.subr.bf16.mxu0 0
      %955 = vmatpush1.bf16.msra.mxu0 %v945
      %956 = vmatprep.subr.bf16.mxu0 0
      %957 = vmatpush1.bf16.msra.mxu0 %v944
      %958 = vmatprep.subr.bf16.mxu0 0
      %959 = vmatpush1.bf16.msra.mxu0 %v943
      %960 = vmatprep.subr.bf16.mxu0 0
      %961 = vmatpush1.bf16.msra.mxu0 %v942
      %962 = vmatprep.subr.bf16.mxu0 0
      %963 = vmatpush1.bf16.msra.mxu0 %v941
      %964 = vmatprep.subr.bf16.mxu0 0
      %965 = vmatpush1.bf16.msra.mxu0 %v940
      %966 = vmatprep.subr.bf16.mxu0 0
      %967 = vmatpush1.bf16.msra.mxu0 %v939
      %968 = vmatprep.subr.bf16.mxu0 0
      %969 = vmatpush1.bf16.msra.mxu0 %v938
      %970 = vmatprep.subr.bf16.mxu0 0
      %971 = vmatpush2.bf16.msra.mxu0 0
      %972 = vmatprep.subr.bf16.mxu0 0
      %973 = vmatpush2.bf16.msra.mxu0 0
      %974 = vmatprep.subr.bf16.mxu0 0
      %975 = vmatpush2.bf16.msra.mxu0 0
      %976 = vmatprep.subr.bf16.mxu0 0
      %977 = vmatpush2.bf16.msra.mxu0 0
      %978 = vmatprep.subr.bf16.mxu0 0
      %979 = vmatpush2.bf16.msra.mxu0 0
      %980 = vmatprep.subr.bf16.mxu0 0
      %981 = vmatpush2.bf16.msra.mxu0 0
      %982 = vmatprep.subr.bf16.mxu0 0
      %983 = vmatpush2.bf16.msra.mxu0 0
      %984 = vmatprep.subr.bf16.mxu0 0
      %985 = vmatpush2.bf16.msra.mxu0 0
      %986 = vmatprep.mubr.bf16.mxu0 0
      %987 = vmatmul.mubr.bf16.gmra.mxu0 %v898
      %v988 = vpop.f32.mrf.mxu0
      %v989 = vadd.f32 0.0, %v988
      %v990 = vpop.f32.mrf.mxu0
      %v991 = vpop.f32.mrf.mxu0
      %v992 = vadd.f32 0.0, %v991
      %v993 = vpop.f32.mrf.mxu0
      %994 = vmatprep.mubr.bf16.mxu0 0
      %995 = vmatmul.mubr.bf16.gmra.mxu0 %v899
      %v996 = vpop.f32.mrf.mxu0
      %v997 = vadd.f32 0.0, %v996
      %v998 = vpop.f32.mrf.mxu0
      %v999 = vpop.f32.mrf.mxu0
      %v1000 = vadd.f32 0.0, %v999
      %v1001 = vpop.f32.mrf.mxu0
      %1002 = vmatprep.mubr.bf16.mxu0 0
      %1003 = vmatmul.mubr.bf16.gmra.mxu0 %v900
      %v1004 = vpop.f32.mrf.mxu0
      %v1005 = vadd.f32 0.0, %v1004
      %v1006 = vpop.f32.mrf.mxu0
      %v1007 = vpop.f32.mrf.mxu0
      %v1008 = vadd.f32 0.0, %v1007
      %v1009 = vpop.f32.mrf.mxu0
      %1010 = vmatprep.mubr.bf16.mxu0 0
      %1011 = vmatmul.mubr.bf16.gmra.mxu0 %v901
      %v1012 = vpop.f32.mrf.mxu0
      %v1013 = vadd.f32 0.0, %v1012
      %v1014 = vpop.f32.mrf.mxu0
      %v1015 = vpop.f32.mrf.mxu0
      %v1016 = vadd.f32 0.0, %v1015
      %v1017 = vpop.f32.mrf.mxu0
      %1018 = vdwg.mxu0
      %v1019 = vadd.f32 %v845, %v989
      %v1020 = vadd.f32 %v846, %v992
      %v1021 = vadd.f32 %v847, %v997
      %v1022 = vadd.f32 %v848, %v1000
      %v1023 = vadd.f32 %v849, %v1005
      %v1024 = vadd.f32 %v850, %v1008
      %v1025 = vadd.f32 %v851, %v1013
      %v1026 = vadd.f32 %v852, %v1016
      %v1027 = vld [vmem:[%s856] sm:$0xf]
      %v1028 = vld [vmem:[%s856 + $0x4] sm:$0x1]
      %v1029 = vld [vmem:[%s856 + $0x8] sm:$0xf]
      %v1030 = vld [vmem:[%s856 + $0xc] sm:$0x1]
      %v1031 = vld [vmem:[%s856 + $0x10] sm:$0xf]
      %v1032 = vld [vmem:[%s856 + $0x14] sm:$0x1]
      %v1033 = vld [vmem:[%s856 + $0x18] sm:$0xf]
      %v1034 = vld [vmem:[%s856 + $0x1c] sm:$0x1]
      %v1035 = vld [vmem:[%s856 + $0x20] sm:$0xf]
      %v1036 = vld [vmem:[%s856 + $0x24] sm:$0x1]
      %v1037 = vld [vmem:[%s856 + $0x28] sm:$0xf]
      %v1038 = vld [vmem:[%s856 + $0x2c] sm:$0x1]
      %v1039 = vld [vmem:[%s856 + $0x30] sm:$0xf]
      %v1040 = vld [vmem:[%s856 + $0x34] sm:$0x1]
      %v1041 = vld [vmem:[%s856 + $0x38] sm:$0xf]
      %v1042 = vld [vmem:[%s856 + $0x3c] sm:$0x1]
      %v1044 = vshrl.u32 %v1027, 16
      %v1046 = vrot.slane %v1044, 4
      %v1047 = vshll.u32 %v1027, 16
      %v1049 = vrot.slane %v1047, 5
      %v1050 = vor.u32 %v1046, %v1049
      %v1051 = vrot.slane %v1050, 4
      %v1053 = vshll.u32 %v1028, 16
      %v1055 = vrot.slane %v1053, 5
      %v1056 = vsel %vm244, %v1051, %v1055
      %v1058 = vshrl.u32 %v1029, 16
      %v1060 = vrot.slane %v1058, 4
      %v1061 = vshll.u32 %v1029, 16
      %v1063 = vrot.slane %v1061, 5
      %v1064 = vor.u32 %v1060, %v1063
      %v1065 = vrot.slane %v1064, 4
      %v1067 = vshll.u32 %v1030, 16
      %v1069 = vrot.slane %v1067, 5
      %v1070 = vsel %vm244, %v1065, %v1069
      %v1072 = vshrl.u32 %v1031, 16
      %v1074 = vrot.slane %v1072, 4
      %v1075 = vshll.u32 %v1031, 16
      %v1077 = vrot.slane %v1075, 5
      %v1078 = vor.u32 %v1074, %v1077
      %v1079 = vrot.slane %v1078, 4
      %v1081 = vshll.u32 %v1032, 16
      %v1083 = vrot.slane %v1081, 5
      %v1084 = vsel %vm244, %v1079, %v1083
      %v1086 = vshrl.u32 %v1033, 16
      %v1088 = vrot.slane %v1086, 4
      %v1089 = vshll.u32 %v1033, 16
      %v1091 = vrot.slane %v1089, 5
      %v1092 = vor.u32 %v1088, %v1091
      %v1093 = vrot.slane %v1092, 4
      %v1095 = vshll.u32 %v1034, 16
      %v1097 = vrot.slane %v1095, 5
      %v1098 = vsel %vm244, %v1093, %v1097
      %v1100 = vshrl.u32 %v1035, 16
      %v1102 = vrot.slane %v1100, 4
      %v1103 = vshll.u32 %v1035, 16
      %v1105 = vrot.slane %v1103, 5
      %v1106 = vor.u32 %v1102, %v1105
      %v1107 = vrot.slane %v1106, 4
      %v1109 = vshll.u32 %v1036, 16
      %v1111 = vrot.slane %v1109, 5
      %v1112 = vsel %vm244, %v1107, %v1111
      %v1114 = vshrl.u32 %v1037, 16
      %v1116 = vrot.slane %v1114, 4
      %v1117 = vshll.u32 %v1037, 16
      %v1119 = vrot.slane %v1117, 5
      %v1120 = vor.u32 %v1116, %v1119
      %v1121 = vrot.slane %v1120, 4
      %v1123 = vshll.u32 %v1038, 16
      %v1125 = vrot.slane %v1123, 5
      %v1126 = vsel %vm244, %v1121, %v1125
      %v1128 = vshrl.u32 %v1039, 16
      %v1130 = vrot.slane %v1128, 4
      %v1131 = vshll.u32 %v1039, 16
      %v1133 = vrot.slane %v1131, 5
      %v1134 = vor.u32 %v1130, %v1133
      %v1135 = vrot.slane %v1134, 4
      %v1137 = vshll.u32 %v1040, 16
      %v1139 = vrot.slane %v1137, 5
      %v1140 = vsel %vm244, %v1135, %v1139
      %v1142 = vshrl.u32 %v1041, 16
      %v1144 = vrot.slane %v1142, 4
      %v1145 = vshll.u32 %v1041, 16
      %v1147 = vrot.slane %v1145, 5
      %v1148 = vor.u32 %v1144, %v1147
      %v1149 = vrot.slane %v1148, 4
      %v1151 = vshll.u32 %v1042, 16
      %v1153 = vrot.slane %v1151, 5
      %v1154 = vsel %vm244, %v1149, %v1153
      %s1155 = scalar_lea.vmem %s1, 256
      %v1156 = vld [vmem:[%s1155] sm:$0xf]
      %v1157 = vld [vmem:[%s1155 + $0x4] sm:$0xf]
      %v1158 = vld [vmem:[%s1155 + $0x8] sm:$0xf]
      %v1159 = vld [vmem:[%s1155 + $0xc] sm:$0xf]
      %v1160 = vld [vmem:[%s1155 + $0x10] sm:$0xf]
      %v1161 = vld [vmem:[%s1155 + $0x14] sm:$0xf]
      %v1162 = vld [vmem:[%s1155 + $0x18] sm:$0xf]
      %v1163 = vld [vmem:[%s1155 + $0x1c] sm:$0xf]
      %v1164 = vld [vmem:[%s1155 + $0x20] sm:$0xf]
      %v1165 = vld [vmem:[%s1155 + $0x24] sm:$0xf]
      %v1166 = vld [vmem:[%s1155 + $0x28] sm:$0xf]
      %v1167 = vld [vmem:[%s1155 + $0x2c] sm:$0xf]
      %v1168 = vld [vmem:[%s1155 + $0x30] sm:$0xf]
      %v1169 = vld [vmem:[%s1155 + $0x34] sm:$0xf]
      %v1170 = vld [vmem:[%s1155 + $0x38] sm:$0xf]
      %v1171 = vld [vmem:[%s1155 + $0x3c] sm:$0xf]
      %v1172 = vunpack.c.l.b16 %v1056
      %v1173 = vunpack.c.l.b16 %v1070
      %v1174 = vunpack.c.l.b16 %v1084
      %v1175 = vunpack.c.l.b16 %v1098
      %v1176 = vunpack.c.l.b16 %v1112
      %v1177 = vunpack.c.l.b16 %v1126
      %v1178 = vunpack.c.l.b16 %v1140
      %v1179 = vunpack.c.l.b16 %v1154
      %v1180 = vpack.c.b16 %v1173, %v1172
      %v1181 = vpack.c.b16 %v1175, %v1174
      %v1182 = vpack.c.b16 %v1177, %v1176
      %v1183 = vpack.c.b16 %v1179, %v1178
      %v1204 = vunpack.c.l.b16 %v1156
      %v1205 = vunpack.c.l.b16 %v1157
      %v1206 = vunpack.c.l.b16 %v1158
      %v1207 = vunpack.c.l.b16 %v1159
      %v1208 = vunpack.c.l.b16 %v1160
      %v1209 = vunpack.c.l.b16 %v1161
      %v1210 = vunpack.c.l.b16 %v1162
      %v1211 = vunpack.c.l.b16 %v1163
      %v1212 = vunpack.c.l.b16 %v1164
      %v1213 = vunpack.c.l.b16 %v1165
      %v1214 = vunpack.c.l.b16 %v1166
      %v1215 = vunpack.c.l.b16 %v1167
      %v1216 = vunpack.c.l.b16 %v1168
      %v1217 = vunpack.c.l.b16 %v1169
      %v1218 = vunpack.c.l.b16 %v1170
      %v1219 = vunpack.c.l.b16 %v1171
      %v1220 = vpack.c.b16 %v1205, %v1204
      %v1221 = vpack.c.b16 %v1207, %v1206
      %v1222 = vpack.c.b16 %v1209, %v1208
      %v1223 = vpack.c.b16 %v1211, %v1210
      %v1224 = vpack.c.b16 %v1213, %v1212
      %v1225 = vpack.c.b16 %v1215, %v1214
      %v1226 = vpack.c.b16 %v1217, %v1216
      %v1227 = vpack.c.b16 %v1219, %v1218
      %1236 = vmatprep.subr.bf16.mxu0 0
      %1237 = vmatpush1.bf16.msra.mxu0 %v1227
      %1238 = vmatprep.subr.bf16.mxu0 0
      %1239 = vmatpush1.bf16.msra.mxu0 %v1226
      %1240 = vmatprep.subr.bf16.mxu0 0
      %1241 = vmatpush1.bf16.msra.mxu0 %v1225
      %1242 = vmatprep.subr.bf16.mxu0 0
      %1243 = vmatpush1.bf16.msra.mxu0 %v1224
      %1244 = vmatprep.subr.bf16.mxu0 0
      %1245 = vmatpush1.bf16.msra.mxu0 %v1223
      %1246 = vmatprep.subr.bf16.mxu0 0
      %1247 = vmatpush1.bf16.msra.mxu0 %v1222
      %1248 = vmatprep.subr.bf16.mxu0 0
      %1249 = vmatpush1.bf16.msra.mxu0 %v1221
      %1250 = vmatprep.subr.bf16.mxu0 0
      %1251 = vmatpush1.bf16.msra.mxu0 %v1220
      %1252 = vmatprep.subr.bf16.mxu0 0
      %1253 = vmatpush2.bf16.msra.mxu0 0
      %1254 = vmatprep.subr.bf16.mxu0 0
      %1255 = vmatpush2.bf16.msra.mxu0 0
      %1256 = vmatprep.subr.bf16.mxu0 0
      %1257 = vmatpush2.bf16.msra.mxu0 0
      %1258 = vmatprep.subr.bf16.mxu0 0
      %1259 = vmatpush2.bf16.msra.mxu0 0
      %1260 = vmatprep.subr.bf16.mxu0 0
      %1261 = vmatpush2.bf16.msra.mxu0 0
      %1262 = vmatprep.subr.bf16.mxu0 0
      %1263 = vmatpush2.bf16.msra.mxu0 0
      %1264 = vmatprep.subr.bf16.mxu0 0
      %1265 = vmatpush2.bf16.msra.mxu0 0
      %1266 = vmatprep.subr.bf16.mxu0 0
      %1267 = vmatpush2.bf16.msra.mxu0 0
      %1268 = vmatprep.mubr.bf16.mxu0 0
      %1269 = vmatmul.mubr.bf16.gmra.mxu0 %v1180
      %v1270 = vpop.f32.mrf.mxu0
      %v1271 = vadd.f32 0.0, %v1270
      %v1272 = vpop.f32.mrf.mxu0
      %v1273 = vpop.f32.mrf.mxu0
      %v1274 = vadd.f32 0.0, %v1273
      %v1275 = vpop.f32.mrf.mxu0
      %1276 = vmatprep.mubr.bf16.mxu0 0
      %1277 = vmatmul.mubr.bf16.gmra.mxu0 %v1181
      %v1278 = vpop.f32.mrf.mxu0
      %v1279 = vadd.f32 0.0, %v1278
      %v1280 = vpop.f32.mrf.mxu0
      %v1281 = vpop.f32.mrf.mxu0
      %v1282 = vadd.f32 0.0, %v1281
      %v1283 = vpop.f32.mrf.mxu0
      %1284 = vmatprep.mubr.bf16.mxu0 0
      %1285 = vmatmul.mubr.bf16.gmra.mxu0 %v1182
      %v1286 = vpop.f32.mrf.mxu0
      %v1287 = vadd.f32 0.0, %v1286
      %v1288 = vpop.f32.mrf.mxu0
      %v1289 = vpop.f32.mrf.mxu0
      %v1290 = vadd.f32 0.0, %v1289
      %v1291 = vpop.f32.mrf.mxu0
      %1292 = vmatprep.mubr.bf16.mxu0 0
      %1293 = vmatmul.mubr.bf16.gmra.mxu0 %v1183
      %v1294 = vpop.f32.mrf.mxu0
      %v1295 = vadd.f32 0.0, %v1294
      %v1296 = vpop.f32.mrf.mxu0
      %v1297 = vpop.f32.mrf.mxu0
      %v1298 = vadd.f32 0.0, %v1297
      %v1299 = vpop.f32.mrf.mxu0
      %1300 = vdwg.mxu0
      %v1301 = vadd.f32 %v1019, %v1271
      %v1302 = vadd.f32 %v1020, %v1274
      %v1303 = vadd.f32 %v1021, %v1279
      %v1304 = vadd.f32 %v1022, %v1282
      %v1305 = vadd.f32 %v1023, %v1287
      %v1306 = vadd.f32 %v1024, %v1290
      %v1307 = vadd.f32 %v1025, %v1295
      %v1308 = vadd.f32 %v1026, %v1298
      %v1309 = vld [vmem:[%s856] sm:$0xe]
      %v1310 = vld [vmem:[%s856 + $0x8] sm:$0xe]
      %v1311 = vld [vmem:[%s856 + $0x10] sm:$0xe]
      %v1312 = vld [vmem:[%s856 + $0x18] sm:$0xe]
      %v1313 = vld [vmem:[%s856 + $0x20] sm:$0xe]
      %v1314 = vld [vmem:[%s856 + $0x28] sm:$0xe]
      %v1315 = vld [vmem:[%s856 + $0x30] sm:$0xe]
      %v1316 = vld [vmem:[%s856 + $0x38] sm:$0xe]
      %v1333 = vrot.slane %v1309, 5
      %v1334 = vrot.slane %v1333, 4
      %v1335 = vrot.slane %v1028, 5
      %v1336 = vsel %vm666, %v1334, %v1335
      %v1337 = vrot.slane %v1310, 5
      %v1338 = vrot.slane %v1337, 4
      %v1339 = vrot.slane %v1030, 5
      %v1340 = vsel %vm666, %v1338, %v1339
      %v1341 = vrot.slane %v1311, 5
      %v1342 = vrot.slane %v1341, 4
      %v1343 = vrot.slane %v1032, 5
      %v1344 = vsel %vm666, %v1342, %v1343
      %v1345 = vrot.slane %v1312, 5
      %v1346 = vrot.slane %v1345, 4
      %v1347 = vrot.slane %v1034, 5
      %v1348 = vsel %vm666, %v1346, %v1347
      %v1349 = vrot.slane %v1313, 5
      %v1350 = vrot.slane %v1349, 4
      %v1351 = vrot.slane %v1036, 5
      %v1352 = vsel %vm666, %v1350, %v1351
      %v1353 = vrot.slane %v1314, 5
      %v1354 = vrot.slane %v1353, 4
      %v1355 = vrot.slane %v1038, 5
      %v1356 = vsel %vm666, %v1354, %v1355
      %v1357 = vrot.slane %v1315, 5
      %v1358 = vrot.slane %v1357, 4
      %v1359 = vrot.slane %v1040, 5
      %v1360 = vsel %vm666, %v1358, %v1359
      %v1361 = vrot.slane %v1316, 5
      %v1362 = vrot.slane %v1361, 4
      %v1363 = vrot.slane %v1042, 5
      %v1364 = vsel %vm666, %v1362, %v1363
      %s1365 = scalar_lea.vmem %s1, 320
      %v1366 = vld [vmem:[%s1365] sm:$0xf]
      %v1367 = vld [vmem:[%s1365 + $0x4] sm:$0xf]
      %v1368 = vld [vmem:[%s1365 + $0x8] sm:$0xf]
      %v1369 = vld [vmem:[%s1365 + $0xc] sm:$0xf]
      %v1370 = vld [vmem:[%s1365 + $0x10] sm:$0xf]
      %v1371 = vld [vmem:[%s1365 + $0x14] sm:$0xf]
      %v1372 = vld [vmem:[%s1365 + $0x18] sm:$0xf]
      %v1373 = vld [vmem:[%s1365 + $0x1c] sm:$0xf]
      %v1374 = vld [vmem:[%s1365 + $0x20] sm:$0xf]
      %v1375 = vld [vmem:[%s1365 + $0x24] sm:$0xf]
      %v1376 = vld [vmem:[%s1365 + $0x28] sm:$0xf]
      %v1377 = vld [vmem:[%s1365 + $0x2c] sm:$0xf]
      %v1378 = vld [vmem:[%s1365 + $0x30] sm:$0xf]
      %v1379 = vld [vmem:[%s1365 + $0x34] sm:$0xf]
      %v1380 = vld [vmem:[%s1365 + $0x38] sm:$0xf]
      %v1381 = vld [vmem:[%s1365 + $0x3c] sm:$0xf]
      %v1382 = vunpack.c.l.b16 %v1336
      %v1383 = vunpack.c.l.b16 %v1340
      %v1384 = vunpack.c.l.b16 %v1344
      %v1385 = vunpack.c.l.b16 %v1348
      %v1386 = vunpack.c.l.b16 %v1352
      %v1387 = vunpack.c.l.b16 %v1356
      %v1388 = vunpack.c.l.b16 %v1360
      %v1389 = vunpack.c.l.b16 %v1364
      %v1390 = vpack.c.b16 %v1383, %v1382
      %v1391 = vpack.c.b16 %v1385, %v1384
      %v1392 = vpack.c.b16 %v1387, %v1386
      %v1393 = vpack.c.b16 %v1389, %v1388
      %v1414 = vunpack.c.l.b16 %v1366
      %v1415 = vunpack.c.l.b16 %v1367
      %v1416 = vunpack.c.l.b16 %v1368
      %v1417 = vunpack.c.l.b16 %v1369
      %v1418 = vunpack.c.l.b16 %v1370
      %v1419 = vunpack.c.l.b16 %v1371
      %v1420 = vunpack.c.l.b16 %v1372
      %v1421 = vunpack.c.l.b16 %v1373
      %v1422 = vunpack.c.l.b16 %v1374
      %v1423 = vunpack.c.l.b16 %v1375
      %v1424 = vunpack.c.l.b16 %v1376
      %v1425 = vunpack.c.l.b16 %v1377
      %v1426 = vunpack.c.l.b16 %v1378
      %v1427 = vunpack.c.l.b16 %v1379
      %v1428 = vunpack.c.l.b16 %v1380
      %v1429 = vunpack.c.l.b16 %v1381
      %v1430 = vpack.c.b16 %v1415, %v1414
      %v1431 = vpack.c.b16 %v1417, %v1416
      %v1432 = vpack.c.b16 %v1419, %v1418
      %v1433 = vpack.c.b16 %v1421, %v1420
      %v1434 = vpack.c.b16 %v1423, %v1422
      %v1435 = vpack.c.b16 %v1425, %v1424
      %v1436 = vpack.c.b16 %v1427, %v1426
      %v1437 = vpack.c.b16 %v1429, %v1428
      %1446 = vmatprep.subr.bf16.mxu0 0
      %1447 = vmatpush1.bf16.msra.mxu0 %v1437
      %1448 = vmatprep.subr.bf16.mxu0 0
      %1449 = vmatpush1.bf16.msra.mxu0 %v1436
      %1450 = vmatprep.subr.bf16.mxu0 0
      %1451 = vmatpush1.bf16.msra.mxu0 %v1435
      %1452 = vmatprep.subr.bf16.mxu0 0
      %1453 = vmatpush1.bf16.msra.mxu0 %v1434
      %1454 = vmatprep.subr.bf16.mxu0 0
      %1455 = vmatpush1.bf16.msra.mxu0 %v1433
      %1456 = vmatprep.subr.bf16.mxu0 0
      %1457 = vmatpush1.bf16.msra.mxu0 %v1432
      %1458 = vmatprep.subr.bf16.mxu0 0
      %1459 = vmatpush1.bf16.msra.mxu0 %v1431
      %1460 = vmatprep.subr.bf16.mxu0 0
      %1461 = vmatpush1.bf16.msra.mxu0 %v1430
      %1462 = vmatprep.subr.bf16.mxu0 0
      %1463 = vmatpush2.bf16.msra.mxu0 0
      %1464 = vmatprep.subr.bf16.mxu0 0
      %1465 = vmatpush2.bf16.msra.mxu0 0
      %1466 = vmatprep.subr.bf16.mxu0 0
      %1467 = vmatpush2.bf16.msra.mxu0 0
      %1468 = vmatprep.subr.bf16.mxu0 0
      %1469 = vmatpush2.bf16.msra.mxu0 0
      %1470 = vmatprep.subr.bf16.mxu0 0
      %1471 = vmatpush2.bf16.msra.mxu0 0
      %1472 = vmatprep.subr.bf16.mxu0 0
      %1473 = vmatpush2.bf16.msra.mxu0 0
      %1474 = vmatprep.subr.bf16.mxu0 0
      %1475 = vmatpush2.bf16.msra.mxu0 0
      %1476 = vmatprep.subr.bf16.mxu0 0
      %1477 = vmatpush2.bf16.msra.mxu0 0
      %1478 = vmatprep.mubr.bf16.mxu0 0
      %1479 = vmatmul.mubr.bf16.gmra.mxu0 %v1390
      %v1480 = vpop.f32.mrf.mxu0
      %v1481 = vadd.f32 0.0, %v1480
      %v1482 = vpop.f32.mrf.mxu0
      %v1483 = vpop.f32.mrf.mxu0
      %v1484 = vadd.f32 0.0, %v1483
      %v1485 = vpop.f32.mrf.mxu0
      %1486 = vmatprep.mubr.bf16.mxu0 0
      %1487 = vmatmul.mubr.bf16.gmra.mxu0 %v1391
      %v1488 = vpop.f32.mrf.mxu0
      %v1489 = vadd.f32 0.0, %v1488
      %v1490 = vpop.f32.mrf.mxu0
      %v1491 = vpop.f32.mrf.mxu0
      %v1492 = vadd.f32 0.0, %v1491
      %v1493 = vpop.f32.mrf.mxu0
      %1494 = vmatprep.mubr.bf16.mxu0 0
      %1495 = vmatmul.mubr.bf16.gmra.mxu0 %v1392
      %v1496 = vpop.f32.mrf.mxu0
      %v1497 = vadd.f32 0.0, %v1496
      %v1498 = vpop.f32.mrf.mxu0
      %v1499 = vpop.f32.mrf.mxu0
      %v1500 = vadd.f32 0.0, %v1499
      %v1501 = vpop.f32.mrf.mxu0
      %1502 = vmatprep.mubr.bf16.mxu0 0
      %1503 = vmatmul.mubr.bf16.gmra.mxu0 %v1393
      %v1504 = vpop.f32.mrf.mxu0
      %v1505 = vadd.f32 0.0, %v1504
      %v1506 = vpop.f32.mrf.mxu0
      %v1507 = vpop.f32.mrf.mxu0
      %v1508 = vadd.f32 0.0, %v1507
      %v1509 = vpop.f32.mrf.mxu0
      %1510 = vdwg.mxu0
      %v1511 = vadd.f32 %v1301, %v1481
      %v1512 = vadd.f32 %v1302, %v1484
      %v1513 = vadd.f32 %v1303, %v1489
      %v1514 = vadd.f32 %v1304, %v1492
      %v1515 = vadd.f32 %v1305, %v1497
      %v1516 = vadd.f32 %v1306, %v1500
      %v1517 = vadd.f32 %v1307, %v1505
      %v1518 = vadd.f32 %v1308, %v1508
      %s1519 = sadd.s32 %s206, 2
      %s1520 = smul.u32 %s1519, 2
      %s1521 = smul.addr %s1520, 4
      %s1522 = scalar_lea.vmem %s190, %s1521
      %v1523 = vld [vmem:[%s1522] sm:$0xf]
      %v1524 = vld [vmem:[%s1522 + $0x8] sm:$0xf]
      %v1525 = vld [vmem:[%s1522 + $0x10] sm:$0xf]
      %v1526 = vld [vmem:[%s1522 + $0x18] sm:$0xf]
      %v1527 = vld [vmem:[%s1522 + $0x20] sm:$0xf]
      %v1528 = vld [vmem:[%s1522 + $0x28] sm:$0xf]
      %v1529 = vld [vmem:[%s1522 + $0x30] sm:$0xf]
      %v1530 = vld [vmem:[%s1522 + $0x38] sm:$0xf]
      %s1531 = scalar_lea.vmem %s1, 384
      %v1532 = vld [vmem:[%s1531] sm:$0xf]
      %v1533 = vld [vmem:[%s1531 + $0x4] sm:$0xf]
      %v1534 = vld [vmem:[%s1531 + $0x8] sm:$0xf]
      %v1535 = vld [vmem:[%s1531 + $0xc] sm:$0xf]
      %v1536 = vld [vmem:[%s1531 + $0x10] sm:$0xf]
      %v1537 = vld [vmem:[%s1531 + $0x14] sm:$0xf]
      %v1538 = vld [vmem:[%s1531 + $0x18] sm:$0xf]
      %v1539 = vld [vmem:[%s1531 + $0x1c] sm:$0xf]
      %v1540 = vld [vmem:[%s1531 + $0x20] sm:$0xf]
      %v1541 = vld [vmem:[%s1531 + $0x24] sm:$0xf]
      %v1542 = vld [vmem:[%s1531 + $0x28] sm:$0xf]
      %v1543 = vld [vmem:[%s1531 + $0x2c] sm:$0xf]
      %v1544 = vld [vmem:[%s1531 + $0x30] sm:$0xf]
      %v1545 = vld [vmem:[%s1531 + $0x34] sm:$0xf]
      %v1546 = vld [vmem:[%s1531 + $0x38] sm:$0xf]
      %v1547 = vld [vmem:[%s1531 + $0x3c] sm:$0xf]
      %v1556 = vunpack.c.l.b16 %v1523
      %v1557 = vunpack.c.l.b16 %v1524
      %v1558 = vunpack.c.l.b16 %v1525
      %v1559 = vunpack.c.l.b16 %v1526
      %v1560 = vunpack.c.l.b16 %v1527
      %v1561 = vunpack.c.l.b16 %v1528
      %v1562 = vunpack.c.l.b16 %v1529
      %v1563 = vunpack.c.l.b16 %v1530
      %v1564 = vpack.c.b16 %v1557, %v1556
      %v1565 = vpack.c.b16 %v1559, %v1558
      %v1566 = vpack.c.b16 %v1561, %v1560
      %v1567 = vpack.c.b16 %v1563, %v1562
      %v1588 = vunpack.c.l.b16 %v1532
      %v1589 = vunpack.c.l.b16 %v1533
      %v1590 = vunpack.c.l.b16 %v1534
      %v1591 = vunpack.c.l.b16 %v1535
      %v1592 = vunpack.c.l.b16 %v1536
      %v1593 = vunpack.c.l.b16 %v1537
      %v1594 = vunpack.c.l.b16 %v1538
      %v1595 = vunpack.c.l.b16 %v1539
      %v1596 = vunpack.c.l.b16 %v1540
      %v1597 = vunpack.c.l.b16 %v1541
      %v1598 = vunpack.c.l.b16 %v1542
      %v1599 = vunpack.c.l.b16 %v1543
      %v1600 = vunpack.c.l.b16 %v1544
      %v1601 = vunpack.c.l.b16 %v1545
      %v1602 = vunpack.c.l.b16 %v1546
      %v1603 = vunpack.c.l.b16 %v1547
      %v1604 = vpack.c.b16 %v1589, %v1588
      %v1605 = vpack.c.b16 %v1591, %v1590
      %v1606 = vpack.c.b16 %v1593, %v1592
      %v1607 = vpack.c.b16 %v1595, %v1594
      %v1608 = vpack.c.b16 %v1597, %v1596
      %v1609 = vpack.c.b16 %v1599, %v1598
      %v1610 = vpack.c.b16 %v1601, %v1600
      %v1611 = vpack.c.b16 %v1603, %v1602
      %1620 = vmatprep.subr.bf16.mxu0 0
      %1621 = vmatpush1.bf16.msra.mxu0 %v1611
      %1622 = vmatprep.subr.bf16.mxu0 0
      %1623 = vmatpush1.bf16.msra.mxu0 %v1610
      %1624 = vmatprep.subr.bf16.mxu0 0
      %1625 = vmatpush1.bf16.msra.mxu0 %v1609
      %1626 = vmatprep.subr.bf16.mxu0 0
      %1627 = vmatpush1.bf16.msra.mxu0 %v1608
      %1628 = vmatprep.subr.bf16.mxu0 0
      %1629 = vmatpush1.bf16.msra.mxu0 %v1607
      %1630 = vmatprep.subr.bf16.mxu0 0
      %1631 = vmatpush1.bf16.msra.mxu0 %v1606
      %1632 = vmatprep.subr.bf16.mxu0 0
      %1633 = vmatpush1.bf16.msra.mxu0 %v1605
      %1634 = vmatprep.subr.bf16.mxu0 0
      %1635 = vmatpush1.bf16.msra.mxu0 %v1604
      %1636 = vmatprep.subr.bf16.mxu0 0
      %1637 = vmatpush2.bf16.msra.mxu0 0
      %1638 = vmatprep.subr.bf16.mxu0 0
      %1639 = vmatpush2.bf16.msra.mxu0 0
      %1640 = vmatprep.subr.bf16.mxu0 0
      %1641 = vmatpush2.bf16.msra.mxu0 0
      %1642 = vmatprep.subr.bf16.mxu0 0
      %1643 = vmatpush2.bf16.msra.mxu0 0
      %1644 = vmatprep.subr.bf16.mxu0 0
      %1645 = vmatpush2.bf16.msra.mxu0 0
      %1646 = vmatprep.subr.bf16.mxu0 0
      %1647 = vmatpush2.bf16.msra.mxu0 0
      %1648 = vmatprep.subr.bf16.mxu0 0
      %1649 = vmatpush2.bf16.msra.mxu0 0
      %1650 = vmatprep.subr.bf16.mxu0 0
      %1651 = vmatpush2.bf16.msra.mxu0 0
      %1652 = vmatprep.mubr.bf16.mxu0 0
      %1653 = vmatmul.mubr.bf16.gmra.mxu0 %v1564
      %v1654 = vpop.f32.mrf.mxu0
      %v1655 = vadd.f32 0.0, %v1654
      %v1656 = vpop.f32.mrf.mxu0
      %v1657 = vpop.f32.mrf.mxu0
      %v1658 = vadd.f32 0.0, %v1657
      %v1659 = vpop.f32.mrf.mxu0
      %1660 = vmatprep.mubr.bf16.mxu0 0
      %1661 = vmatmul.mubr.bf16.gmra.mxu0 %v1565
      %v1662 = vpop.f32.mrf.mxu0
      %v1663 = vadd.f32 0.0, %v1662
      %v1664 = vpop.f32.mrf.mxu0
      %v1665 = vpop.f32.mrf.mxu0
      %v1666 = vadd.f32 0.0, %v1665
      %v1667 = vpop.f32.mrf.mxu0
      %1668 = vmatprep.mubr.bf16.mxu0 0
      %1669 = vmatmul.mubr.bf16.gmra.mxu0 %v1566
      %v1670 = vpop.f32.mrf.mxu0
      %v1671 = vadd.f32 0.0, %v1670
      %v1672 = vpop.f32.mrf.mxu0
      %v1673 = vpop.f32.mrf.mxu0
      %v1674 = vadd.f32 0.0, %v1673
      %v1675 = vpop.f32.mrf.mxu0
      %1676 = vmatprep.mubr.bf16.mxu0 0
      %1677 = vmatmul.mubr.bf16.gmra.mxu0 %v1567
      %v1678 = vpop.f32.mrf.mxu0
      %v1679 = vadd.f32 0.0, %v1678
      %v1680 = vpop.f32.mrf.mxu0
      %v1681 = vpop.f32.mrf.mxu0
      %v1682 = vadd.f32 0.0, %v1681
      %v1683 = vpop.f32.mrf.mxu0
      %1684 = vdwg.mxu0
      %v1685 = vadd.f32 %v1511, %v1655
      %v1686 = vadd.f32 %v1512, %v1658
      %v1687 = vadd.f32 %v1513, %v1663
      %v1688 = vadd.f32 %v1514, %v1666
      %v1689 = vadd.f32 %v1515, %v1671
      %v1690 = vadd.f32 %v1516, %v1674
      %v1691 = vadd.f32 %v1517, %v1679
      %v1692 = vadd.f32 %v1518, %v1682
      %v1693 = vld [vmem:[%s1522] sm:$0xf]
      %v1694 = vld [vmem:[%s1522 + $0x4] sm:$0x1]
      %v1695 = vld [vmem:[%s1522 + $0x8] sm:$0xf]
      %v1696 = vld [vmem:[%s1522 + $0xc] sm:$0x1]
      %v1697 = vld [vmem:[%s1522 + $0x10] sm:$0xf]
      %v1698 = vld [vmem:[%s1522 + $0x14] sm:$0x1]
      %v1699 = vld [vmem:[%s1522 + $0x18] sm:$0xf]
      %v1700 = vld [vmem:[%s1522 + $0x1c] sm:$0x1]
      %v1701 = vld [vmem:[%s1522 + $0x20] sm:$0xf]
      %v1702 = vld [vmem:[%s1522 + $0x24] sm:$0x1]
      %v1703 = vld [vmem:[%s1522 + $0x28] sm:$0xf]
      %v1704 = vld [vmem:[%s1522 + $0x2c] sm:$0x1]
      %v1705 = vld [vmem:[%s1522 + $0x30] sm:$0xf]
      %v1706 = vld [vmem:[%s1522 + $0x34] sm:$0x1]
      %v1707 = vld [vmem:[%s1522 + $0x38] sm:$0xf]
      %v1708 = vld [vmem:[%s1522 + $0x3c] sm:$0x1]
      %v1710 = vshrl.u32 %v1693, 16
      %v1712 = vrot.slane %v1710, 4
      %v1713 = vshll.u32 %v1693, 16
      %v1715 = vrot.slane %v1713, 5
      %v1716 = vor.u32 %v1712, %v1715
      %v1717 = vrot.slane %v1716, 4
      %v1719 = vshll.u32 %v1694, 16
      %v1721 = vrot.slane %v1719, 5
      %v1722 = vsel %vm244, %v1717, %v1721
      %v1724 = vshrl.u32 %v1695, 16
      %v1726 = vrot.slane %v1724, 4
      %v1727 = vshll.u32 %v1695, 16
      %v1729 = vrot.slane %v1727, 5
      %v1730 = vor.u32 %v1726, %v1729
      %v1731 = vrot.slane %v1730, 4
      %v1733 = vshll.u32 %v1696, 16
      %v1735 = vrot.slane %v1733, 5
      %v1736 = vsel %vm244, %v1731, %v1735
      %v1738 = vshrl.u32 %v1697, 16
      %v1740 = vrot.slane %v1738, 4
      %v1741 = vshll.u32 %v1697, 16
      %v1743 = vrot.slane %v1741, 5
      %v1744 = vor.u32 %v1740, %v1743
      %v1745 = vrot.slane %v1744, 4
      %v1747 = vshll.u32 %v1698, 16
      %v1749 = vrot.slane %v1747, 5
      %v1750 = vsel %vm244, %v1745, %v1749
      %v1752 = vshrl.u32 %v1699, 16
      %v1754 = vrot.slane %v1752, 4
      %v1755 = vshll.u32 %v1699, 16
      %v1757 = vrot.slane %v1755, 5
      %v1758 = vor.u32 %v1754, %v1757
      %v1759 = vrot.slane %v1758, 4
      %v1761 = vshll.u32 %v1700, 16
      %v1763 = vrot.slane %v1761, 5
      %v1764 = vsel %vm244, %v1759, %v1763
      %v1766 = vshrl.u32 %v1701, 16
      %v1768 = vrot.slane %v1766, 4
      %v1769 = vshll.u32 %v1701, 16
      %v1771 = vrot.slane %v1769, 5
      %v1772 = vor.u32 %v1768, %v1771
      %v1773 = vrot.slane %v1772, 4
      %v1775 = vshll.u32 %v1702, 16
      %v1777 = vrot.slane %v1775, 5
      %v1778 = vsel %vm244, %v1773, %v1777
      %v1780 = vshrl.u32 %v1703, 16
      %v1782 = vrot.slane %v1780, 4
      %v1783 = vshll.u32 %v1703, 16
      %v1785 = vrot.slane %v1783, 5
      %v1786 = vor.u32 %v1782, %v1785
      %v1787 = vrot.slane %v1786, 4
      %v1789 = vshll.u32 %v1704, 16
      %v1791 = vrot.slane %v1789, 5
      %v1792 = vsel %vm244, %v1787, %v1791
      %v1794 = vshrl.u32 %v1705, 16
      %v1796 = vrot.slane %v1794, 4
      %v1797 = vshll.u32 %v1705, 16
      %v1799 = vrot.slane %v1797, 5
      %v1800 = vor.u32 %v1796, %v1799
      %v1801 = vrot.slane %v1800, 4
      %v1803 = vshll.u32 %v1706, 16
      %v1805 = vrot.slane %v1803, 5
      %v1806 = vsel %vm244, %v1801, %v1805
      %v1808 = vshrl.u32 %v1707, 16
      %v1810 = vrot.slane %v1808, 4
      %v1811 = vshll.u32 %v1707, 16
      %v1813 = vrot.slane %v1811, 5
      %v1814 = vor.u32 %v1810, %v1813
      %v1815 = vrot.slane %v1814, 4
      %v1817 = vshll.u32 %v1708, 16
      %v1819 = vrot.slane %v1817, 5
      %v1820 = vsel %vm244, %v1815, %v1819
      %s1821 = scalar_lea.vmem %s1, 448
      %v1822 = vld [vmem:[%s1821] sm:$0xf]
      %v1823 = vld [vmem:[%s1821 + $0x4] sm:$0xf]
      %v1824 = vld [vmem:[%s1821 + $0x8] sm:$0xf]
      %v1825 = vld [vmem:[%s1821 + $0xc] sm:$0xf]
      %v1826 = vld [vmem:[%s1821 + $0x10] sm:$0xf]
      %v1827 = vld [vmem:[%s1821 + $0x14] sm:$0xf]
      %v1828 = vld [vmem:[%s1821 + $0x18] sm:$0xf]
      %v1829 = vld [vmem:[%s1821 + $0x1c] sm:$0xf]
      %v1830 = vld [vmem:[%s1821 + $0x20] sm:$0xf]
      %v1831 = vld [vmem:[%s1821 + $0x24] sm:$0xf]
      %v1832 = vld [vmem:[%s1821 + $0x28] sm:$0xf]
      %v1833 = vld [vmem:[%s1821 + $0x2c] sm:$0xf]
      %v1834 = vld [vmem:[%s1821 + $0x30] sm:$0xf]
      %v1835 = vld [vmem:[%s1821 + $0x34] sm:$0xf]
      %v1836 = vld [vmem:[%s1821 + $0x38] sm:$0xf]
      %v1837 = vld [vmem:[%s1821 + $0x3c] sm:$0xf]
      %v1838 = vunpack.c.l.b16 %v1722
      %v1839 = vunpack.c.l.b16 %v1736
      %v1840 = vunpack.c.l.b16 %v1750
      %v1841 = vunpack.c.l.b16 %v1764
      %v1842 = vunpack.c.l.b16 %v1778
      %v1843 = vunpack.c.l.b16 %v1792
      %v1844 = vunpack.c.l.b16 %v1806
      %v1845 = vunpack.c.l.b16 %v1820
      %v1846 = vpack.c.b16 %v1839, %v1838
      %v1847 = vpack.c.b16 %v1841, %v1840
      %v1848 = vpack.c.b16 %v1843, %v1842
      %v1849 = vpack.c.b16 %v1845, %v1844
      %v1870 = vunpack.c.l.b16 %v1822
      %v1871 = vunpack.c.l.b16 %v1823
      %v1872 = vunpack.c.l.b16 %v1824
      %v1873 = vunpack.c.l.b16 %v1825
      %v1874 = vunpack.c.l.b16 %v1826
      %v1875 = vunpack.c.l.b16 %v1827
      %v1876 = vunpack.c.l.b16 %v1828
      %v1877 = vunpack.c.l.b16 %v1829
      %v1878 = vunpack.c.l.b16 %v1830
      %v1879 = vunpack.c.l.b16 %v1831
      %v1880 = vunpack.c.l.b16 %v1832
      %v1881 = vunpack.c.l.b16 %v1833
      %v1882 = vunpack.c.l.b16 %v1834
      %v1883 = vunpack.c.l.b16 %v1835
      %v1884 = vunpack.c.l.b16 %v1836
      %v1885 = vunpack.c.l.b16 %v1837
      %v1886 = vpack.c.b16 %v1871, %v1870
      %v1887 = vpack.c.b16 %v1873, %v1872
      %v1888 = vpack.c.b16 %v1875, %v1874
      %v1889 = vpack.c.b16 %v1877, %v1876
      %v1890 = vpack.c.b16 %v1879, %v1878
      %v1891 = vpack.c.b16 %v1881, %v1880
      %v1892 = vpack.c.b16 %v1883, %v1882
      %v1893 = vpack.c.b16 %v1885, %v1884
      %1902 = vmatprep.subr.bf16.mxu0 0
      %1903 = vmatpush1.bf16.msra.mxu0 %v1893
      %1904 = vmatprep.subr.bf16.mxu0 0
      %1905 = vmatpush1.bf16.msra.mxu0 %v1892
      %1906 = vmatprep.subr.bf16.mxu0 0
      %1907 = vmatpush1.bf16.msra.mxu0 %v1891
      %1908 = vmatprep.subr.bf16.mxu0 0
      %1909 = vmatpush1.bf16.msra.mxu0 %v1890
      %1910 = vmatprep.subr.bf16.mxu0 0
      %1911 = vmatpush1.bf16.msra.mxu0 %v1889
      %1912 = vmatprep.subr.bf16.mxu0 0
      %1913 = vmatpush1.bf16.msra.mxu0 %v1888
      %1914 = vmatprep.subr.bf16.mxu0 0
      %1915 = vmatpush1.bf16.msra.mxu0 %v1887
      %1916 = vmatprep.subr.bf16.mxu0 0
      %1917 = vmatpush1.bf16.msra.mxu0 %v1886
      %1918 = vmatprep.subr.bf16.mxu0 0
      %1919 = vmatpush2.bf16.msra.mxu0 0
      %1920 = vmatprep.subr.bf16.mxu0 0
      %1921 = vmatpush2.bf16.msra.mxu0 0
      %1922 = vmatprep.subr.bf16.mxu0 0
      %1923 = vmatpush2.bf16.msra.mxu0 0
      %1924 = vmatprep.subr.bf16.mxu0 0
      %1925 = vmatpush2.bf16.msra.mxu0 0
      %1926 = vmatprep.subr.bf16.mxu0 0
      %1927 = vmatpush2.bf16.msra.mxu0 0
      %1928 = vmatprep.subr.bf16.mxu0 0
      %1929 = vmatpush2.bf16.msra.mxu0 0
      %1930 = vmatprep.subr.bf16.mxu0 0
      %1931 = vmatpush2.bf16.msra.mxu0 0
      %1932 = vmatprep.subr.bf16.mxu0 0
      %1933 = vmatpush2.bf16.msra.mxu0 0
      %1934 = vmatprep.mubr.bf16.mxu0 0
      %1935 = vmatmul.mubr.bf16.gmra.mxu0 %v1846
      %v1936 = vpop.f32.mrf.mxu0
      %v1937 = vadd.f32 0.0, %v1936
      %v1938 = vpop.f32.mrf.mxu0
      %v1939 = vpop.f32.mrf.mxu0
      %v1940 = vadd.f32 0.0, %v1939
      %v1941 = vpop.f32.mrf.mxu0
      %1942 = vmatprep.mubr.bf16.mxu0 0
      %1943 = vmatmul.mubr.bf16.gmra.mxu0 %v1847
      %v1944 = vpop.f32.mrf.mxu0
      %v1945 = vadd.f32 0.0, %v1944
      %v1946 = vpop.f32.mrf.mxu0
      %v1947 = vpop.f32.mrf.mxu0
      %v1948 = vadd.f32 0.0, %v1947
      %v1949 = vpop.f32.mrf.mxu0
      %1950 = vmatprep.mubr.bf16.mxu0 0
      %1951 = vmatmul.mubr.bf16.gmra.mxu0 %v1848
      %v1952 = vpop.f32.mrf.mxu0
      %v1953 = vadd.f32 0.0, %v1952
      %v1954 = vpop.f32.mrf.mxu0
      %v1955 = vpop.f32.mrf.mxu0
      %v1956 = vadd.f32 0.0, %v1955
      %v1957 = vpop.f32.mrf.mxu0
      %1958 = vmatprep.mubr.bf16.mxu0 0
      %1959 = vmatmul.mubr.bf16.gmra.mxu0 %v1849
      %v1960 = vpop.f32.mrf.mxu0
      %v1961 = vadd.f32 0.0, %v1960
      %v1962 = vpop.f32.mrf.mxu0
      %v1963 = vpop.f32.mrf.mxu0
      %v1964 = vadd.f32 0.0, %v1963
      %v1965 = vpop.f32.mrf.mxu0
      %1966 = vdwg.mxu0
      %v1967 = vadd.f32 %v1685, %v1937
      %v1968 = vadd.f32 %v1686, %v1940
      %v1969 = vadd.f32 %v1687, %v1945
      %v1970 = vadd.f32 %v1688, %v1948
      %v1971 = vadd.f32 %v1689, %v1953
      %v1972 = vadd.f32 %v1690, %v1956
      %v1973 = vadd.f32 %v1691, %v1961
      %v1974 = vadd.f32 %v1692, %v1964
      %v1975 = vld [vmem:[%s1522] sm:$0xe]
      %v1976 = vld [vmem:[%s1522 + $0x8] sm:$0xe]
      %v1977 = vld [vmem:[%s1522 + $0x10] sm:$0xe]
      %v1978 = vld [vmem:[%s1522 + $0x18] sm:$0xe]
      %v1979 = vld [vmem:[%s1522 + $0x20] sm:$0xe]
      %v1980 = vld [vmem:[%s1522 + $0x28] sm:$0xe]
      %v1981 = vld [vmem:[%s1522 + $0x30] sm:$0xe]
      %v1982 = vld [vmem:[%s1522 + $0x38] sm:$0xe]
      %v1999 = vrot.slane %v1975, 5
      %v2000 = vrot.slane %v1999, 4
      %v2001 = vrot.slane %v1694, 5
      %v2002 = vsel %vm666, %v2000, %v2001
      %v2003 = vrot.slane %v1976, 5
      %v2004 = vrot.slane %v2003, 4
      %v2005 = vrot.slane %v1696, 5
      %v2006 = vsel %vm666, %v2004, %v2005
      %v2007 = vrot.slane %v1977, 5
      %v2008 = vrot.slane %v2007, 4
      %v2009 = vrot.slane %v1698, 5
      %v2010 = vsel %vm666, %v2008, %v2009
      %v2011 = vrot.slane %v1978, 5
      %v2012 = vrot.slane %v2011, 4
      %v2013 = vrot.slane %v1700, 5
      %v2014 = vsel %vm666, %v2012, %v2013
      %v2015 = vrot.slane %v1979, 5
      %v2016 = vrot.slane %v2015, 4
      %v2017 = vrot.slane %v1702, 5
      %v2018 = vsel %vm666, %v2016, %v2017
      %v2019 = vrot.slane %v1980, 5
      %v2020 = vrot.slane %v2019, 4
      %v2021 = vrot.slane %v1704, 5
      %v2022 = vsel %vm666, %v2020, %v2021
      %v2023 = vrot.slane %v1981, 5
      %v2024 = vrot.slane %v2023, 4
      %v2025 = vrot.slane %v1706, 5
      %v2026 = vsel %vm666, %v2024, %v2025
      %v2027 = vrot.slane %v1982, 5
      %v2028 = vrot.slane %v2027, 4
      %v2029 = vrot.slane %v1708, 5
      %v2030 = vsel %vm666, %v2028, %v2029
      %s2031 = scalar_lea.vmem %s1, 512
      %v2032 = vld [vmem:[%s2031] sm:$0xf]
      %v2033 = vld [vmem:[%s2031 + $0x4] sm:$0xf]
      %v2034 = vld [vmem:[%s2031 + $0x8] sm:$0xf]
      %v2035 = vld [vmem:[%s2031 + $0xc] sm:$0xf]
      %v2036 = vld [vmem:[%s2031 + $0x10] sm:$0xf]
      %v2037 = vld [vmem:[%s2031 + $0x14] sm:$0xf]
      %v2038 = vld [vmem:[%s2031 + $0x18] sm:$0xf]
      %v2039 = vld [vmem:[%s2031 + $0x1c] sm:$0xf]
      %v2040 = vld [vmem:[%s2031 + $0x20] sm:$0xf]
      %v2041 = vld [vmem:[%s2031 + $0x24] sm:$0xf]
      %v2042 = vld [vmem:[%s2031 + $0x28] sm:$0xf]
      %v2043 = vld [vmem:[%s2031 + $0x2c] sm:$0xf]
      %v2044 = vld [vmem:[%s2031 + $0x30] sm:$0xf]
      %v2045 = vld [vmem:[%s2031 + $0x34] sm:$0xf]
      %v2046 = vld [vmem:[%s2031 + $0x38] sm:$0xf]
      %v2047 = vld [vmem:[%s2031 + $0x3c] sm:$0xf]
      %v2048 = vunpack.c.l.b16 %v2002
      %v2049 = vunpack.c.l.b16 %v2006
      %v2050 = vunpack.c.l.b16 %v2010
      %v2051 = vunpack.c.l.b16 %v2014
      %v2052 = vunpack.c.l.b16 %v2018
      %v2053 = vunpack.c.l.b16 %v2022
      %v2054 = vunpack.c.l.b16 %v2026
      %v2055 = vunpack.c.l.b16 %v2030
      %v2056 = vpack.c.b16 %v2049, %v2048
      %v2057 = vpack.c.b16 %v2051, %v2050
      %v2058 = vpack.c.b16 %v2053, %v2052
      %v2059 = vpack.c.b16 %v2055, %v2054
      %v2080 = vunpack.c.l.b16 %v2032
      %v2081 = vunpack.c.l.b16 %v2033
      %v2082 = vunpack.c.l.b16 %v2034
      %v2083 = vunpack.c.l.b16 %v2035
      %v2084 = vunpack.c.l.b16 %v2036
      %v2085 = vunpack.c.l.b16 %v2037
      %v2086 = vunpack.c.l.b16 %v2038
      %v2087 = vunpack.c.l.b16 %v2039
      %v2088 = vunpack.c.l.b16 %v2040
      %v2089 = vunpack.c.l.b16 %v2041
      %v2090 = vunpack.c.l.b16 %v2042
      %v2091 = vunpack.c.l.b16 %v2043
      %v2092 = vunpack.c.l.b16 %v2044
      %v2093 = vunpack.c.l.b16 %v2045
      %v2094 = vunpack.c.l.b16 %v2046
      %v2095 = vunpack.c.l.b16 %v2047
      %v2096 = vpack.c.b16 %v2081, %v2080
      %v2097 = vpack.c.b16 %v2083, %v2082
      %v2098 = vpack.c.b16 %v2085, %v2084
      %v2099 = vpack.c.b16 %v2087, %v2086
      %v2100 = vpack.c.b16 %v2089, %v2088
      %v2101 = vpack.c.b16 %v2091, %v2090
      %v2102 = vpack.c.b16 %v2093, %v2092
      %v2103 = vpack.c.b16 %v2095, %v2094
      %2112 = vmatprep.subr.bf16.mxu0 0
      %2113 = vmatpush1.bf16.msra.mxu0 %v2103
      %2114 = vmatprep.subr.bf16.mxu0 0
      %2115 = vmatpush1.bf16.msra.mxu0 %v2102
      %2116 = vmatprep.subr.bf16.mxu0 0
      %2117 = vmatpush1.bf16.msra.mxu0 %v2101
      %2118 = vmatprep.subr.bf16.mxu0 0
      %2119 = vmatpush1.bf16.msra.mxu0 %v2100
      %2120 = vmatprep.subr.bf16.mxu0 0
      %2121 = vmatpush1.bf16.msra.mxu0 %v2099
      %2122 = vmatprep.subr.bf16.mxu0 0
      %2123 = vmatpush1.bf16.msra.mxu0 %v2098
      %2124 = vmatprep.subr.bf16.mxu0 0
      %2125 = vmatpush1.bf16.msra.mxu0 %v2097
      %2126 = vmatprep.subr.bf16.mxu0 0
      %2127 = vmatpush1.bf16.msra.mxu0 %v2096
      %2128 = vmatprep.subr.bf16.mxu0 0
      %2129 = vmatpush2.bf16.msra.mxu0 0
      %2130 = vmatprep.subr.bf16.mxu0 0
      %2131 = vmatpush2.bf16.msra.mxu0 0
      %2132 = vmatprep.subr.bf16.mxu0 0
      %2133 = vmatpush2.bf16.msra.mxu0 0
      %2134 = vmatprep.subr.bf16.mxu0 0
      %2135 = vmatpush2.bf16.msra.mxu0 0
      %2136 = vmatprep.subr.bf16.mxu0 0
      %2137 = vmatpush2.bf16.msra.mxu0 0
      %2138 = vmatprep.subr.bf16.mxu0 0
      %2139 = vmatpush2.bf16.msra.mxu0 0
      %2140 = vmatprep.subr.bf16.mxu0 0
      %2141 = vmatpush2.bf16.msra.mxu0 0
      %2142 = vmatprep.subr.bf16.mxu0 0
      %2143 = vmatpush2.bf16.msra.mxu0 0
      %2144 = vmatprep.mubr.bf16.mxu0 0
      %2145 = vmatmul.mubr.bf16.gmra.mxu0 %v2056
      %v2146 = vpop.f32.mrf.mxu0
      %v2147 = vadd.f32 0.0, %v2146
      %v2148 = vpop.f32.mrf.mxu0
      %v2149 = vpop.f32.mrf.mxu0
      %v2150 = vadd.f32 0.0, %v2149
      %v2151 = vpop.f32.mrf.mxu0
      %2152 = vmatprep.mubr.bf16.mxu0 0
      %2153 = vmatmul.mubr.bf16.gmra.mxu0 %v2057
      %v2154 = vpop.f32.mrf.mxu0
      %v2155 = vadd.f32 0.0, %v2154
      %v2156 = vpop.f32.mrf.mxu0
      %v2157 = vpop.f32.mrf.mxu0
      %v2158 = vadd.f32 0.0, %v2157
      %v2159 = vpop.f32.mrf.mxu0
      %2160 = vmatprep.mubr.bf16.mxu0 0
      %2161 = vmatmul.mubr.bf16.gmra.mxu0 %v2058
      %v2162 = vpop.f32.mrf.mxu0
      %v2163 = vadd.f32 0.0, %v2162
      %v2164 = vpop.f32.mrf.mxu0
      %v2165 = vpop.f32.mrf.mxu0
      %v2166 = vadd.f32 0.0, %v2165
      %v2167 = vpop.f32.mrf.mxu0
      %2168 = vmatprep.mubr.bf16.mxu0 0
      %2169 = vmatmul.mubr.bf16.gmra.mxu0 %v2059
      %v2170 = vpop.f32.mrf.mxu0
      %v2171 = vadd.f32 0.0, %v2170
      %v2172 = vpop.f32.mrf.mxu0
      %v2173 = vpop.f32.mrf.mxu0
      %v2174 = vadd.f32 0.0, %v2173
      %v2175 = vpop.f32.mrf.mxu0
      %2176 = vdwg.mxu0
      %v2177 = vadd.f32 %v1967, %v2147
      %v2178 = vadd.f32 %v1968, %v2150
      %v2179 = vadd.f32 %v1969, %v2155
      %v2180 = vadd.f32 %v1970, %v2158
      %v2181 = vadd.f32 %v1971, %v2163
      %v2182 = vadd.f32 %v1972, %v2166
      %v2183 = vadd.f32 %v1973, %v2171
      %v2184 = vadd.f32 %v1974, %v2174
      %2185 = vst [vmem:[%s196] sm:$0xff] %v2177
      %2186 = vst [vmem:[%s196 + $0x8] sm:$0xff] %v2178
      %2187 = vst [vmem:[%s196 + $0x10] sm:$0xff] %v2179
      %2188 = vst [vmem:[%s196 + $0x18] sm:$0xff] %v2180
      %2189 = vst [vmem:[%s196 + $0x20] sm:$0xff] %v2181
      %2190 = vst [vmem:[%s196 + $0x28] sm:$0xff] %v2182
      %2191 = vst [vmem:[%s196 + $0x30] sm:$0xff] %v2183
      %2192 = vst [vmem:[%s196 + $0x38] sm:$0xff] %v2184
      %v2193 = vadd.f32 %v2177, %v2178
      %v2194 = vadd.f32 %v2193, %v2179
      %v2195 = vadd.f32 %v2194, %v2180
      %v2196 = vadd.f32 %v2195, %v2181
      %v2197 = vadd.f32 %v2196, %v2182
      %v2198 = vadd.f32 %v2197, %v2183
      %v2199 = vadd.f32 %v2198, %v2184
      %v2200 = vrot.slane %v2199, 4
      %v2201 = vadd.f32 %v2199, %v2200
      %v2202 = vrot.slane %v2201, 2
      %v2203 = vadd.f32 %v2201, %v2202
      %v2204 = vrot.slane %v2203, 1
      %v2205 = vadd.f32 %v2203, %v2204
      %v2206 = vmul.f32 %v2177, %v2177
      %v2207 = vmul.f32 %v2178, %v2178
      %v2208 = vmul.f32 %v2179, %v2179
      %v2209 = vmul.f32 %v2180, %v2180
      %v2210 = vmul.f32 %v2181, %v2181
      %v2211 = vmul.f32 %v2182, %v2182
      %v2212 = vmul.f32 %v2183, %v2183
      %v2213 = vmul.f32 %v2184, %v2184
      %v2214 = vadd.f32 %v2206, %v2207
      %v2215 = vadd.f32 %v2214, %v2208
      %v2216 = vadd.f32 %v2215, %v2209
      %v2217 = vadd.f32 %v2216, %v2210
      %v2218 = vadd.f32 %v2217, %v2211
      %v2219 = vadd.f32 %v2218, %v2212
      %v2220 = vadd.f32 %v2219, %v2213
      %v2221 = vrot.slane %v2220, 4
      %v2222 = vadd.f32 %v2220, %v2221
      %v2223 = vrot.slane %v2222, 2
      %v2224 = vadd.f32 %v2222, %v2223
      %v2225 = vrot.slane %v2224, 1
      %v2226 = vadd.f32 %v2224, %v2225
      %vm2227 = vcmask 1040384
      %v2228 = vsel %vm2227, %v2205, %v2226
      %2229 = vst [vmem:[%s203] sm:$0x3] %v2228
      %s2230 = sadd.s32 %s19, %s20
      %s2231 = smul.u32 8, %s2230
      %p2232 = scmp.lt.s32.totalorder %s2231, 15
      %s2233 = scalar_select %p2232, %s2231, 15
      %s2234 = smul.addr %s2233, 8
      %s2235 = scalar_lea.vmem %s2, %s2234
      %s2236 = sadd.s32 %s19, %s20
      %p2237 = scmp.lt.s32.totalorder %s2236, 1
      %s2238 = scalar_select %p2237, %s2236, 1
      %s2239 = smul.addr %s2238, 2
      %s2240 = scalar_lea.vmem %s3, %s2239
      // Predicated region
      $region29: #{_lambda_.6} parent=27 // pred_check
        %p2241 = pneg %p94
      $region30: #{_lambda_.6} parent=27 // pred_check_branch
        %2243 = sbr.rel (%p2241) target = $region32
      $region31: #{_lambda_.6} parent=27 // pred_region
        %s2244 = sadd.s32 %s19, %s20
        %s2245 = smul.u32 8, %s2244
      $region32: #{_lambda_.6} parent=27 // pred_fallthru
        _
      // Predicated region
      $region33: #{_lambda_.6} parent=27 // pred_check
        %p2246 = pneg %p122
      $region34: #{_lambda_.6} parent=27 // pred_check_branch
        %2248 = sbr.rel (%p2246) target = $region36
      $region35: #{_lambda_.6} parent=27 // pred_region
        %s2249 = sadd.s32 %s19, %s20
      $region36: #{_lambda_.6} parent=27 // pred_fallthru
        _
    $region28: #{_lambda_.6} parent=5 // pred_fallthru
      _
    %p2250 = scmp.le.s32.totalorder 2, %s10
    // Predicated region
    $region37: #{_lambda_.6} parent=5 // pred_check
      %p2251 = pneg %p2250
    $region38: #{_lambda_.6} parent=5 // pred_check_branch
      %2253 = sbr.rel (%p2251) target = $region40
    $region39: #{_lambda_.6} parent=5 // pred_region
      %s2254 = ssub.s32 %s10, 2
      // Predicated region
      $region41: #{_lambda_.6} parent=39 // pred_check
        %p2255 = pneg %p100
      $region42: #{_lambda_.6} parent=39 // pred_check_branch
        %2257 = sbr.rel (%p2255) target = $region44
      $region43: #{_lambda_.6} parent=39 // pred_region
        %s2258 = sadd.s32 %s21, %s22
        %s2259 = smul.u32 8, %s2258
        %p2260 = scmp.lt.s32.totalorder %s2259, 15
        %s2261 = scalar_select %p2260, %s2259, 15
        %s2262 = smul.addr %s2261, 8
        %s2263 = scalar_lea.vmem %s2, %s2262
      $region44: #{_lambda_.6} parent=39 // pred_fallthru
        _
      // Predicated region
      $region45: #{_lambda_.6} parent=39 // pred_check
        %p2264 = pneg %p128
      $region46: #{_lambda_.6} parent=39 // pred_check_branch
        %2266 = sbr.rel (%p2264) target = $region48
      $region47: #{_lambda_.6} parent=39 // pred_region
        %s2267 = sadd.s32 %s21, %s22
        %p2268 = scmp.lt.s32.totalorder %s2267, 1
        %s2269 = scalar_select %p2268, %s2267, 1
        %s2270 = smul.addr %s2269, 2
        %s2271 = scalar_lea.vmem %s3, %s2270
      $region48: #{_lambda_.6} parent=39 // pred_fallthru
        _
    $region40: #{_lambda_.6} parent=5 // pred_fallthru
      _
  $region6: #{_lambda_.6} parent=0 // loop_footer
    %s14 = sadd.s32 1, %s10
  $region7: #{_lambda_.6} parent=0 // loop_footer_branch
    %9 = sbr.rel target = $region3
  $region8: #{_lambda_.6} parent=0 // loop_exit
    _

</llo_original>
